<compile_context>
chip_gen: v7x
topology: tpu7x:2x2x1
jax: 0.10.0
libtpu: 0.0.40
codegen_flags: <defaults>
</compile_context>

<pallas_src>
import jax
import jax.numpy as jnp
from jax.experimental import pallas as pl
from jax.experimental.pallas import tpu as pltpu


def _make_kernel(H, D, E, L):
    """Build the per-batch-element DecoderBlock kernel (grid over N)."""
    inv_scale = 1.0 / (float(E) ** 0.5)
    eps = 1e-5

    def layernorm(y, g, b):                      # f32 in, f32 out
        mu = jnp.mean(y, axis=-1, keepdims=True)
        var = jnp.mean(jnp.square(y - mu), axis=-1, keepdims=True)
        return (y - mu) * jax.lax.rsqrt(var + eps) * g + b

    def split_heads(a_le):
        # (L, E) -> (H, L, D); only needed for the in-kernel cross-attn query.
        return jnp.stack([a_le[:, h * D:(h + 1) * D] for h in range(H)], axis=0)

    def softmax_ctx(qh, kh, vh, keep):
        # qh/kh/vh: (H, L, D) bf16 (1/sqrt(E) already folded into qh)
        # keep: (Lq, Lk) bool, computed once and broadcast over heads.
        energy = jnp.einsum("hqd,hkd->hqk", qh, kh,
                            preferred_element_type=jnp.float32)       # f32
        energy = jnp.where(keep[None, :, :], energy, jnp.float32(-1e20))
        m = jnp.max(energy, axis=-1, keepdims=True)
        p = jnp.exp(energy - m)
        p = p * pl.reciprocal(jnp.sum(p, axis=-1, keepdims=True), approx=True)
        return jnp.einsum("hqk,hkd->hqd", p.astype(jnp.bfloat16), vh,
                          preferred_element_type=jnp.float32)          # (H, L, D) f32

    def out_proj(ctx, wo_hde, bo):
        # Head-contracting output projection: MXU does the head merge,
        # no lane-granularity concatenation.
        per_head = jnp.einsum("hqd,hde->hqe", ctx.astype(jnp.bfloat16), wo_hde,
                              preferred_element_type=jnp.float32)      # (H, L, E)
        return jnp.sum(per_head, axis=0) + bo                          # (L, E) f32

    def build_keep(causal_flag, length, rows, cols):
        keep = cols < length
        return jnp.logical_and(keep,
                               jnp.logical_or(causal_flag == 0, cols <= rows))

    def kernel(trg_spec, src_spec,                 # SMEM: (N, 2) int32 each
               xh_ref, xle_ref, vh_ref, kh_ref,    # activations
               wqkv1, wo1, bo1, gN, bN,
               wq2, wk2, wv2, wo2, bo2, g1, b1, g2, b2,
               wf1, bf1, wf2, bf2,
               out_ref):
        n = pl.program_id(0)

        # ---- masks built in-kernel from scalar-prefetched (causal, valid_len) ----
        rows = jax.lax.broadcasted_iota(jnp.int32, (L, L), 0)
        cols = jax.lax.broadcasted_iota(jnp.int32, (L, L), 1)
        keep_trg = build_keep(trg_spec[n, 0], trg_spec[n, 1], rows, cols)
        keep_src = build_keep(src_spec[n, 0], src_spec[n, 1], rows, cols)
        # TODO(synk): arbitrary dense / head-dependent masks are not supported by
        # this compressed (causal_flag, valid_len) mask path.

        x_hld = xh_ref[0]                       # (H, L, D) bf16, host pre-split
        x_le = xle_ref[0]                       # (L, E)   bf16, for the residual

        # ---- DecoderBlock: masked self-attention (V = K = Q = x), packed QKV ----
        x2 = x_hld.reshape(H * L, D)
        qkv = jnp.dot(x2, wqkv1[...], preferred_element_type=jnp.float32)  # (H*L, 3D)
        q1 = (qkv[:, 0:D] * inv_scale).astype(jnp.bfloat16).reshape(H, L, D)
        k1 = qkv[:, D:2 * D].astype(jnp.bfloat16).reshape(H, L, D)
        v1 = qkv[:, 2 * D:3 * D].astype(jnp.bfloat16).reshape(H, L, D)
        att1 = out_proj(softmax_ctx(q1, k1, v1, keep_trg), wo1[...], bo1[...])

        query = layernorm(att1, gN[...], bN[...]) + x_le.astype(jnp.float32)
        # dropout = identity (eval)

        # ---- TransformerBlock: cross-attention (V=value, K=key, Q=query) ----
        q_rows = split_heads(query.astype(jnp.bfloat16)).reshape(H * L, D)
        q2 = (jnp.dot(q_rows, wq2[...], preferred_element_type=jnp.float32)
              * inv_scale).astype(jnp.bfloat16).reshape(H, L, D)
        k2 = jnp.dot(kh_ref[0].reshape(H * L, D), wk2[...],
                     preferred_element_type=jnp.float32
                     ).astype(jnp.bfloat16).reshape(H, L, D)
        v2 = jnp.dot(vh_ref[0].reshape(H * L, D), wv2[...],
                     preferred_element_type=jnp.float32
                     ).astype(jnp.bfloat16).reshape(H, L, D)
        att2 = out_proj(softmax_ctx(q2, k2, v2, keep_src), wo2[...], bo2[...])

        h1 = layernorm(att2 + query, g1[...], b1[...])

        # ---- feed-forward: Linear -> ReLU -> Linear (bf16 matmuls, f32 accum) ----
        ff = jnp.dot(h1.astype(jnp.bfloat16), wf1[...],
                     preferred_element_type=jnp.float32) + bf1[...]
        ff = jnp.maximum(ff, 0.0)
        ff = jnp.dot(ff.astype(jnp.bfloat16), wf2[...],
                     preferred_element_type=jnp.float32) + bf2[...]

        out_ref[0] = (layernorm(ff, g2[...], b2[...]) + h1).astype(out_ref.dtype)

    return kernel


def decoder_block_pallas(x, value, key, trg_spec, src_spec, params, heads):
    """x, value, key: (N, L, E) bf16.
    trg_spec/src_spec: (N, 2) int32 = [causal_flag, valid_key_len] per batch elem."""
    N, L, E = x.shape
    H = heads
    D = E // H
    FE = params["wf1_t"].shape[1]

    # Host-side head-major layout (plain XLA reshape/transpose in HBM).
    def to_heads(a):
        return a.reshape(N, L, H, D).transpose(0, 2, 1, 3)   # (N, H, L, D)

    x_h, v_h, k_h = to_heads(x), to_heads(value), to_heads(key)

    kernel = _make_kernel(H, D, E, L)

    param_list = [
        params["wqkv1_t"], params["wo1_hde"], params["bo1"],
        params["gN"], params["bN"],
        params["wq2_t"], params["wk2_t"], params["wv2_t"],
        params["wo2_hde"], params["bo2"],
        params["g1"], params["b1"], params["g2"], params["b2"],
        params["wf1_t"], params["bf1"], params["wf2_t"], params["bf2"],
    ]

    def head_spec():
        return pl.BlockSpec((1, H, L, D), lambda n, *pf: (n, 0, 0, 0))

    def seq_spec():
        return pl.BlockSpec((1, L, E), lambda n, *pf: (n, 0, 0))

    def w_spec(w):
        # Grid-invariant full-array block.  (At scale: pipeline_mode=pl.Buffered(1)
        # would single-buffer these and halve their VMEM footprint.)
        return pl.BlockSpec(w.shape, lambda n, *pf, _nd=w.ndim: (0,) * _nd)

    in_specs = ([head_spec(), seq_spec(), head_spec(), head_spec()]
                + [w_spec(w) for w in param_list])

    # Advisory cost estimate so XLA can schedule around the kernel.
    flops_attn = 2 * H * L * D * (3 * D) + 4 * H * L * L * D + 2 * L * E * E
    flops = N * (2 * flops_attn + 4 * L * E * FE)
    transcendentals = N * (2 * H * L * L + 2 * H * L + 3 * L)
    bytes_accessed = (sum(int(a.size) * a.dtype.itemsize
                          for a in [x_h, x, v_h, k_h] + param_list)
                      + int(trg_spec.size + src_spec.size) * 4
                      + N * L * E * 2)                      # bf16 output

    out = pl.pallas_call(
        kernel,
        out_shape=jax.ShapeDtypeStruct((N, L, E), jnp.bfloat16),
        grid_spec=pltpu.PrefetchScalarGridSpec(
            num_scalar_prefetch=2,
            grid=(N,),                 # at scale: grid over (N, Lq-tiles), flash-style
            in_specs=in_specs,
            out_specs=pl.BlockSpec((1, L, E), lambda n, *pf: (n, 0, 0)),
        ),
        compiler_params=pltpu.CompilerParams(
            dimension_semantics=("parallel",),          # batch elems independent
            vmem_limit_bytes=32 * 1024 * 1024),
        cost_estimate=pl.CostEstimate(
            flops=int(flops),
            transcendentals=int(transcendentals),
            bytes_accessed=int(bytes_accessed)),
    )(trg_spec, src_spec, x_h, x, v_h, k_h, *param_list)
    return out


# ------------------- pure-JAX f32 reference (mirrors the PyTorch module) -------------------

def _ref_ln(y, g, b, eps=1e-5):
    mu = y.mean(-1, keepdims=True)
    var = ((y - mu) ** 2).mean(-1, keepdims=True)
    return (y - mu) / jnp.sqrt(var + eps) * g.reshape(-1) + b.reshape(-1)


def _ref_attn(v, k, q, mask, wq_t, wk_t, wv_t, wo_t, bo, H, D, E):
    N, Lq, _ = q.shape
    Lk = k.shape[1]
    qh = q.reshape(N, Lq, H, D) @ wq_t
    kh = k.reshape(N, Lk, H, D) @ wk_t
    vh = v.reshape(N, Lk, H, D) @ wv_t
    energy = jnp.einsum("nqhd,nkhd->nhqk", qh, kh)
    energy = jnp.where(mask[:, None, :, :] == 0.0, -1e20, energy)  # head-invariant mask
    attn = jax.nn.softmax(energy / (E ** 0.5), axis=3)
    out = jnp.einsum("nhql,nlhd->nqhd", attn, vh).reshape(N, Lq, H * D)
    return out @ wo_t + bo.reshape(-1)


def _ref_decoder(x, value, key, trg_mask, src_mask, P, H, D, E):
    att1 = _ref_attn(x, x, x, trg_mask,
                     P["wq1_t"], P["wk1_t"], P["wv1_t"], P["wo1_t"], P["bo1"], H, D, E)
    query = _ref_ln(att1, P["gN"], P["bN"]) + x
    att2 = _ref_attn(value, key, query, src_mask,
                     P["wq2_t"], P["wk2_t"], P["wv2_t"], P["wo2_t"], P["bo2"], H, D, E)
    h1 = _ref_ln(att2 + query, P["g1"], P["b1"])
    ff = jnp.maximum(h1 @ P["wf1_t"] + P["bf1"].reshape(-1), 0.0) @ P["wf2_t"] \
        + P["bf2"].reshape(-1)
    return _ref_ln(ff, P["g2"], P["b2"]) + h1


# ------------------------------------------ main ------------------------------------------

if __name__ == "__main__":
    N, L, E, H, FEXP = 2, 8, 32, 4, 4
    D = E // H
    FE = FEXP * E

    rng = jax.random.PRNGKey(0)
    keys = iter(jax.random.split(rng, 32))

    def rnd(shape, scale=0.1):
        return (scale * jax.random.normal(next(keys), shape)).astype(jnp.float32)

    def bf(a):
        return a.astype(jnp.bfloat16)

    def bf_repr(a):                       # bf16-representable f32 master copy
        return bf(a).astype(jnp.float32)

    # Raw weights (pre-transposed so x @ W_t == nn.Linear(x)); matmul weights are
    # rounded to bf16-representable values so kernel and reference share them.
    raw = {
        "wq1_t": bf_repr(rnd((D, D))), "wk1_t": bf_repr(rnd((D, D))),
        "wv1_t": bf_repr(rnd((D, D))), "wo1_t": bf_repr(rnd((E, E))), "bo1": rnd((1, E)),
        "gN": 1.0 + rnd((1, E), 0.05), "bN": rnd((1, E), 0.05),
        "wq2_t": bf_repr(rnd((D, D))), "wk2_t": bf_repr(rnd((D, D))),
        "wv2_t": bf_repr(rnd((D, D))), "wo2_t": bf_repr(rnd((E, E))), "bo2": rnd((1, E)),
        "g1": 1.0 + rnd((1, E), 0.05), "b1": rnd((1, E), 0.05),
        "g2": 1.0 + rnd((1, E), 0.05), "b2": rnd((1, E), 0.05),
        "wf1_t": bf_repr(rnd((E, FE))), "bf1": rnd((1, FE)),
        "wf2_t": bf_repr(rnd((FE, E))), "bf2": rnd((1, E)),
    }

    # Kernel-side parameters: packed QKV, head-major output projection, bf16 matmul
    # weights, f32 LayerNorm params / biases.
    kparams = {
        "wqkv1_t": bf(jnp.concatenate([raw["wq1_t"], raw["wk1_t"], raw["wv1_t"]], axis=1)),
        "wo1_hde": bf(raw["wo1_t"].reshape(H, D, E)), "bo1": raw["bo1"],
        "gN": raw["gN"], "bN": raw["bN"],
        "wq2_t": bf(raw["wq2_t"]), "wk2_t": bf(raw["wk2_t"]), "wv2_t": bf(raw["wv2_t"]),
        "wo2_hde": bf(raw["wo2_t"].reshape(H, D, E)), "bo2": raw["bo2"],
        "g1": raw["g1"], "b1": raw["b1"], "g2": raw["g2"], "b2": raw["b2"],
        "wf1_t": bf(raw["wf1_t"]), "bf1": raw["bf1"],
        "wf2_t": bf(raw["wf2_t"]), "bf2": raw["bf2"],
    }

    # Activations in bf16.
    x = bf(rnd((N, L, E), 1.0))
    value = bf(rnd((N, L, E), 1.0))
    key_in = bf(rnd((N, L, E), 1.0))

    # Masks as per-batch (causal_flag, valid_key_len) int32 pairs (scalar-prefetched).
    valid_len = jnp.array([L, L - 2], dtype=jnp.int32)
    trg_spec = jnp.stack([jnp.ones((N,), jnp.int32),
                          jnp.full((N,), L, dtype=jnp.int32)], axis=1)   # causal, full len
    src_spec = jnp.stack([jnp.zeros((N,), jnp.int32), valid_len], axis=1)

    out = decoder_block_pallas(x, value, key_in, trg_spec, src_spec, kparams, heads=H)
    out = jax.block_until_ready(out)

    # f32 reference on the same (bf16-representable) inputs/weights with dense masks.
    ar = jnp.arange(L)
    causal = (ar[None, :] <= ar[:, None]).astype(jnp.float32)
    trg_mask = jnp.broadcast_to(causal, (N, L, L))
    key_ok = (ar[None, :] < valid_len[:, None]).astype(jnp.float32)
    src_mask = jnp.broadcast_to(key_ok[:, None, :], (N, L, L))

    ref = _ref_decoder(x.astype(jnp.float32), value.astype(jnp.float32),
                       key_in.astype(jnp.float32), trg_mask, src_mask, raw, H, D, E)

    outf = out.astype(jnp.float32)
    assert out.shape == (N, L, E)
    err = float(jnp.abs(outf - ref).max())
    assert jnp.allclose(outf, ref, atol=5e-2, rtol=5e-2), err

    print("KERNEL_OK")
</pallas_src>

<mosaic_0001>
module attributes {stable_mosaic.version = 11 : i64} {
  func.func @kernel(%arg0: i32, %arg1: memref<2x2xi32, #tpu.memory_space<smem>>, %arg2: memref<2x2xi32, #tpu.memory_space<smem>>, %arg3: memref<1x4x8x8xbf16, #tpu.memory_space<vmem>>, %arg4: memref<1x8x32xbf16, #tpu.memory_space<vmem>>, %arg5: memref<1x4x8x8xbf16, #tpu.memory_space<vmem>>, %arg6: memref<1x4x8x8xbf16, #tpu.memory_space<vmem>>, %arg7: memref<8x24xbf16, #tpu.memory_space<vmem>>, %arg8: memref<4x8x32xbf16, #tpu.memory_space<vmem>>, %arg9: memref<1x32xf32, #tpu.memory_space<vmem>>, %arg10: memref<1x32xf32, #tpu.memory_space<vmem>>, %arg11: memref<1x32xf32, #tpu.memory_space<vmem>>, %arg12: memref<8x8xbf16, #tpu.memory_space<vmem>>, %arg13: memref<8x8xbf16, #tpu.memory_space<vmem>>, %arg14: memref<8x8xbf16, #tpu.memory_space<vmem>>, %arg15: memref<4x8x32xbf16, #tpu.memory_space<vmem>>, %arg16: memref<1x32xf32, #tpu.memory_space<vmem>>, %arg17: memref<1x32xf32, #tpu.memory_space<vmem>>, %arg18: memref<1x32xf32, #tpu.memory_space<vmem>>, %arg19: memref<1x32xf32, #tpu.memory_space<vmem>>, %arg20: memref<1x32xf32, #tpu.memory_space<vmem>>, %arg21: memref<32x128xbf16, #tpu.memory_space<vmem>>, %arg22: memref<1x128xf32, #tpu.memory_space<vmem>>, %arg23: memref<128x32xbf16, #tpu.memory_space<vmem>>, %arg24: memref<1x32xf32, #tpu.memory_space<vmem>>, %arg25: memref<1x8x32xbf16, #tpu.memory_space<vmem>>) attributes {dimension_semantics = [#tpu.dimension_semantics<parallel>], iteration_bounds = array<i64: 2>, scalar_prefetch = 2 : i64, scratch_operands = 0 : i64, tpu.core_type = #tpu.core_type<tc>, window_params = [{transform_indices = @transform_0, window_bounds = array<i64: 1, 4, 8, 8>}, {transform_indices = @transform_1, window_bounds = array<i64: 1, 8, 32>}, {transform_indices = @transform_2, window_bounds = array<i64: 1, 4, 8, 8>}, {transform_indices = @transform_3, window_bounds = array<i64: 1, 4, 8, 8>}, {pipeline_mode = #tpu.pipeline_mode<synchronous>, transform_indices = @transform_4, window_bounds = array<i64: 8, 24>}, {pipeline_mode = #tpu.pipeline_mode<synchronous>, transform_indices = @transform_5, window_bounds = array<i64: 4, 8, 32>}, {pipeline_mode = #tpu.pipeline_mode<synchronous>, transform_indices = @transform_6, window_bounds = array<i64: 1, 32>}, {pipeline_mode = #tpu.pipeline_mode<synchronous>, transform_indices = @transform_7, window_bounds = array<i64: 1, 32>}, {pipeline_mode = #tpu.pipeline_mode<synchronous>, transform_indices = @transform_8, window_bounds = array<i64: 1, 32>}, {pipeline_mode = #tpu.pipeline_mode<synchronous>, transform_indices = @transform_9, window_bounds = array<i64: 8, 8>}, {pipeline_mode = #tpu.pipeline_mode<synchronous>, transform_indices = @transform_10, window_bounds = array<i64: 8, 8>}, {pipeline_mode = #tpu.pipeline_mode<synchronous>, transform_indices = @transform_11, window_bounds = array<i64: 8, 8>}, {pipeline_mode = #tpu.pipeline_mode<synchronous>, transform_indices = @transform_12, window_bounds = array<i64: 4, 8, 32>}, {pipeline_mode = #tpu.pipeline_mode<synchronous>, transform_indices = @transform_13, window_bounds = array<i64: 1, 32>}, {pipeline_mode = #tpu.pipeline_mode<synchronous>, transform_indices = @transform_14, window_bounds = array<i64: 1, 32>}, {pipeline_mode = #tpu.pipeline_mode<synchronous>, transform_indices = @transform_15, window_bounds = array<i64: 1, 32>}, {pipeline_mode = #tpu.pipeline_mode<synchronous>, transform_indices = @transform_16, window_bounds = array<i64: 1, 32>}, {pipeline_mode = #tpu.pipeline_mode<synchronous>, transform_indices = @transform_17, window_bounds = array<i64: 1, 32>}, {pipeline_mode = #tpu.pipeline_mode<synchronous>, transform_indices = @transform_18, window_bounds = array<i64: 32, 128>}, {pipeline_mode = #tpu.pipeline_mode<synchronous>, transform_indices = @transform_19, window_bounds = array<i64: 1, 128>}, {pipeline_mode = #tpu.pipeline_mode<synchronous>, transform_indices = @transform_20, window_bounds = array<i64: 128, 32>}, {pipeline_mode = #tpu.pipeline_mode<synchronous>, transform_indices = @transform_21, window_bounds = array<i64: 1, 32>}, {transform_indices = @transform_22, window_bounds = array<i64: 1, 8, 32>}]} {
    %0 = tpu.iota {dimensions = array<i32: 0>} : vector<8x8xi32>
    %1 = tpu.iota {dimensions = array<i32: 1>} : vector<8x8xi32>
    %2 = arith.index_cast %arg0 : i32 to index
    %c0 = arith.constant 0 : index
    %3 = memref.load %arg1[%2, %c0] : memref<2x2xi32, #tpu.memory_space<smem>>
    %4 = arith.index_cast %arg0 : i32 to index
    %c1 = arith.constant 1 : index
    %5 = memref.load %arg1[%4, %c1] : memref<2x2xi32, #tpu.memory_space<smem>>
    %6 = vector.broadcast %5 : i32 to vector<8x8xi32>
    %7 = arith.cmpi slt, %1, %6 : vector<8x8xi32>
    %c0_i32 = arith.constant 0 : i32
    %8 = arith.cmpi eq, %3, %c0_i32 : i32
    %9 = arith.cmpi sle, %1, %0 : vector<8x8xi32>
    %10 = vector.broadcast %8 : i1 to vector<8x8xi1>
    %11 = arith.ori %10, %9 : vector<8x8xi1>
    %12 = arith.andi %7, %11 : vector<8x8xi1>
    %13 = arith.index_cast %arg0 : i32 to index
    %c0_0 = arith.constant 0 : index
    %14 = memref.load %arg2[%13, %c0_0] : memref<2x2xi32, #tpu.memory_space<smem>>
    %15 = arith.index_cast %arg0 : i32 to index
    %c1_1 = arith.constant 1 : index
    %16 = memref.load %arg2[%15, %c1_1] : memref<2x2xi32, #tpu.memory_space<smem>>
    %17 = vector.broadcast %16 : i32 to vector<8x8xi32>
    %18 = arith.cmpi slt, %1, %17 : vector<8x8xi32>
    %c0_i32_2 = arith.constant 0 : i32
    %19 = arith.cmpi eq, %14, %c0_i32_2 : i32
    %20 = arith.cmpi sle, %1, %0 : vector<8x8xi32>
    %21 = vector.broadcast %19 : i1 to vector<8x8xi1>
    %22 = arith.ori %21, %20 : vector<8x8xi1>
    %23 = arith.andi %18, %22 : vector<8x8xi1>
    %c0_3 = arith.constant 0 : index
    %c0_4 = arith.constant 0 : index
    %c0_5 = arith.constant 0 : index
    %c0_6 = arith.constant 0 : index
    %24 = vector.load %arg3[%c0_3, %c0_4, %c0_5, %c0_6] : memref<1x4x8x8xbf16, #tpu.memory_space<vmem>>, vector<1x4x8x8xbf16>
    %25 = vector.shape_cast %24 : vector<1x4x8x8xbf16> to vector<4x8x8xbf16>
    %c0_7 = arith.constant 0 : index
    %c0_8 = arith.constant 0 : index
    %c0_9 = arith.constant 0 : index
    %26 = vector.load %arg4[%c0_7, %c0_8, %c0_9] : memref<1x8x32xbf16, #tpu.memory_space<vmem>>, vector<1x8x32xbf16>
    %27 = vector.shape_cast %26 : vector<1x8x32xbf16> to vector<8x32xbf16>
    %28 = vector.shape_cast %25 : vector<4x8x8xbf16> to vector<32x8xbf16>
    %c0_10 = arith.constant 0 : index
    %c0_11 = arith.constant 0 : index
    %29 = vector.load %arg7[%c0_10, %c0_11] : memref<8x24xbf16, #tpu.memory_space<vmem>>, vector<8x24xbf16>
    %cst = arith.constant dense<0.000000e+00> : vector<32x24xf32>
    %30 = tpu.matmul %28, %29, %cst {dimension_numbers = #tpu.dot_dimension_numbers<[1], [0], [0], [1], [0, 0, 1, 1], [], []>} : vector<32x8xbf16>, vector<8x24xbf16>, vector<32x24xf32> -> vector<32x24xf32>
    %31 = vector.extract_strided_slice %30 {offsets = [0, 0], sizes = [32, 8], strides = [1, 1]} : vector<32x24xf32> to vector<32x8xf32>
    %cst_12 = arith.constant 0.176776692 : f32
    %32 = vector.broadcast %cst_12 : f32 to vector<32x8xf32>
    %33 = arith.mulf %31, %32 : vector<32x8xf32>
    %34 = arith.truncf %33 : vector<32x8xf32> to vector<32x8xbf16>
    %35 = vector.shape_cast %34 : vector<32x8xbf16> to vector<4x8x8xbf16>
    %36 = vector.extract_strided_slice %30 {offsets = [0, 8], sizes = [32, 8], strides = [1, 1]} : vector<32x24xf32> to vector<32x8xf32>
    %37 = arith.truncf %36 : vector<32x8xf32> to vector<32x8xbf16>
    %38 = vector.shape_cast %37 : vector<32x8xbf16> to vector<4x8x8xbf16>
    %39 = vector.extract_strided_slice %30 {offsets = [0, 16], sizes = [32, 8], strides = [1, 1]} : vector<32x24xf32> to vector<32x8xf32>
    %40 = arith.truncf %39 : vector<32x8xf32> to vector<32x8xbf16>
    %41 = vector.shape_cast %40 : vector<32x8xbf16> to vector<4x8x8xbf16>
    "tpu.trace_start"() <{level = 10 : i32, message = "hqd,hkd->hqk"}> : () -> ()
    %cst_13 = arith.constant dense<0.000000e+00> : vector<4x8x8xf32>
    %42 = tpu.matmul %35, %38, %cst_13 {dimension_numbers = #tpu.dot_dimension_numbers<[2], [2], [1], [1], [0, 0, 0, 1, 1, 1], [0], [0]>} : vector<4x8x8xbf16>, vector<4x8x8xbf16>, vector<4x8x8xf32> -> vector<4x8x8xf32>
    "tpu.trace_stop"() : () -> ()
    %43 = vector.shape_cast %12 : vector<8x8xi1> to vector<1x8x8xi1>
    %cst_14 = arith.constant -1.000000e+20 : f32
    %44 = vector.shape_cast %43 : vector<1x8x8xi1> to vector<1x8x8xi1>
    %45 = vector.broadcast %44 : vector<1x8x8xi1> to vector<4x8x8xi1>
    %46 = vector.broadcast %cst_14 : f32 to vector<4x8x8xf32>
    %47 = arith.select %45, %42, %46 : vector<4x8x8xi1>, vector<4x8x8xf32>
    %cst_15 = arith.constant dense<0xFF800000> : vector<4x8xf32>
    %48 = vector.multi_reduction <maximumf>, %47, %cst_15 [2] : vector<4x8x8xf32> to vector<4x8xf32>
    %49 = vector.shape_cast %48 : vector<4x8xf32> to vector<4x8x1xf32>
    %50 = vector.broadcast %49 : vector<4x8x1xf32> to vector<4x8x8xf32>
    %51 = arith.subf %47, %50 : vector<4x8x8xf32>
    %52 = math.exp %51 : vector<4x8x8xf32>
    %cst_16 = arith.constant dense<0.000000e+00> : vector<4x8xf32>
    %53 = vector.multi_reduction <add>, %52, %cst_16 [2] : vector<4x8x8xf32> to vector<4x8xf32>
    %54 = vector.shape_cast %53 : vector<4x8xf32> to vector<4x8x1xf32>
    %55 = tpu.reciprocal %54 {approx = true} : vector<4x8x1xf32> -> vector<4x8x1xf32>
    %56 = vector.broadcast %55 : vector<4x8x1xf32> to vector<4x8x8xf32>
    %57 = arith.mulf %52, %56 : vector<4x8x8xf32>
    %58 = arith.truncf %57 : vector<4x8x8xf32> to vector<4x8x8xbf16>
    "tpu.trace_start"() <{level = 10 : i32, message = "hqk,hkd->hqd"}> : () -> ()
    %cst_17 = arith.constant dense<0.000000e+00> : vector<4x8x8xf32>
    %59 = tpu.matmul %58, %41, %cst_17 {dimension_numbers = #tpu.dot_dimension_numbers<[2], [1], [1], [2], [0, 0, 0, 1, 1, 2], [0], [0]>} : vector<4x8x8xbf16>, vector<4x8x8xbf16>, vector<4x8x8xf32> -> vector<4x8x8xf32>
    "tpu.trace_stop"() : () -> ()
    %c0_18 = arith.constant 0 : index
    %c0_19 = arith.constant 0 : index
    %c0_20 = arith.constant 0 : index
    %60 = vector.load %arg8[%c0_18, %c0_19, %c0_20] : memref<4x8x32xbf16, #tpu.memory_space<vmem>>, vector<4x8x32xbf16>
    %c0_21 = arith.constant 0 : index
    %c0_22 = arith.constant 0 : index
    %61 = vector.load %arg9[%c0_21, %c0_22] : memref<1x32xf32, #tpu.memory_space<vmem>>, vector<1x32xf32>
    %62 = arith.truncf %59 : vector<4x8x8xf32> to vector<4x8x8xbf16>
    "tpu.trace_start"() <{level = 10 : i32, message = "hqd,hde->hqe"}> : () -> ()
    %cst_23 = arith.constant dense<0.000000e+00> : vector<4x8x32xf32>
    %63 = tpu.matmul %62, %60, %cst_23 {dimension_numbers = #tpu.dot_dimension_numbers<[2], [1], [1], [2], [0, 0, 0, 1, 1, 2], [0], [0]>} : vector<4x8x8xbf16>, vector<4x8x32xbf16>, vector<4x8x32xf32> -> vector<4x8x32xf32>
    "tpu.trace_stop"() : () -> ()
    %cst_24 = arith.constant dense<0.000000e+00> : vector<8x32xf32>
    %64 = vector.multi_reduction <add>, %63, %cst_24 [0] : vector<4x8x32xf32> to vector<8x32xf32>
    %65 = vector.broadcast %61 : vector<1x32xf32> to vector<8x32xf32>
    %66 = arith.addf %64, %65 : vector<8x32xf32>
    %c0_25 = arith.constant 0 : index
    %c0_26 = arith.constant 0 : index
    %67 = vector.load %arg10[%c0_25, %c0_26] : memref<1x32xf32, #tpu.memory_space<vmem>>, vector<1x32xf32>
    %c0_27 = arith.constant 0 : index
    %c0_28 = arith.constant 0 : index
    %68 = vector.load %arg11[%c0_27, %c0_28] : memref<1x32xf32, #tpu.memory_space<vmem>>, vector<1x32xf32>
    %cst_29 = arith.constant dense<0.000000e+00> : vector<8xf32>
    %69 = vector.multi_reduction <add>, %66, %cst_29 [1] : vector<8x32xf32> to vector<8xf32>
    %70 = vector.shape_cast %69 : vector<8xf32> to vector<8x1xf32>
    %cst_30 = arith.constant 3.200000e+01 : f32
    %71 = vector.broadcast %cst_30 : f32 to vector<8x1xf32>
    %72 = arith.divf %70, %71 : vector<8x1xf32>
    %73 = vector.broadcast %72 : vector<8x1xf32> to vector<8x32xf32>
    %74 = arith.subf %66, %73 : vector<8x32xf32>
    %75 = arith.mulf %74, %74 : vector<8x32xf32>
    %cst_31 = arith.constant dense<0.000000e+00> : vector<8xf32>
    %76 = vector.multi_reduction <add>, %75, %cst_31 [1] : vector<8x32xf32> to vector<8xf32>
    %77 = vector.shape_cast %76 : vector<8xf32> to vector<8x1xf32>
    %cst_32 = arith.constant 3.200000e+01 : f32
    %78 = vector.broadcast %cst_32 : f32 to vector<8x1xf32>
    %79 = arith.divf %77, %78 : vector<8x1xf32>
    %80 = vector.broadcast %72 : vector<8x1xf32> to vector<8x32xf32>
    %81 = arith.subf %66, %80 : vector<8x32xf32>
    %cst_33 = arith.constant 9.99999974E-6 : f32
    %82 = vector.broadcast %cst_33 : f32 to vector<8x1xf32>
    %83 = arith.addf %79, %82 : vector<8x1xf32>
    %84 = math.rsqrt %83 : vector<8x1xf32>
    %85 = vector.broadcast %84 : vector<8x1xf32> to vector<8x32xf32>
    %86 = arith.mulf %81, %85 : vector<8x32xf32>
    %87 = vector.broadcast %67 : vector<1x32xf32> to vector<8x32xf32>
    %88 = arith.mulf %86, %87 : vector<8x32xf32>
    %89 = vector.broadcast %68 : vector<1x32xf32> to vector<8x32xf32>
    %90 = arith.addf %88, %89 : vector<8x32xf32>
    %91 = arith.extf %27 : vector<8x32xbf16> to vector<8x32xf32>
    %92 = arith.addf %90, %91 : vector<8x32xf32>
    %93 = arith.truncf %92 : vector<8x32xf32> to vector<8x32xbf16>
    %94 = vector.extract_strided_slice %93 {offsets = [0, 0], sizes = [8, 8], strides = [1, 1]} : vector<8x32xbf16> to vector<8x8xbf16>
    %95 = vector.extract_strided_slice %93 {offsets = [0, 8], sizes = [8, 8], strides = [1, 1]} : vector<8x32xbf16> to vector<8x8xbf16>
    %96 = vector.extract_strided_slice %93 {offsets = [0, 16], sizes = [8, 8], strides = [1, 1]} : vector<8x32xbf16> to vector<8x8xbf16>
    %97 = vector.extract_strided_slice %93 {offsets = [0, 24], sizes = [8, 8], strides = [1, 1]} : vector<8x32xbf16> to vector<8x8xbf16>
    %98 = vector.shape_cast %94 : vector<8x8xbf16> to vector<1x8x8xbf16>
    %99 = vector.shape_cast %95 : vector<8x8xbf16> to vector<1x8x8xbf16>
    %100 = vector.shape_cast %96 : vector<8x8xbf16> to vector<1x8x8xbf16>
    %101 = vector.shape_cast %97 : vector<8x8xbf16> to vector<1x8x8xbf16>
    %102 = tpu.concatenate %98, %99, %100, %101 in 0 : vector<1x8x8xbf16>, vector<1x8x8xbf16>, vector<1x8x8xbf16>, vector<1x8x8xbf16> -> vector<4x8x8xbf16>
    %103 = vector.shape_cast %102 : vector<4x8x8xbf16> to vector<32x8xbf16>
    %c0_34 = arith.constant 0 : index
    %c0_35 = arith.constant 0 : index
    %104 = vector.load %arg12[%c0_34, %c0_35] : memref<8x8xbf16, #tpu.memory_space<vmem>>, vector<8x8xbf16>
    %cst_36 = arith.constant dense<0.000000e+00> : vector<32x8xf32>
    %105 = tpu.matmul %103, %104, %cst_36 {dimension_numbers = #tpu.dot_dimension_numbers<[1], [0], [0], [1], [0, 0, 1, 1], [], []>} : vector<32x8xbf16>, vector<8x8xbf16>, vector<32x8xf32> -> vector<32x8xf32>
    %cst_37 = arith.constant 0.176776692 : f32
    %106 = vector.broadcast %cst_37 : f32 to vector<32x8xf32>
    %107 = arith.mulf %105, %106 : vector<32x8xf32>
    %108 = arith.truncf %107 : vector<32x8xf32> to vector<32x8xbf16>
    %109 = vector.shape_cast %108 : vector<32x8xbf16> to vector<4x8x8xbf16>
    %c0_38 = arith.constant 0 : index
    %c0_39 = arith.constant 0 : index
    %c0_40 = arith.constant 0 : index
    %c0_41 = arith.constant 0 : index
    %110 = vector.load %arg6[%c0_38, %c0_39, %c0_40, %c0_41] : memref<1x4x8x8xbf16, #tpu.memory_space<vmem>>, vector<1x4x8x8xbf16>
    %111 = vector.shape_cast %110 : vector<1x4x8x8xbf16> to vector<4x8x8xbf16>
    %112 = vector.shape_cast %111 : vector<4x8x8xbf16> to vector<32x8xbf16>
    %c0_42 = arith.constant 0 : index
    %c0_43 = arith.constant 0 : index
    %113 = vector.load %arg13[%c0_42, %c0_43] : memref<8x8xbf16, #tpu.memory_space<vmem>>, vector<8x8xbf16>
    %cst_44 = arith.constant dense<0.000000e+00> : vector<32x8xf32>
    %114 = tpu.matmul %112, %113, %cst_44 {dimension_numbers = #tpu.dot_dimension_numbers<[1], [0], [0], [1], [0, 0, 1, 1], [], []>} : vector<32x8xbf16>, vector<8x8xbf16>, vector<32x8xf32> -> vector<32x8xf32>
    %115 = arith.truncf %114 : vector<32x8xf32> to vector<32x8xbf16>
    %116 = vector.shape_cast %115 : vector<32x8xbf16> to vector<4x8x8xbf16>
    %c0_45 = arith.constant 0 : index
    %c0_46 = arith.constant 0 : index
    %c0_47 = arith.constant 0 : index
    %c0_48 = arith.constant 0 : index
    %117 = vector.load %arg5[%c0_45, %c0_46, %c0_47, %c0_48] : memref<1x4x8x8xbf16, #tpu.memory_space<vmem>>, vector<1x4x8x8xbf16>
    %118 = vector.shape_cast %117 : vector<1x4x8x8xbf16> to vector<4x8x8xbf16>
    %119 = vector.shape_cast %118 : vector<4x8x8xbf16> to vector<32x8xbf16>
    %c0_49 = arith.constant 0 : index
    %c0_50 = arith.constant 0 : index
    %120 = vector.load %arg14[%c0_49, %c0_50] : memref<8x8xbf16, #tpu.memory_space<vmem>>, vector<8x8xbf16>
    %cst_51 = arith.constant dense<0.000000e+00> : vector<32x8xf32>
    %121 = tpu.matmul %119, %120, %cst_51 {dimension_numbers = #tpu.dot_dimension_numbers<[1], [0], [0], [1], [0, 0, 1, 1], [], []>} : vector<32x8xbf16>, vector<8x8xbf16>, vector<32x8xf32> -> vector<32x8xf32>
    %122 = arith.truncf %121 : vector<32x8xf32> to vector<32x8xbf16>
    %123 = vector.shape_cast %122 : vector<32x8xbf16> to vector<4x8x8xbf16>
    "tpu.trace_start"() <{level = 10 : i32, message = "hqd,hkd->hqk"}> : () -> ()
    %cst_52 = arith.constant dense<0.000000e+00> : vector<4x8x8xf32>
    %124 = tpu.matmul %109, %116, %cst_52 {dimension_numbers = #tpu.dot_dimension_numbers<[2], [2], [1], [1], [0, 0, 0, 1, 1, 1], [0], [0]>} : vector<4x8x8xbf16>, vector<4x8x8xbf16>, vector<4x8x8xf32> -> vector<4x8x8xf32>
    "tpu.trace_stop"() : () -> ()
    %125 = vector.shape_cast %23 : vector<8x8xi1> to vector<1x8x8xi1>
    %cst_53 = arith.constant -1.000000e+20 : f32
    %126 = vector.shape_cast %125 : vector<1x8x8xi1> to vector<1x8x8xi1>
    %127 = vector.broadcast %126 : vector<1x8x8xi1> to vector<4x8x8xi1>
    %128 = vector.broadcast %cst_53 : f32 to vector<4x8x8xf32>
    %129 = arith.select %127, %124, %128 : vector<4x8x8xi1>, vector<4x8x8xf32>
    %cst_54 = arith.constant dense<0xFF800000> : vector<4x8xf32>
    %130 = vector.multi_reduction <maximumf>, %129, %cst_54 [2] : vector<4x8x8xf32> to vector<4x8xf32>
    %131 = vector.shape_cast %130 : vector<4x8xf32> to vector<4x8x1xf32>
    %132 = vector.broadcast %131 : vector<4x8x1xf32> to vector<4x8x8xf32>
    %133 = arith.subf %129, %132 : vector<4x8x8xf32>
    %134 = math.exp %133 : vector<4x8x8xf32>
    %cst_55 = arith.constant dense<0.000000e+00> : vector<4x8xf32>
    %135 = vector.multi_reduction <add>, %134, %cst_55 [2] : vector<4x8x8xf32> to vector<4x8xf32>
    %136 = vector.shape_cast %135 : vector<4x8xf32> to vector<4x8x1xf32>
    %137 = tpu.reciprocal %136 {approx = true} : vector<4x8x1xf32> -> vector<4x8x1xf32>
    %138 = vector.broadcast %137 : vector<4x8x1xf32> to vector<4x8x8xf32>
    %139 = arith.mulf %134, %138 : vector<4x8x8xf32>
    %140 = arith.truncf %139 : vector<4x8x8xf32> to vector<4x8x8xbf16>
    "tpu.trace_start"() <{level = 10 : i32, message = "hqk,hkd->hqd"}> : () -> ()
    %cst_56 = arith.constant dense<0.000000e+00> : vector<4x8x8xf32>
    %141 = tpu.matmul %140, %123, %cst_56 {dimension_numbers = #tpu.dot_dimension_numbers<[2], [1], [1], [2], [0, 0, 0, 1, 1, 2], [0], [0]>} : vector<4x8x8xbf16>, vector<4x8x8xbf16>, vector<4x8x8xf32> -> vector<4x8x8xf32>
    "tpu.trace_stop"() : () -> ()
    %c0_57 = arith.constant 0 : index
    %c0_58 = arith.constant 0 : index
    %c0_59 = arith.constant 0 : index
    %142 = vector.load %arg15[%c0_57, %c0_58, %c0_59] : memref<4x8x32xbf16, #tpu.memory_space<vmem>>, vector<4x8x32xbf16>
    %c0_60 = arith.constant 0 : index
    %c0_61 = arith.constant 0 : index
    %143 = vector.load %arg16[%c0_60, %c0_61] : memref<1x32xf32, #tpu.memory_space<vmem>>, vector<1x32xf32>
    %144 = arith.truncf %141 : vector<4x8x8xf32> to vector<4x8x8xbf16>
    "tpu.trace_start"() <{level = 10 : i32, message = "hqd,hde->hqe"}> : () -> ()
    %cst_62 = arith.constant dense<0.000000e+00> : vector<4x8x32xf32>
    %145 = tpu.matmul %144, %142, %cst_62 {dimension_numbers = #tpu.dot_dimension_numbers<[2], [1], [1], [2], [0, 0, 0, 1, 1, 2], [0], [0]>} : vector<4x8x8xbf16>, vector<4x8x32xbf16>, vector<4x8x32xf32> -> vector<4x8x32xf32>
    "tpu.trace_stop"() : () -> ()
    %cst_63 = arith.constant dense<0.000000e+00> : vector<8x32xf32>
    %146 = vector.multi_reduction <add>, %145, %cst_63 [0] : vector<4x8x32xf32> to vector<8x32xf32>
    %147 = vector.broadcast %143 : vector<1x32xf32> to vector<8x32xf32>
    %148 = arith.addf %146, %147 : vector<8x32xf32>
    %149 = arith.addf %148, %92 : vector<8x32xf32>
    %c0_64 = arith.constant 0 : index
    %c0_65 = arith.constant 0 : index
    %150 = vector.load %arg17[%c0_64, %c0_65] : memref<1x32xf32, #tpu.memory_space<vmem>>, vector<1x32xf32>
    %c0_66 = arith.constant 0 : index
    %c0_67 = arith.constant 0 : index
    %151 = vector.load %arg18[%c0_66, %c0_67] : memref<1x32xf32, #tpu.memory_space<vmem>>, vector<1x32xf32>
    %cst_68 = arith.constant dense<0.000000e+00> : vector<8xf32>
    %152 = vector.multi_reduction <add>, %149, %cst_68 [1] : vector<8x32xf32> to vector<8xf32>
    %153 = vector.shape_cast %152 : vector<8xf32> to vector<8x1xf32>
    %cst_69 = arith.constant 3.200000e+01 : f32
    %154 = vector.broadcast %cst_69 : f32 to vector<8x1xf32>
    %155 = arith.divf %153, %154 : vector<8x1xf32>
    %156 = vector.broadcast %155 : vector<8x1xf32> to vector<8x32xf32>
    %157 = arith.subf %149, %156 : vector<8x32xf32>
    %158 = arith.mulf %157, %157 : vector<8x32xf32>
    %cst_70 = arith.constant dense<0.000000e+00> : vector<8xf32>
    %159 = vector.multi_reduction <add>, %158, %cst_70 [1] : vector<8x32xf32> to vector<8xf32>
    %160 = vector.shape_cast %159 : vector<8xf32> to vector<8x1xf32>
    %cst_71 = arith.constant 3.200000e+01 : f32
    %161 = vector.broadcast %cst_71 : f32 to vector<8x1xf32>
    %162 = arith.divf %160, %161 : vector<8x1xf32>
    %163 = vector.broadcast %155 : vector<8x1xf32> to vector<8x32xf32>
    %164 = arith.subf %149, %163 : vector<8x32xf32>
    %cst_72 = arith.constant 9.99999974E-6 : f32
    %165 = vector.broadcast %cst_72 : f32 to vector<8x1xf32>
    %166 = arith.addf %162, %165 : vector<8x1xf32>
    %167 = math.rsqrt %166 : vector<8x1xf32>
    %168 = vector.broadcast %167 : vector<8x1xf32> to vector<8x32xf32>
    %169 = arith.mulf %164, %168 : vector<8x32xf32>
    %170 = vector.broadcast %150 : vector<1x32xf32> to vector<8x32xf32>
    %171 = arith.mulf %169, %170 : vector<8x32xf32>
    %172 = vector.broadcast %151 : vector<1x32xf32> to vector<8x32xf32>
    %173 = arith.addf %171, %172 : vector<8x32xf32>
    %174 = arith.truncf %173 : vector<8x32xf32> to vector<8x32xbf16>
    %c0_73 = arith.constant 0 : index
    %c0_74 = arith.constant 0 : index
    %175 = vector.load %arg21[%c0_73, %c0_74] : memref<32x128xbf16, #tpu.memory_space<vmem>>, vector<32x128xbf16>
    %cst_75 = arith.constant dense<0.000000e+00> : vector<8x128xf32>
    %176 = tpu.matmul %174, %175, %cst_75 {dimension_numbers = #tpu.dot_dimension_numbers<[1], [0], [0], [1], [0, 0, 1, 1], [], []>} : vector<8x32xbf16>, vector<32x128xbf16>, vector<8x128xf32> -> vector<8x128xf32>
    %c0_76 = arith.constant 0 : index
    %c0_77 = arith.constant 0 : index
    %177 = vector.load %arg22[%c0_76, %c0_77] : memref<1x128xf32, #tpu.memory_space<vmem>>, vector<1x128xf32>
    %178 = vector.broadcast %177 : vector<1x128xf32> to vector<8x128xf32>
    %179 = arith.addf %176, %178 : vector<8x128xf32>
    %cst_78 = arith.constant 0.000000e+00 : f32
    %180 = vector.broadcast %cst_78 : f32 to vector<8x128xf32>
    %181 = arith.maximumf %179, %180 : vector<8x128xf32>
    %182 = arith.truncf %181 : vector<8x128xf32> to vector<8x128xbf16>
    %c0_79 = arith.constant 0 : index
    %c0_80 = arith.constant 0 : index
    %183 = vector.load %arg23[%c0_79, %c0_80] : memref<128x32xbf16, #tpu.memory_space<vmem>>, vector<128x32xbf16>
    %cst_81 = arith.constant dense<0.000000e+00> : vector<8x32xf32>
    %184 = tpu.matmul %182, %183, %cst_81 {dimension_numbers = #tpu.dot_dimension_numbers<[1], [0], [0], [1], [0, 0, 1, 1], [], []>} : vector<8x128xbf16>, vector<128x32xbf16>, vector<8x32xf32> -> vector<8x32xf32>
    %c0_82 = arith.constant 0 : index
    %c0_83 = arith.constant 0 : index
    %185 = vector.load %arg24[%c0_82, %c0_83] : memref<1x32xf32, #tpu.memory_space<vmem>>, vector<1x32xf32>
    %186 = vector.broadcast %185 : vector<1x32xf32> to vector<8x32xf32>
    %187 = arith.addf %184, %186 : vector<8x32xf32>
    %c0_84 = arith.constant 0 : index
    %c0_85 = arith.constant 0 : index
    %188 = vector.load %arg19[%c0_84, %c0_85] : memref<1x32xf32, #tpu.memory_space<vmem>>, vector<1x32xf32>
    %c0_86 = arith.constant 0 : index
    %c0_87 = arith.constant 0 : index
    %189 = vector.load %arg20[%c0_86, %c0_87] : memref<1x32xf32, #tpu.memory_space<vmem>>, vector<1x32xf32>
    %cst_88 = arith.constant dense<0.000000e+00> : vector<8xf32>
    %190 = vector.multi_reduction <add>, %187, %cst_88 [1] : vector<8x32xf32> to vector<8xf32>
    %191 = vector.shape_cast %190 : vector<8xf32> to vector<8x1xf32>
    %cst_89 = arith.constant 3.200000e+01 : f32
    %192 = vector.broadcast %cst_89 : f32 to vector<8x1xf32>
    %193 = arith.divf %191, %192 : vector<8x1xf32>
    %194 = vector.broadcast %193 : vector<8x1xf32> to vector<8x32xf32>
    %195 = arith.subf %187, %194 : vector<8x32xf32>
    %196 = arith.mulf %195, %195 : vector<8x32xf32>
    %cst_90 = arith.constant dense<0.000000e+00> : vector<8xf32>
    %197 = vector.multi_reduction <add>, %196, %cst_90 [1] : vector<8x32xf32> to vector<8xf32>
    %198 = vector.shape_cast %197 : vector<8xf32> to vector<8x1xf32>
    %cst_91 = arith.constant 3.200000e+01 : f32
    %199 = vector.broadcast %cst_91 : f32 to vector<8x1xf32>
    %200 = arith.divf %198, %199 : vector<8x1xf32>
    %201 = vector.broadcast %193 : vector<8x1xf32> to vector<8x32xf32>
    %202 = arith.subf %187, %201 : vector<8x32xf32>
    %cst_92 = arith.constant 9.99999974E-6 : f32
    %203 = vector.broadcast %cst_92 : f32 to vector<8x1xf32>
    %204 = arith.addf %200, %203 : vector<8x1xf32>
    %205 = math.rsqrt %204 : vector<8x1xf32>
    %206 = vector.broadcast %205 : vector<8x1xf32> to vector<8x32xf32>
    %207 = arith.mulf %202, %206 : vector<8x32xf32>
    %208 = vector.broadcast %188 : vector<1x32xf32> to vector<8x32xf32>
    %209 = arith.mulf %207, %208 : vector<8x32xf32>
    %210 = vector.broadcast %189 : vector<1x32xf32> to vector<8x32xf32>
    %211 = arith.addf %209, %210 : vector<8x32xf32>
    %212 = arith.addf %211, %173 : vector<8x32xf32>
    %213 = arith.truncf %212 : vector<8x32xf32> to vector<8x32xbf16>
    %c0_93 = arith.constant 0 : index
    %c0_94 = arith.constant 0 : index
    %c0_95 = arith.constant 0 : index
    %214 = vector.load %arg25[%c0_93, %c0_94, %c0_95] : memref<1x8x32xbf16, #tpu.memory_space<vmem>>, vector<1x8x32xbf16>
    %215 = vector.shape_cast %214 : vector<1x8x32xbf16> to vector<8x32xbf16>
    %216 = vector.shape_cast %213 : vector<8x32xbf16> to vector<1x8x32xbf16>
    tpu.vector_store %arg25[%c0_93, %c0_94, %c0_95], %216 {strides = array<i32>} : memref<1x8x32xbf16, #tpu.memory_space<vmem>>, vector<1x8x32xbf16>,
    return
  }
  func.func @transform_0(%arg0: i32, %arg1: memref<2x2xi32, #tpu.memory_space<smem>>, %arg2: memref<2x2xi32, #tpu.memory_space<smem>>) -> (i32, i32, i32, i32) {
    %c0_i32 = arith.constant 0 : i32
    %c0_i32_0 = arith.constant 0 : i32
    %c0_i32_1 = arith.constant 0 : i32
    %c0_i32_2 = arith.constant 0 : i32
    return %arg0, %c0_i32, %c0_i32_0, %c0_i32_1 : i32, i32, i32, i32
  }
  func.func @transform_1(%arg0: i32, %arg1: memref<2x2xi32, #tpu.memory_space<smem>>, %arg2: memref<2x2xi32, #tpu.memory_space<smem>>) -> (i32, i32, i32) {
    %c0_i32 = arith.constant 0 : i32
    %c0_i32_0 = arith.constant 0 : i32
    %c0_i32_1 = arith.constant 0 : i32
    return %arg0, %c0_i32, %c0_i32_0 : i32, i32, i32
  }
  func.func @transform_2(%arg0: i32, %arg1: memref<2x2xi32, #tpu.memory_space<smem>>, %arg2: memref<2x2xi32, #tpu.memory_space<smem>>) -> (i32, i32, i32, i32) {
    %c0_i32 = arith.constant 0 : i32
    %c0_i32_0 = arith.constant 0 : i32
    %c0_i32_1 = arith.constant 0 : i32
    %c0_i32_2 = arith.constant 0 : i32
    return %arg0, %c0_i32, %c0_i32_0, %c0_i32_1 : i32, i32, i32, i32
  }
  func.func @transform_3(%arg0: i32, %arg1: memref<2x2xi32, #tpu.memory_space<smem>>, %arg2: memref<2x2xi32, #tpu.memory_space<smem>>) -> (i32, i32, i32, i32) {
    %c0_i32 = arith.constant 0 : i32
    %c0_i32_0 = arith.constant 0 : i32
    %c0_i32_1 = arith.constant 0 : i32
    %c0_i32_2 = arith.constant 0 : i32
    return %arg0, %c0_i32, %c0_i32_0, %c0_i32_1 : i32, i32, i32, i32
  }
  func.func @transform_4(%arg0: i32, %arg1: memref<2x2xi32, #tpu.memory_space<smem>>, %arg2: memref<2x2xi32, #tpu.memory_space<smem>>) -> (i32, i32) {
    %c0_i32 = arith.constant 0 : i32
    %c0_i32_0 = arith.constant 0 : i32
    %c0_i32_1 = arith.constant 0 : i32
    return %c0_i32, %c0_i32_0 : i32, i32
  }
  func.func @transform_5(%arg0: i32, %arg1: memref<2x2xi32, #tpu.memory_space<smem>>, %arg2: memref<2x2xi32, #tpu.memory_space<smem>>) -> (i32, i32, i32) {
    %c0_i32 = arith.constant 0 : i32
    %c0_i32_0 = arith.constant 0 : i32
    %c0_i32_1 = arith.constant 0 : i32
    %c0_i32_2 = arith.constant 0 : i32
    return %c0_i32, %c0_i32_0, %c0_i32_1 : i32, i32, i32
  }
  func.func @transform_6(%arg0: i32, %arg1: memref<2x2xi32, #tpu.memory_space<smem>>, %arg2: memref<2x2xi32, #tpu.memory_space<smem>>) -> (i32, i32) {
    %c0_i32 = arith.constant 0 : i32
    %c0_i32_0 = arith.constant 0 : i32
    %c0_i32_1 = arith.constant 0 : i32
    return %c0_i32, %c0_i32_0 : i32, i32
  }
  func.func @transform_7(%arg0: i32, %arg1: memref<2x2xi32, #tpu.memory_space<smem>>, %arg2: memref<2x2xi32, #tpu.memory_space<smem>>) -> (i32, i32) {
    %c0_i32 = arith.constant 0 : i32
    %c0_i32_0 = arith.constant 0 : i32
    %c0_i32_1 = arith.constant 0 : i32
    return %c0_i32, %c0_i32_0 : i32, i32
  }
  func.func @transform_8(%arg0: i32, %arg1: memref<2x2xi32, #tpu.memory_space<smem>>, %arg2: memref<2x2xi32, #tpu.memory_space<smem>>) -> (i32, i32) {
    %c0_i32 = arith.constant 0 : i32
    %c0_i32_0 = arith.constant 0 : i32
    %c0_i32_1 = arith.constant 0 : i32
    return %c0_i32, %c0_i32_0 : i32, i32
  }
  func.func @transform_9(%arg0: i32, %arg1: memref<2x2xi32, #tpu.memory_space<smem>>, %arg2: memref<2x2xi32, #tpu.memory_space<smem>>) -> (i32, i32) {
    %c0_i32 = arith.constant 0 : i32
    %c0_i32_0 = arith.constant 0 : i32
    %c0_i32_1 = arith.constant 0 : i32
    return %c0_i32, %c0_i32_0 : i32, i32
  }
  func.func @transform_10(%arg0: i32, %arg1: memref<2x2xi32, #tpu.memory_space<smem>>, %arg2: memref<2x2xi32, #tpu.memory_space<smem>>) -> (i32, i32) {
    %c0_i32 = arith.constant 0 : i32
    %c0_i32_0 = arith.constant 0 : i32
    %c0_i32_1 = arith.constant 0 : i32
    return %c0_i32, %c0_i32_0 : i32, i32
  }
  func.func @transform_11(%arg0: i32, %arg1: memref<2x2xi32, #tpu.memory_space<smem>>, %arg2: memref<2x2xi32, #tpu.memory_space<smem>>) -> (i32, i32) {
    %c0_i32 = arith.constant 0 : i32
    %c0_i32_0 = arith.constant 0 : i32
    %c0_i32_1 = arith.constant 0 : i32
    return %c0_i32, %c0_i32_0 : i32, i32
  }
  func.func @transform_12(%arg0: i32, %arg1: memref<2x2xi32, #tpu.memory_space<smem>>, %arg2: memref<2x2xi32, #tpu.memory_space<smem>>) -> (i32, i32, i32) {
    %c0_i32 = arith.constant 0 : i32
    %c0_i32_0 = arith.constant 0 : i32
    %c0_i32_1 = arith.constant 0 : i32
    %c0_i32_2 = arith.constant 0 : i32
    return %c0_i32, %c0_i32_0, %c0_i32_1 : i32, i32, i32
  }
  func.func @transform_13(%arg0: i32, %arg1: memref<2x2xi32, #tpu.memory_space<smem>>, %arg2: memref<2x2xi32, #tpu.memory_space<smem>>) -> (i32, i32) {
    %c0_i32 = arith.constant 0 : i32
    %c0_i32_0 = arith.constant 0 : i32
    %c0_i32_1 = arith.constant 0 : i32
    return %c0_i32, %c0_i32_0 : i32, i32
  }
  func.func @transform_14(%arg0: i32, %arg1: memref<2x2xi32, #tpu.memory_space<smem>>, %arg2: memref<2x2xi32, #tpu.memory_space<smem>>) -> (i32, i32) {
    %c0_i32 = arith.constant 0 : i32
    %c0_i32_0 = arith.constant 0 : i32
    %c0_i32_1 = arith.constant 0 : i32
    return %c0_i32, %c0_i32_0 : i32, i32
  }
  func.func @transform_15(%arg0: i32, %arg1: memref<2x2xi32, #tpu.memory_space<smem>>, %arg2: memref<2x2xi32, #tpu.memory_space<smem>>) -> (i32, i32) {
    %c0_i32 = arith.constant 0 : i32
    %c0_i32_0 = arith.constant 0 : i32
    %c0_i32_1 = arith.constant 0 : i32
    return %c0_i32, %c0_i32_0 : i32, i32
  }
  func.func @transform_16(%arg0: i32, %arg1: memref<2x2xi32, #tpu.memory_space<smem>>, %arg2: memref<2x2xi32, #tpu.memory_space<smem>>) -> (i32, i32) {
    %c0_i32 = arith.constant 0 : i32
    %c0_i32_0 = arith.constant 0 : i32
    %c0_i32_1 = arith.constant 0 : i32
    return %c0_i32, %c0_i32_0 : i32, i32
  }
  func.func @transform_17(%arg0: i32, %arg1: memref<2x2xi32, #tpu.memory_space<smem>>, %arg2: memref<2x2xi32, #tpu.memory_space<smem>>) -> (i32, i32) {
    %c0_i32 = arith.constant 0 : i32
    %c0_i32_0 = arith.constant 0 : i32
    %c0_i32_1 = arith.constant 0 : i32
    return %c0_i32, %c0_i32_0 : i32, i32
  }
  func.func @transform_18(%arg0: i32, %arg1: memref<2x2xi32, #tpu.memory_space<smem>>, %arg2: memref<2x2xi32, #tpu.memory_space<smem>>) -> (i32, i32) {
    %c0_i32 = arith.constant 0 : i32
    %c0_i32_0 = arith.constant 0 : i32
    %c0_i32_1 = arith.constant 0 : i32
    return %c0_i32, %c0_i32_0 : i32, i32
  }
  func.func @transform_19(%arg0: i32, %arg1: memref<2x2xi32, #tpu.memory_space<smem>>, %arg2: memref<2x2xi32, #tpu.memory_space<smem>>) -> (i32, i32) {
    %c0_i32 = arith.constant 0 : i32
    %c0_i32_0 = arith.constant 0 : i32
    %c0_i32_1 = arith.constant 0 : i32
    return %c0_i32, %c0_i32_0 : i32, i32
  }
  func.func @transform_20(%arg0: i32, %arg1: memref<2x2xi32, #tpu.memory_space<smem>>, %arg2: memref<2x2xi32, #tpu.memory_space<smem>>) -> (i32, i32) {
    %c0_i32 = arith.constant 0 : i32
    %c0_i32_0 = arith.constant 0 : i32
    %c0_i32_1 = arith.constant 0 : i32
    return %c0_i32, %c0_i32_0 : i32, i32
  }
  func.func @transform_21(%arg0: i32, %arg1: memref<2x2xi32, #tpu.memory_space<smem>>, %arg2: memref<2x2xi32, #tpu.memory_space<smem>>) -> (i32, i32) {
    %c0_i32 = arith.constant 0 : i32
    %c0_i32_0 = arith.constant 0 : i32
    %c0_i32_1 = arith.constant 0 : i32
    return %c0_i32, %c0_i32_0 : i32, i32
  }
  func.func @transform_22(%arg0: i32, %arg1: memref<2x2xi32, #tpu.memory_space<smem>>, %arg2: memref<2x2xi32, #tpu.memory_space<smem>>) -> (i32, i32, i32) {
    %c0_i32 = arith.constant 0 : i32
    %c0_i32_0 = arith.constant 0 : i32
    %c0_i32_1 = arith.constant 0 : i32
    return %arg0, %c0_i32, %c0_i32_0 : i32, i32, i32
  }
}

</mosaic_0001>

<llo_original>
// kernel: tpu_custom_call.1
$region0: #{tpu_custom_call.1}
  #allocation0 [shape = 'u32[]', space=smem, size = 0x4, offset = 0x4, fixed_abs, tag = 'smem constant byte address 0x4 - core index']
  #allocation1 [shape = 'u32[144,128]{1,0:T(1,128)}', space=vmem, size = 0x12000, scoped, tag = 'internal scratch']
  #allocation2 [shape = 's32[1]{0}', space=sflag, size = 0x4, scoped, tag = 'scoped memory for tpu_custom_call.1']
  #allocation3 [shape = 'u8[1024]{0}', space=smem, size = 0x400, scoped, tag = 'prefetched SMEM operand 0']
  #allocation4 [shape = 'u8[1024]{0}', space=smem, size = 0x400, scoped, tag = 'prefetched SMEM operand 1']
  %s0 = inlined_call_operand.hbm [shape: s32[2,2], index: 0, kind: input, shape index: {}]
  %s1 = inlined_call_operand.hbm [shape: s32[2,2], index: 1, kind: input, shape index: {}]
  %s2 = inlined_call_operand.vmem [shape: bf16[2,4,8,8], index: 2, kind: input, shape index: {}]
  %s3 = inlined_call_operand.hbm [shape: bf16[2,8,32], index: 3, kind: input, shape index: {}]
  %s4 = inlined_call_operand.vmem [shape: bf16[2,4,8,8], index: 4, kind: input, shape index: {}]
  %s5 = inlined_call_operand.vmem [shape: bf16[2,4,8,8], index: 5, kind: input, shape index: {}]
  %s6 = inlined_call_operand.hbm [shape: bf16[8,24], index: 6, kind: input, shape index: {}]
  %s7 = inlined_call_operand.hbm [shape: bf16[4,8,32], index: 7, kind: input, shape index: {}]
  %s8 = inlined_call_operand.hbm [shape: f32[1,32], index: 8, kind: input, shape index: {}]
  %s9 = inlined_call_operand.hbm [shape: f32[1,32], index: 9, kind: input, shape index: {}]
  %s10 = inlined_call_operand.hbm [shape: f32[1,32], index: 10, kind: input, shape index: {}]
  %s11 = inlined_call_operand.hbm [shape: bf16[8,8], index: 11, kind: input, shape index: {}]
  %s12 = inlined_call_operand.hbm [shape: bf16[8,8], index: 12, kind: input, shape index: {}]
  %s13 = inlined_call_operand.hbm [shape: bf16[8,8], index: 13, kind: input, shape index: {}]
  %s14 = inlined_call_operand.vmem [shape: bf16[4,8,32], index: 14, kind: input, shape index: {}]
  %s15 = inlined_call_operand.hbm [shape: f32[1,32], index: 15, kind: input, shape index: {}]
  %s16 = inlined_call_operand.hbm [shape: f32[1,32], index: 16, kind: input, shape index: {}]
  %s17 = inlined_call_operand.hbm [shape: f32[1,32], index: 17, kind: input, shape index: {}]
  %s18 = inlined_call_operand.vmem [shape: f32[1,32], index: 18, kind: input, shape index: {}]
  %s19 = inlined_call_operand.vmem [shape: f32[1,32], index: 19, kind: input, shape index: {}]
  %s20 = inlined_call_operand.vmem [shape: bf16[32,128], index: 20, kind: input, shape index: {}]
  %s21 = inlined_call_operand.vmem [shape: f32[1,128], index: 21, kind: input, shape index: {}]
  %s22 = inlined_call_operand.vmem [shape: bf16[128,32], index: 22, kind: input, shape index: {}]
  %s23 = inlined_call_operand.vmem [shape: f32[1,32], index: 23, kind: input, shape index: {}]
  %s24 = inlined_call_operand.hbm [shape: bf16[2,8,32], index: 24, kind: output, shape index: {}]
  %s25 = sld [smem:[#allocation0]]
  $region169: #{tpu_custom_call.1} parent=0
    _
  %s27 = ssub.s32 1, %s25
  %s28 = scalar_select 0, %s27, %s25
  %30 = dma.hbm_to_smem %s0, 32, [#allocation3], [#allocation2]
  %32 = dma.hbm_to_smem %s1, 32, [#allocation4], [#allocation2]
  %33 = dma.done [#allocation2], 64
  %34 = sfence
  $region1: #{tpu_custom_call.1} parent=0
    #allocation5 [shape = 'u8[4096]{0}', space=vmem, size = 0x1000, scoped, tag = 'input window, operand 3']
    #allocation6 [shape = 's32[2]{0}', space=sflag, size = 0x8, scoped, tag = 'scoped memory for tpu_custom_call.1']
    #allocation7 [shape = 's32[2]{0}', space=sflag, size = 0x8, scoped, tag = 'scoped memory for tpu_custom_call.1']
    #allocation8 [shape = 'u8[2048]{0}', space=vmem, size = 0x800, scoped, tag = 'input window, operand 6, single buffered']
    #allocation9 [shape = 's32[1]{0}', space=sflag, size = 0x4, scoped, tag = 'scoped memory for tpu_custom_call.1']
    #allocation10 [shape = 'u8[8192]{0}', space=vmem, size = 0x2000, scoped, tag = 'input window, operand 7, single buffered']
    #allocation11 [shape = 'u8[512]{0}', space=vmem, size = 0x400, scoped, tag = 'input window, operand 8, single buffered']
    #allocation12 [shape = 's32[1]{0}', space=sflag, size = 0x4, scoped, tag = 'scoped memory for tpu_custom_call.1']
    #allocation13 [shape = 'u8[512]{0}', space=vmem, size = 0x400, scoped, tag = 'input window, operand 9, single buffered']
    #allocation14 [shape = 'u8[512]{0}', space=vmem, size = 0x400, scoped, tag = 'input window, operand 10, single buffered']
    #allocation15 [shape = 's32[1]{0}', space=sflag, size = 0x4, scoped, tag = 'scoped memory for tpu_custom_call.1']
    #allocation16 [shape = 'u8[2048]{0}', space=vmem, size = 0x800, scoped, tag = 'input window, operand 11, single buffered']
    #allocation17 [shape = 'u8[2048]{0}', space=vmem, size = 0x800, scoped, tag = 'input window, operand 12, single buffered']
    #allocation18 [shape = 's32[1]{0}', space=sflag, size = 0x4, scoped, tag = 'scoped memory for tpu_custom_call.1']
    #allocation19 [shape = 'u8[2048]{0}', space=vmem, size = 0x800, scoped, tag = 'input window, operand 13, single buffered']
    #allocation20 [shape = 'u8[512]{0}', space=vmem, size = 0x400, scoped, tag = 'input window, operand 15, single buffered']
    #allocation21 [shape = 's32[1]{0}', space=sflag, size = 0x4, scoped, tag = 'scoped memory for tpu_custom_call.1']
    #allocation22 [shape = 'u8[512]{0}', space=vmem, size = 0x400, scoped, tag = 'input window, operand 16, single buffered']
    #allocation23 [shape = 'u8[512]{0}', space=vmem, size = 0x400, scoped, tag = 'input window, operand 17, single buffered']
    #allocation24 [shape = 's32[1]{0}', space=sflag, size = 0x4, scoped, tag = 'scoped memory for tpu_custom_call.1']
    #allocation25 [shape = 'u8[4096]{0}', space=vmem, size = 0x1000, scoped, tag = 'output window, operand 0']
    %35 = vsyncpa [#allocation6], 0
    %s36 = scalar_lea.sflag [#allocation6], 1
    %37 = vsyncpa %s36, 0
    %38 = vsyncpa [#allocation9], 0
    %39 = vsyncpa [#allocation12], 0
    %40 = vsyncpa [#allocation15], 0
    %41 = vsyncpa [#allocation18], 0
    %42 = vsyncpa [#allocation21], 0
    %43 = vsyncpa [#allocation24], 0
    %44 = vsyncpa [#allocation7], 0
    %s45 = scalar_lea.sflag [#allocation7], 1
    %46 = vsyncpa %s45, 0
    loop: start=0, step=1, limit=4
    $region2: #{tpu_custom_call.1} parent=1 // loop_pre_header
      _
    $region3: #{tpu_custom_call.1} parent=1 // loop_header
      %s48 = sphi 0, %s52
      %p49 = scmp.ge.s32.totalorder %s48, 4
      %s58 = sphi 0, %s60
      %s61 = sphi 0, %s58
      %s62 = sphi 0, %s61
      %s78 = sphi 0, %s62
      %s84 = sphi 0, %s86
      %s87 = sphi 0, %s84
      %s88 = sphi 0, %s87
      %s104 = sphi 0, %s88
      %s110 = sphi 0, %s112
      %s113 = sphi 0, %s110
      %s114 = sphi 0, %s113
      %s130 = sphi 0, %s114
      %s136 = sphi 0, %s138
      %s139 = sphi 0, %s136
      %s140 = sphi 0, %s139
      %s156 = sphi 0, %s140
      %s160 = sphi 0, %s160
      %s162 = sphi 0, %s160
      %s163 = sphi 0, %s162
      %s177 = sphi 0, %s163
      %s181 = sphi 0, %s181
      %s183 = sphi 0, %s181
      %s184 = sphi 0, %s183
      %s198 = sphi 0, %s184
      %s202 = sphi 0, %s202
      %s204 = sphi 0, %s202
      %s205 = sphi 0, %s204
      %s219 = sphi 0, %s205
      %s223 = sphi 0, %s223
      %s225 = sphi 0, %s223
      %s226 = sphi 0, %s225
      %s240 = sphi 0, %s226
      %s244 = sphi 0, %s244
      %s246 = sphi 0, %s244
      %s247 = sphi 0, %s246
      %s261 = sphi 0, %s247
      %s265 = sphi 0, %s265
      %s267 = sphi 0, %s265
      %s268 = sphi 0, %s267
      %s282 = sphi 0, %s268
      %s286 = sphi 0, %s286
      %s288 = sphi 0, %s286
      %s289 = sphi 0, %s288
      %s303 = sphi 0, %s289
      %s307 = sphi 0, %s307
      %s309 = sphi 0, %s307
      %s310 = sphi 0, %s309
      %s324 = sphi 0, %s310
      %s328 = sphi 0, %s328
      %s330 = sphi 0, %s328
      %s331 = sphi 0, %s330
      %s345 = sphi 0, %s331
      %s349 = sphi 0, %s349
      %s351 = sphi 0, %s349
      %s352 = sphi 0, %s351
      %s366 = sphi 0, %s352
      %s370 = sphi 0, %s370
      %s372 = sphi 0, %s370
      %s373 = sphi 0, %s372
      %s387 = sphi 0, %s373
      %s391 = sphi 0, %s391
      %s393 = sphi 0, %s391
      %s394 = sphi 0, %s393
      %s408 = sphi 0, %s394
      %s412 = sphi 0, %s412
      %s414 = sphi 0, %s412
      %s415 = sphi 0, %s414
      %s429 = sphi 0, %s415
      %s433 = sphi 0, %s433
      %s435 = sphi 0, %s433
      %s436 = sphi 0, %s435
      %s450 = sphi 0, %s436
      %s454 = sphi 0, %s454
      %s456 = sphi 0, %s454
      %s457 = sphi 0, %s456
      %s471 = sphi 0, %s457
      %s475 = sphi 0, %s475
      %s477 = sphi 0, %s475
      %s478 = sphi 0, %s477
      %s492 = sphi 0, %s478
      %s496 = sphi 0, %s496
      %s498 = sphi 0, %s496
      %s499 = sphi 0, %s498
      %s513 = sphi 0, %s499
      %s517 = sphi 0, %s517
      %s519 = sphi 0, %s517
      %s520 = sphi 0, %s519
      %s534 = sphi 0, %s520
      %s540 = sphi 0, %s542
      %s543 = sphi 0, %s540
      %s544 = sphi 0, %s543
      %s560 = sphi 0, %s544
    $region4: #{tpu_custom_call.1} parent=1 // loop_header_branch
      %51 = sbr.rel (%p49) target = $region8
    $region5: #{tpu_custom_call.1} parent=1 // loop_body
      %s53 = ssub.s32 %s48, 1
      %s54 = ssub.s32 %s48, 2
      %s55 = sadd.s32 %s48, 1
      %s56 = ssub.s32 %s48, %s55
      %p57 = scmp.eq.s32.totalorder %s56, 0
      %s59 = sadd.s32 %s58, 1
      %s60 = scalar_select %p57, %s58, %s59
      %p63 = pneg %p57
      %p64 = scmp.eq.s32.totalorder %s48, 1
      %p65 = por %p63, %p64
      %p66 = scmp.ne.s32.totalorder %s58, %s61
      %p67 = scmp.eq.s32.totalorder %s48, 0
      %p68 = por %p66, %p67
      %p69 = scmp.ne.s32.totalorder %s58, %s61
      %p70 = scmp.eq.s32.totalorder %s53, 1
      %p71 = por %p69, %p70
      %p72 = scmp.ne.s32.totalorder %s61, %s62
      %p73 = scmp.eq.s32.totalorder %s53, 0
      %p74 = por %p72, %p73
      %p75 = scmp.ne.s32.totalorder %s61, %s62
      %p76 = scmp.eq.s32.totalorder %s54, 1
      %p77 = por %p75, %p76
      %p79 = scmp.ne.s32.totalorder %s62, %s78
      %p80 = scmp.eq.s32.totalorder %s54, 0
      %p81 = por %p79, %p80
      %s82 = ssub.s32 %s48, %s55
      %p83 = scmp.eq.s32.totalorder %s82, 0
      %s85 = sadd.s32 %s84, 1
      %s86 = scalar_select %p83, %s84, %s85
      %p89 = pneg %p83
      %p90 = scmp.eq.s32.totalorder %s48, 1
      %p91 = por %p89, %p90
      %p92 = scmp.ne.s32.totalorder %s84, %s87
      %p93 = scmp.eq.s32.totalorder %s48, 0
      %p94 = por %p92, %p93
      %p95 = scmp.ne.s32.totalorder %s84, %s87
      %p96 = scmp.eq.s32.totalorder %s53, 1
      %p97 = por %p95, %p96
      %p98 = scmp.ne.s32.totalorder %s87, %s88
      %p99 = scmp.eq.s32.totalorder %s53, 0
      %p100 = por %p98, %p99
      %p101 = scmp.ne.s32.totalorder %s87, %s88
      %p102 = scmp.eq.s32.totalorder %s54, 1
      %p103 = por %p101, %p102
      %p105 = scmp.ne.s32.totalorder %s88, %s104
      %p106 = scmp.eq.s32.totalorder %s54, 0
      %p107 = por %p105, %p106
      %s108 = ssub.s32 %s48, %s55
      %p109 = scmp.eq.s32.totalorder %s108, 0
      %s111 = sadd.s32 %s110, 1
      %s112 = scalar_select %p109, %s110, %s111
      %p115 = pneg %p109
      %p116 = scmp.eq.s32.totalorder %s48, 1
      %p117 = por %p115, %p116
      %p118 = scmp.ne.s32.totalorder %s110, %s113
      %p119 = scmp.eq.s32.totalorder %s48, 0
      %p120 = por %p118, %p119
      %p121 = scmp.ne.s32.totalorder %s110, %s113
      %p122 = scmp.eq.s32.totalorder %s53, 1
      %p123 = por %p121, %p122
      %p124 = scmp.ne.s32.totalorder %s113, %s114
      %p125 = scmp.eq.s32.totalorder %s53, 0
      %p126 = por %p124, %p125
      %p127 = scmp.ne.s32.totalorder %s113, %s114
      %p128 = scmp.eq.s32.totalorder %s54, 1
      %p129 = por %p127, %p128
      %p131 = scmp.ne.s32.totalorder %s114, %s130
      %p132 = scmp.eq.s32.totalorder %s54, 0
      %p133 = por %p131, %p132
      %s134 = ssub.s32 %s48, %s55
      %p135 = scmp.eq.s32.totalorder %s134, 0
      %s137 = sadd.s32 %s136, 1
      %s138 = scalar_select %p135, %s136, %s137
      %p141 = pneg %p135
      %p142 = scmp.eq.s32.totalorder %s48, 1
      %p143 = por %p141, %p142
      %p144 = scmp.ne.s32.totalorder %s136, %s139
      %p145 = scmp.eq.s32.totalorder %s48, 0
      %p146 = por %p144, %p145
      %p147 = scmp.ne.s32.totalorder %s136, %s139
      %p148 = scmp.eq.s32.totalorder %s53, 1
      %p149 = por %p147, %p148
      %p150 = scmp.ne.s32.totalorder %s139, %s140
      %p151 = scmp.eq.s32.totalorder %s53, 0
      %p152 = por %p150, %p151
      %p153 = scmp.ne.s32.totalorder %s139, %s140
      %p154 = scmp.eq.s32.totalorder %s54, 1
      %p155 = por %p153, %p154
      %p157 = scmp.ne.s32.totalorder %s140, %s156
      %p158 = scmp.eq.s32.totalorder %s54, 0
      %p159 = por %p157, %p158
      %s161 = sadd.s32 %s160, 1
      %p164 = scmp.eq.s32.totalorder %s48, 1
      %p165 = scmp.ne.s32.totalorder %s160, %s162
      %p166 = scmp.eq.s32.totalorder %s48, 0
      %p167 = por %p165, %p166
      %p168 = scmp.ne.s32.totalorder %s160, %s162
      %p169 = scmp.eq.s32.totalorder %s53, 1
      %p170 = por %p168, %p169
      %p171 = scmp.ne.s32.totalorder %s162, %s163
      %p172 = scmp.eq.s32.totalorder %s53, 0
      %p173 = por %p171, %p172
      %p174 = scmp.ne.s32.totalorder %s162, %s163
      %p175 = scmp.eq.s32.totalorder %s54, 1
      %p176 = por %p174, %p175
      %p178 = scmp.ne.s32.totalorder %s163, %s177
      %p179 = scmp.eq.s32.totalorder %s54, 0
      %p180 = por %p178, %p179
      %s182 = sadd.s32 %s181, 1
      %p185 = scmp.eq.s32.totalorder %s48, 1
      %p186 = scmp.ne.s32.totalorder %s181, %s183
      %p187 = scmp.eq.s32.totalorder %s48, 0
      %p188 = por %p186, %p187
      %p189 = scmp.ne.s32.totalorder %s181, %s183
      %p190 = scmp.eq.s32.totalorder %s53, 1
      %p191 = por %p189, %p190
      %p192 = scmp.ne.s32.totalorder %s183, %s184
      %p193 = scmp.eq.s32.totalorder %s53, 0
      %p194 = por %p192, %p193
      %p195 = scmp.ne.s32.totalorder %s183, %s184
      %p196 = scmp.eq.s32.totalorder %s54, 1
      %p197 = por %p195, %p196
      %p199 = scmp.ne.s32.totalorder %s184, %s198
      %p200 = scmp.eq.s32.totalorder %s54, 0
      %p201 = por %p199, %p200
      %s203 = sadd.s32 %s202, 1
      %p206 = scmp.eq.s32.totalorder %s48, 1
      %p207 = scmp.ne.s32.totalorder %s202, %s204
      %p208 = scmp.eq.s32.totalorder %s48, 0
      %p209 = por %p207, %p208
      %p210 = scmp.ne.s32.totalorder %s202, %s204
      %p211 = scmp.eq.s32.totalorder %s53, 1
      %p212 = por %p210, %p211
      %p213 = scmp.ne.s32.totalorder %s204, %s205
      %p214 = scmp.eq.s32.totalorder %s53, 0
      %p215 = por %p213, %p214
      %p216 = scmp.ne.s32.totalorder %s204, %s205
      %p217 = scmp.eq.s32.totalorder %s54, 1
      %p218 = por %p216, %p217
      %p220 = scmp.ne.s32.totalorder %s205, %s219
      %p221 = scmp.eq.s32.totalorder %s54, 0
      %p222 = por %p220, %p221
      %s224 = sadd.s32 %s223, 1
      %p227 = scmp.eq.s32.totalorder %s48, 1
      %p228 = scmp.ne.s32.totalorder %s223, %s225
      %p229 = scmp.eq.s32.totalorder %s48, 0
      %p230 = por %p228, %p229
      %p231 = scmp.ne.s32.totalorder %s223, %s225
      %p232 = scmp.eq.s32.totalorder %s53, 1
      %p233 = por %p231, %p232
      %p234 = scmp.ne.s32.totalorder %s225, %s226
      %p235 = scmp.eq.s32.totalorder %s53, 0
      %p236 = por %p234, %p235
      %p237 = scmp.ne.s32.totalorder %s225, %s226
      %p238 = scmp.eq.s32.totalorder %s54, 1
      %p239 = por %p237, %p238
      %p241 = scmp.ne.s32.totalorder %s226, %s240
      %p242 = scmp.eq.s32.totalorder %s54, 0
      %p243 = por %p241, %p242
      %s245 = sadd.s32 %s244, 1
      %p248 = scmp.eq.s32.totalorder %s48, 1
      %p249 = scmp.ne.s32.totalorder %s244, %s246
      %p250 = scmp.eq.s32.totalorder %s48, 0
      %p251 = por %p249, %p250
      %p252 = scmp.ne.s32.totalorder %s244, %s246
      %p253 = scmp.eq.s32.totalorder %s53, 1
      %p254 = por %p252, %p253
      %p255 = scmp.ne.s32.totalorder %s246, %s247
      %p256 = scmp.eq.s32.totalorder %s53, 0
      %p257 = por %p255, %p256
      %p258 = scmp.ne.s32.totalorder %s246, %s247
      %p259 = scmp.eq.s32.totalorder %s54, 1
      %p260 = por %p258, %p259
      %p262 = scmp.ne.s32.totalorder %s247, %s261
      %p263 = scmp.eq.s32.totalorder %s54, 0
      %p264 = por %p262, %p263
      %s266 = sadd.s32 %s265, 1
      %p269 = scmp.eq.s32.totalorder %s48, 1
      %p270 = scmp.ne.s32.totalorder %s265, %s267
      %p271 = scmp.eq.s32.totalorder %s48, 0
      %p272 = por %p270, %p271
      %p273 = scmp.ne.s32.totalorder %s265, %s267
      %p274 = scmp.eq.s32.totalorder %s53, 1
      %p275 = por %p273, %p274
      %p276 = scmp.ne.s32.totalorder %s267, %s268
      %p277 = scmp.eq.s32.totalorder %s53, 0
      %p278 = por %p276, %p277
      %p279 = scmp.ne.s32.totalorder %s267, %s268
      %p280 = scmp.eq.s32.totalorder %s54, 1
      %p281 = por %p279, %p280
      %p283 = scmp.ne.s32.totalorder %s268, %s282
      %p284 = scmp.eq.s32.totalorder %s54, 0
      %p285 = por %p283, %p284
      %s287 = sadd.s32 %s286, 1
      %p290 = scmp.eq.s32.totalorder %s48, 1
      %p291 = scmp.ne.s32.totalorder %s286, %s288
      %p292 = scmp.eq.s32.totalorder %s48, 0
      %p293 = por %p291, %p292
      %p294 = scmp.ne.s32.totalorder %s286, %s288
      %p295 = scmp.eq.s32.totalorder %s53, 1
      %p296 = por %p294, %p295
      %p297 = scmp.ne.s32.totalorder %s288, %s289
      %p298 = scmp.eq.s32.totalorder %s53, 0
      %p299 = por %p297, %p298
      %p300 = scmp.ne.s32.totalorder %s288, %s289
      %p301 = scmp.eq.s32.totalorder %s54, 1
      %p302 = por %p300, %p301
      %p304 = scmp.ne.s32.totalorder %s289, %s303
      %p305 = scmp.eq.s32.totalorder %s54, 0
      %p306 = por %p304, %p305
      %s308 = sadd.s32 %s307, 1
      %p311 = scmp.eq.s32.totalorder %s48, 1
      %p312 = scmp.ne.s32.totalorder %s307, %s309
      %p313 = scmp.eq.s32.totalorder %s48, 0
      %p314 = por %p312, %p313
      %p315 = scmp.ne.s32.totalorder %s307, %s309
      %p316 = scmp.eq.s32.totalorder %s53, 1
      %p317 = por %p315, %p316
      %p318 = scmp.ne.s32.totalorder %s309, %s310
      %p319 = scmp.eq.s32.totalorder %s53, 0
      %p320 = por %p318, %p319
      %p321 = scmp.ne.s32.totalorder %s309, %s310
      %p322 = scmp.eq.s32.totalorder %s54, 1
      %p323 = por %p321, %p322
      %p325 = scmp.ne.s32.totalorder %s310, %s324
      %p326 = scmp.eq.s32.totalorder %s54, 0
      %p327 = por %p325, %p326
      %s329 = sadd.s32 %s328, 1
      %p332 = scmp.eq.s32.totalorder %s48, 1
      %p333 = scmp.ne.s32.totalorder %s328, %s330
      %p334 = scmp.eq.s32.totalorder %s48, 0
      %p335 = por %p333, %p334
      %p336 = scmp.ne.s32.totalorder %s328, %s330
      %p337 = scmp.eq.s32.totalorder %s53, 1
      %p338 = por %p336, %p337
      %p339 = scmp.ne.s32.totalorder %s330, %s331
      %p340 = scmp.eq.s32.totalorder %s53, 0
      %p341 = por %p339, %p340
      %p342 = scmp.ne.s32.totalorder %s330, %s331
      %p343 = scmp.eq.s32.totalorder %s54, 1
      %p344 = por %p342, %p343
      %p346 = scmp.ne.s32.totalorder %s331, %s345
      %p347 = scmp.eq.s32.totalorder %s54, 0
      %p348 = por %p346, %p347
      %s350 = sadd.s32 %s349, 1
      %p353 = scmp.eq.s32.totalorder %s48, 1
      %p354 = scmp.ne.s32.totalorder %s349, %s351
      %p355 = scmp.eq.s32.totalorder %s48, 0
      %p356 = por %p354, %p355
      %p357 = scmp.ne.s32.totalorder %s349, %s351
      %p358 = scmp.eq.s32.totalorder %s53, 1
      %p359 = por %p357, %p358
      %p360 = scmp.ne.s32.totalorder %s351, %s352
      %p361 = scmp.eq.s32.totalorder %s53, 0
      %p362 = por %p360, %p361
      %p363 = scmp.ne.s32.totalorder %s351, %s352
      %p364 = scmp.eq.s32.totalorder %s54, 1
      %p365 = por %p363, %p364
      %p367 = scmp.ne.s32.totalorder %s352, %s366
      %p368 = scmp.eq.s32.totalorder %s54, 0
      %p369 = por %p367, %p368
      %s371 = sadd.s32 %s370, 1
      %p374 = scmp.eq.s32.totalorder %s48, 1
      %p375 = scmp.ne.s32.totalorder %s370, %s372
      %p376 = scmp.eq.s32.totalorder %s48, 0
      %p377 = por %p375, %p376
      %p378 = scmp.ne.s32.totalorder %s370, %s372
      %p379 = scmp.eq.s32.totalorder %s53, 1
      %p380 = por %p378, %p379
      %p381 = scmp.ne.s32.totalorder %s372, %s373
      %p382 = scmp.eq.s32.totalorder %s53, 0
      %p383 = por %p381, %p382
      %p384 = scmp.ne.s32.totalorder %s372, %s373
      %p385 = scmp.eq.s32.totalorder %s54, 1
      %p386 = por %p384, %p385
      %p388 = scmp.ne.s32.totalorder %s373, %s387
      %p389 = scmp.eq.s32.totalorder %s54, 0
      %p390 = por %p388, %p389
      %s392 = sadd.s32 %s391, 1
      %p395 = scmp.eq.s32.totalorder %s48, 1
      %p396 = scmp.ne.s32.totalorder %s391, %s393
      %p397 = scmp.eq.s32.totalorder %s48, 0
      %p398 = por %p396, %p397
      %p399 = scmp.ne.s32.totalorder %s391, %s393
      %p400 = scmp.eq.s32.totalorder %s53, 1
      %p401 = por %p399, %p400
      %p402 = scmp.ne.s32.totalorder %s393, %s394
      %p403 = scmp.eq.s32.totalorder %s53, 0
      %p404 = por %p402, %p403
      %p405 = scmp.ne.s32.totalorder %s393, %s394
      %p406 = scmp.eq.s32.totalorder %s54, 1
      %p407 = por %p405, %p406
      %p409 = scmp.ne.s32.totalorder %s394, %s408
      %p410 = scmp.eq.s32.totalorder %s54, 0
      %p411 = por %p409, %p410
      %s413 = sadd.s32 %s412, 1
      %p416 = scmp.eq.s32.totalorder %s48, 1
      %p417 = scmp.ne.s32.totalorder %s412, %s414
      %p418 = scmp.eq.s32.totalorder %s48, 0
      %p419 = por %p417, %p418
      %p420 = scmp.ne.s32.totalorder %s412, %s414
      %p421 = scmp.eq.s32.totalorder %s53, 1
      %p422 = por %p420, %p421
      %p423 = scmp.ne.s32.totalorder %s414, %s415
      %p424 = scmp.eq.s32.totalorder %s53, 0
      %p425 = por %p423, %p424
      %p426 = scmp.ne.s32.totalorder %s414, %s415
      %p427 = scmp.eq.s32.totalorder %s54, 1
      %p428 = por %p426, %p427
      %p430 = scmp.ne.s32.totalorder %s415, %s429
      %p431 = scmp.eq.s32.totalorder %s54, 0
      %p432 = por %p430, %p431
      %s434 = sadd.s32 %s433, 1
      %p437 = scmp.eq.s32.totalorder %s48, 1
      %p438 = scmp.ne.s32.totalorder %s433, %s435
      %p439 = scmp.eq.s32.totalorder %s48, 0
      %p440 = por %p438, %p439
      %p441 = scmp.ne.s32.totalorder %s433, %s435
      %p442 = scmp.eq.s32.totalorder %s53, 1
      %p443 = por %p441, %p442
      %p444 = scmp.ne.s32.totalorder %s435, %s436
      %p445 = scmp.eq.s32.totalorder %s53, 0
      %p446 = por %p444, %p445
      %p447 = scmp.ne.s32.totalorder %s435, %s436
      %p448 = scmp.eq.s32.totalorder %s54, 1
      %p449 = por %p447, %p448
      %p451 = scmp.ne.s32.totalorder %s436, %s450
      %p452 = scmp.eq.s32.totalorder %s54, 0
      %p453 = por %p451, %p452
      %s455 = sadd.s32 %s454, 1
      %p458 = scmp.eq.s32.totalorder %s48, 1
      %p459 = scmp.ne.s32.totalorder %s454, %s456
      %p460 = scmp.eq.s32.totalorder %s48, 0
      %p461 = por %p459, %p460
      %p462 = scmp.ne.s32.totalorder %s454, %s456
      %p463 = scmp.eq.s32.totalorder %s53, 1
      %p464 = por %p462, %p463
      %p465 = scmp.ne.s32.totalorder %s456, %s457
      %p466 = scmp.eq.s32.totalorder %s53, 0
      %p467 = por %p465, %p466
      %p468 = scmp.ne.s32.totalorder %s456, %s457
      %p469 = scmp.eq.s32.totalorder %s54, 1
      %p470 = por %p468, %p469
      %p472 = scmp.ne.s32.totalorder %s457, %s471
      %p473 = scmp.eq.s32.totalorder %s54, 0
      %p474 = por %p472, %p473
      %s476 = sadd.s32 %s475, 1
      %p479 = scmp.eq.s32.totalorder %s48, 1
      %p480 = scmp.ne.s32.totalorder %s475, %s477
      %p481 = scmp.eq.s32.totalorder %s48, 0
      %p482 = por %p480, %p481
      %p483 = scmp.ne.s32.totalorder %s475, %s477
      %p484 = scmp.eq.s32.totalorder %s53, 1
      %p485 = por %p483, %p484
      %p486 = scmp.ne.s32.totalorder %s477, %s478
      %p487 = scmp.eq.s32.totalorder %s53, 0
      %p488 = por %p486, %p487
      %p489 = scmp.ne.s32.totalorder %s477, %s478
      %p490 = scmp.eq.s32.totalorder %s54, 1
      %p491 = por %p489, %p490
      %p493 = scmp.ne.s32.totalorder %s478, %s492
      %p494 = scmp.eq.s32.totalorder %s54, 0
      %p495 = por %p493, %p494
      %s497 = sadd.s32 %s496, 1
      %p500 = scmp.eq.s32.totalorder %s48, 1
      %p501 = scmp.ne.s32.totalorder %s496, %s498
      %p502 = scmp.eq.s32.totalorder %s48, 0
      %p503 = por %p501, %p502
      %p504 = scmp.ne.s32.totalorder %s496, %s498
      %p505 = scmp.eq.s32.totalorder %s53, 1
      %p506 = por %p504, %p505
      %p507 = scmp.ne.s32.totalorder %s498, %s499
      %p508 = scmp.eq.s32.totalorder %s53, 0
      %p509 = por %p507, %p508
      %p510 = scmp.ne.s32.totalorder %s498, %s499
      %p511 = scmp.eq.s32.totalorder %s54, 1
      %p512 = por %p510, %p511
      %p514 = scmp.ne.s32.totalorder %s499, %s513
      %p515 = scmp.eq.s32.totalorder %s54, 0
      %p516 = por %p514, %p515
      %s518 = sadd.s32 %s517, 1
      %p521 = scmp.eq.s32.totalorder %s48, 1
      %p522 = scmp.ne.s32.totalorder %s517, %s519
      %p523 = scmp.eq.s32.totalorder %s48, 0
      %p524 = por %p522, %p523
      %p525 = scmp.ne.s32.totalorder %s517, %s519
      %p526 = scmp.eq.s32.totalorder %s53, 1
      %p527 = por %p525, %p526
      %p528 = scmp.ne.s32.totalorder %s519, %s520
      %p529 = scmp.eq.s32.totalorder %s53, 0
      %p530 = por %p528, %p529
      %p531 = scmp.ne.s32.totalorder %s519, %s520
      %p532 = scmp.eq.s32.totalorder %s54, 1
      %p533 = por %p531, %p532
      %p535 = scmp.ne.s32.totalorder %s520, %s534
      %p536 = scmp.eq.s32.totalorder %s54, 0
      %p537 = por %p535, %p536
      %s538 = ssub.s32 %s48, %s55
      %p539 = scmp.eq.s32.totalorder %s538, 0
      %s541 = sadd.s32 %s540, 1
      %s542 = scalar_select %p539, %s540, %s541
      %p545 = pneg %p539
      %p546 = scmp.eq.s32.totalorder %s48, 1
      %p547 = por %p545, %p546
      %p548 = scmp.ne.s32.totalorder %s540, %s543
      %p549 = scmp.eq.s32.totalorder %s48, 0
      %p550 = por %p548, %p549
      %p551 = scmp.ne.s32.totalorder %s540, %s543
      %p552 = scmp.eq.s32.totalorder %s53, 1
      %p553 = por %p551, %p552
      %p554 = scmp.ne.s32.totalorder %s543, %s544
      %p555 = scmp.eq.s32.totalorder %s53, 0
      %p556 = por %p554, %p555
      %p557 = scmp.ne.s32.totalorder %s543, %s544
      %p558 = scmp.eq.s32.totalorder %s54, 1
      %p559 = por %p557, %p558
      %p561 = scmp.ne.s32.totalorder %s544, %s560
      %p562 = scmp.eq.s32.totalorder %s54, 0
      %p563 = por %p561, %p562
      %p564 = scmp.le.s32.totalorder 1, %s48
      %p565 = scmp.lt.s32.totalorder %s48, 3
      %p566 = pnand %p564, %p565
      %p567 = pneg %p566
      // Predicated region
      $region9: #{tpu_custom_call.1} parent=5 // pred_check
        _
      $region10: #{tpu_custom_call.1} parent=5 // pred_check_branch
        %569 = sbr.rel (%p566) target = $region12
      $region11: #{tpu_custom_call.1} parent=5 // pred_region
        %s570 = ssub.s32 %s48, 1
        // Predicated region
        $region13: #{tpu_custom_call.1} parent=11 // pred_check
          %p571 = pneg %p173
        $region14: #{tpu_custom_call.1} parent=11 // pred_check_branch
          %573 = sbr.rel (%p571) target = $region16
        $region15: #{tpu_custom_call.1} parent=11 // pred_region
          %s575 = ssub.s32 64, 64
          %576 = vsyncadd [#allocation9], %s575
          %s578 = sshll.u32 [#allocation8], 4
          %s579 = int_to_ptr.vmem [resolvable:$true] %s578
          %581 = dma.hbm_to_vmem [thread:$0]  %s6, 64, %s579, [#allocation9]
        $region16: #{tpu_custom_call.1} parent=11 // pred_fallthru
          _
        // Predicated region
        $region17: #{tpu_custom_call.1} parent=11 // pred_check
          %p582 = pneg %p194
        $region18: #{tpu_custom_call.1} parent=11 // pred_check_branch
          %584 = sbr.rel (%p582) target = $region20
        $region19: #{tpu_custom_call.1} parent=11 // pred_region
          %s586 = ssub.s32 256, 256
          %587 = vsyncadd [#allocation9], %s586
          %s588 = sshll.u32 [#allocation10], 4
          %s589 = int_to_ptr.vmem [resolvable:$true] %s588
          %594 = dma.hbm_to_vmem [thread:$0]  %s7, 256, %s589, [#allocation9], 64, 64, 4
        $region20: #{tpu_custom_call.1} parent=11 // pred_fallthru
          _
        // Predicated region
        $region21: #{tpu_custom_call.1} parent=11 // pred_check
          %p595 = pneg %p215
        $region22: #{tpu_custom_call.1} parent=11 // pred_check_branch
          %597 = sbr.rel (%p595) target = $region24
        $region23: #{tpu_custom_call.1} parent=11 // pred_region
          %s599 = ssub.s32 16, 16
          %600 = vsyncadd [#allocation12], %s599
          %s602 = sshll.u32 [#allocation11], 4
          %s603 = int_to_ptr.vmem [resolvable:$true] %s602
          %605 = dma.hbm_to_vmem [thread:$0]  %s8, 16, %s603, [#allocation12]
        $region24: #{tpu_custom_call.1} parent=11 // pred_fallthru
          _
        // Predicated region
        $region25: #{tpu_custom_call.1} parent=11 // pred_check
          %p606 = pneg %p236
        $region26: #{tpu_custom_call.1} parent=11 // pred_check_branch
          %608 = sbr.rel (%p606) target = $region28
        $region27: #{tpu_custom_call.1} parent=11 // pred_region
          %s610 = ssub.s32 16, 16
          %611 = vsyncadd [#allocation12], %s610
          %s613 = sshll.u32 [#allocation13], 4
          %s614 = int_to_ptr.vmem [resolvable:$true] %s613
          %616 = dma.hbm_to_vmem [thread:$0]  %s9, 16, %s614, [#allocation12]
        $region28: #{tpu_custom_call.1} parent=11 // pred_fallthru
          _
        // Predicated region
        $region29: #{tpu_custom_call.1} parent=11 // pred_check
          %p617 = pneg %p257
        $region30: #{tpu_custom_call.1} parent=11 // pred_check_branch
          %619 = sbr.rel (%p617) target = $region32
        $region31: #{tpu_custom_call.1} parent=11 // pred_region
          %s621 = ssub.s32 16, 16
          %622 = vsyncadd [#allocation15], %s621
          %s624 = sshll.u32 [#allocation14], 4
          %s625 = int_to_ptr.vmem [resolvable:$true] %s624
          %627 = dma.hbm_to_vmem [thread:$0]  %s10, 16, %s625, [#allocation15]
        $region32: #{tpu_custom_call.1} parent=11 // pred_fallthru
          _
        // Predicated region
        $region33: #{tpu_custom_call.1} parent=11 // pred_check
          %p628 = pneg %p278
        $region34: #{tpu_custom_call.1} parent=11 // pred_check_branch
          %630 = sbr.rel (%p628) target = $region36
        $region35: #{tpu_custom_call.1} parent=11 // pred_region
          %s632 = ssub.s32 64, 64
          %633 = vsyncadd [#allocation15], %s632
          %s635 = sshll.u32 [#allocation16], 4
          %s636 = int_to_ptr.vmem [resolvable:$true] %s635
          %638 = dma.hbm_to_vmem [thread:$0]  %s11, 64, %s636, [#allocation15]
        $region36: #{tpu_custom_call.1} parent=11 // pred_fallthru
          _
        // Predicated region
        $region37: #{tpu_custom_call.1} parent=11 // pred_check
          %p639 = pneg %p299
        $region38: #{tpu_custom_call.1} parent=11 // pred_check_branch
          %641 = sbr.rel (%p639) target = $region40
        $region39: #{tpu_custom_call.1} parent=11 // pred_region
          %s643 = ssub.s32 64, 64
          %644 = vsyncadd [#allocation18], %s643
          %s646 = sshll.u32 [#allocation17], 4
          %s647 = int_to_ptr.vmem [resolvable:$true] %s646
          %649 = dma.hbm_to_vmem [thread:$0]  %s12, 64, %s647, [#allocation18]
        $region40: #{tpu_custom_call.1} parent=11 // pred_fallthru
          _
        // Predicated region
        $region41: #{tpu_custom_call.1} parent=11 // pred_check
          %p650 = pneg %p320
        $region42: #{tpu_custom_call.1} parent=11 // pred_check_branch
          %652 = sbr.rel (%p650) target = $region44
        $region43: #{tpu_custom_call.1} parent=11 // pred_region
          %s654 = ssub.s32 64, 64
          %655 = vsyncadd [#allocation18], %s654
          %s657 = sshll.u32 [#allocation19], 4
          %s658 = int_to_ptr.vmem [resolvable:$true] %s657
          %660 = dma.hbm_to_vmem [thread:$0]  %s13, 64, %s658, [#allocation18]
        $region44: #{tpu_custom_call.1} parent=11 // pred_fallthru
          _
        // Predicated region
        $region45: #{tpu_custom_call.1} parent=11 // pred_check
          %p661 = pneg %p341
        $region46: #{tpu_custom_call.1} parent=11 // pred_check_branch
          %663 = sbr.rel (%p661) target = $region48
        $region47: #{tpu_custom_call.1} parent=11 // pred_region
          _
        $region48: #{tpu_custom_call.1} parent=11 // pred_fallthru
          _
        // Predicated region
        $region49: #{tpu_custom_call.1} parent=11 // pred_check
          %p664 = pneg %p362
        $region50: #{tpu_custom_call.1} parent=11 // pred_check_branch
          %666 = sbr.rel (%p664) target = $region52
        $region51: #{tpu_custom_call.1} parent=11 // pred_region
          %s668 = ssub.s32 16, 16
          %669 = vsyncadd [#allocation21], %s668
          %s671 = sshll.u32 [#allocation20], 4
          %s672 = int_to_ptr.vmem [resolvable:$true] %s671
          %674 = dma.hbm_to_vmem [thread:$0]  %s15, 16, %s672, [#allocation21]
        $region52: #{tpu_custom_call.1} parent=11 // pred_fallthru
          _
        // Predicated region
        $region53: #{tpu_custom_call.1} parent=11 // pred_check
          %p675 = pneg %p383
        $region54: #{tpu_custom_call.1} parent=11 // pred_check_branch
          %677 = sbr.rel (%p675) target = $region56
        $region55: #{tpu_custom_call.1} parent=11 // pred_region
          %s679 = ssub.s32 16, 16
          %680 = vsyncadd [#allocation21], %s679
          %s682 = sshll.u32 [#allocation22], 4
          %s683 = int_to_ptr.vmem [resolvable:$true] %s682
          %685 = dma.hbm_to_vmem [thread:$0]  %s16, 16, %s683, [#allocation21]
        $region56: #{tpu_custom_call.1} parent=11 // pred_fallthru
          _
        // Predicated region
        $region57: #{tpu_custom_call.1} parent=11 // pred_check
          %p686 = pneg %p404
        $region58: #{tpu_custom_call.1} parent=11 // pred_check_branch
          %688 = sbr.rel (%p686) target = $region60
        $region59: #{tpu_custom_call.1} parent=11 // pred_region
          %s690 = ssub.s32 16, 16
          %691 = vsyncadd [#allocation24], %s690
          %s693 = sshll.u32 [#allocation23], 4
          %s694 = int_to_ptr.vmem [resolvable:$true] %s693
          %696 = dma.hbm_to_vmem [thread:$0]  %s17, 16, %s694, [#allocation24]
        $region60: #{tpu_custom_call.1} parent=11 // pred_fallthru
          _
        // Predicated region
        $region61: #{tpu_custom_call.1} parent=11 // pred_check
          %p697 = pneg %p425
        $region62: #{tpu_custom_call.1} parent=11 // pred_check_branch
          %699 = sbr.rel (%p697) target = $region64
        $region63: #{tpu_custom_call.1} parent=11 // pred_region
          _
        $region64: #{tpu_custom_call.1} parent=11 // pred_fallthru
          _
        // Predicated region
        $region65: #{tpu_custom_call.1} parent=11 // pred_check
          %p700 = pneg %p446
        $region66: #{tpu_custom_call.1} parent=11 // pred_check_branch
          %702 = sbr.rel (%p700) target = $region68
        $region67: #{tpu_custom_call.1} parent=11 // pred_region
          _
        $region68: #{tpu_custom_call.1} parent=11 // pred_fallthru
          _
        // Predicated region
        $region69: #{tpu_custom_call.1} parent=11 // pred_check
          %p703 = pneg %p467
        $region70: #{tpu_custom_call.1} parent=11 // pred_check_branch
          %705 = sbr.rel (%p703) target = $region72
        $region71: #{tpu_custom_call.1} parent=11 // pred_region
          _
        $region72: #{tpu_custom_call.1} parent=11 // pred_fallthru
          _
        // Predicated region
        $region73: #{tpu_custom_call.1} parent=11 // pred_check
          %p706 = pneg %p488
        $region74: #{tpu_custom_call.1} parent=11 // pred_check_branch
          %708 = sbr.rel (%p706) target = $region76
        $region75: #{tpu_custom_call.1} parent=11 // pred_region
          _
        $region76: #{tpu_custom_call.1} parent=11 // pred_fallthru
          _
        // Predicated region
        $region77: #{tpu_custom_call.1} parent=11 // pred_check
          %p709 = pneg %p509
        $region78: #{tpu_custom_call.1} parent=11 // pred_check_branch
          %711 = sbr.rel (%p709) target = $region80
        $region79: #{tpu_custom_call.1} parent=11 // pred_region
          _
        $region80: #{tpu_custom_call.1} parent=11 // pred_fallthru
          _
        // Predicated region
        $region81: #{tpu_custom_call.1} parent=11 // pred_check
          %p712 = pneg %p530
        $region82: #{tpu_custom_call.1} parent=11 // pred_check_branch
          %714 = sbr.rel (%p712) target = $region84
        $region83: #{tpu_custom_call.1} parent=11 // pred_region
          _
        $region84: #{tpu_custom_call.1} parent=11 // pred_fallthru
          _
      $region12: #{tpu_custom_call.1} parent=5 // pred_fallthru
        _
      %p715 = scmp.lt.s32.totalorder %s48, 2
      // Predicated region
      $region85: #{tpu_custom_call.1} parent=5 // pred_check
        %p716 = pneg %p715
      $region86: #{tpu_custom_call.1} parent=5 // pred_check_branch
        %718 = sbr.rel (%p716) target = $region88
      $region87: #{tpu_custom_call.1} parent=5 // pred_region
        // Predicated region
        $region89: #{tpu_custom_call.1} parent=87 // pred_check
          %p719 = pneg %p68
        $region90: #{tpu_custom_call.1} parent=87 // pred_check_branch
          %721 = sbr.rel (%p719) target = $region92
        $region91: #{tpu_custom_call.1} parent=87 // pred_region
          %p722 = scmp.lt.s32.totalorder %s48, 1
          %s723 = scalar_select %p722, %s48, 1
          %s724 = smul.addr %s723, 4
          %s725 = smul.addr %s724, 4
          %s726 = scalar_lea.vmem %s2, %s725
        $region92: #{tpu_custom_call.1} parent=87 // pred_fallthru
          _
        // Predicated region
        $region93: #{tpu_custom_call.1} parent=87 // pred_check
          %p727 = pneg %p94
        $region94: #{tpu_custom_call.1} parent=87 // pred_check_branch
          %729 = sbr.rel (%p727) target = $region96
        $region95: #{tpu_custom_call.1} parent=87 // pred_region
          %s730 = sand.u32 %s84, 1
          %s731 = scalar_lea.sflag [#allocation6], %s730
          %s732 = sand.u32 %s84, 1
          %s733 = smul.addr %s732, 4
          %s734 = scalar_lea.vmem [#allocation5], %s733
          %s736 = ssub.s32 64, 64
          %737 = vsyncadd %s731, %s736
          %s738 = smul.addr %s48, 64
          %s739 = scalar_lea.hbm %s3, %s738
          %s741 = sshll.u32 %s734, 4
          %s742 = int_to_ptr.vmem [resolvable:$true] %s741
          %744 = dma.hbm_to_vmem [thread:$0]  %s739, 64, %s742, %s731
        $region96: #{tpu_custom_call.1} parent=87 // pred_fallthru
          _
        // Predicated region
        $region97: #{tpu_custom_call.1} parent=87 // pred_check
          %p745 = pneg %p120
        $region98: #{tpu_custom_call.1} parent=87 // pred_check_branch
          %747 = sbr.rel (%p745) target = $region100
        $region99: #{tpu_custom_call.1} parent=87 // pred_region
          %p748 = scmp.lt.s32.totalorder %s48, 1
          %s749 = scalar_select %p748, %s48, 1
          %s750 = smul.addr %s749, 4
          %s751 = smul.addr %s750, 4
          %s752 = scalar_lea.vmem %s4, %s751
        $region100: #{tpu_custom_call.1} parent=87 // pred_fallthru
          _
        // Predicated region
        $region101: #{tpu_custom_call.1} parent=87 // pred_check
          %p753 = pneg %p146
        $region102: #{tpu_custom_call.1} parent=87 // pred_check_branch
          %755 = sbr.rel (%p753) target = $region104
        $region103: #{tpu_custom_call.1} parent=87 // pred_region
          %p756 = scmp.lt.s32.totalorder %s48, 1
          %s757 = scalar_select %p756, %s48, 1
          %s758 = smul.addr %s757, 4
          %s759 = smul.addr %s758, 4
          %s760 = scalar_lea.vmem %s5, %s759
        $region104: #{tpu_custom_call.1} parent=87 // pred_fallthru
          _
      $region88: #{tpu_custom_call.1} parent=5 // pred_fallthru
        _
      %p761 = scmp.le.s32.totalorder 1, %s48
      %p762 = scmp.lt.s32.totalorder %s48, 3
      %p763 = pnand %p761, %p762
      %p764 = pneg %p763
      // Predicated region
      $region105: #{tpu_custom_call.1} parent=5 // pred_check
        _
      $region106: #{tpu_custom_call.1} parent=5 // pred_check_branch
        %766 = sbr.rel (%p763) target = $region108
      $region107: #{tpu_custom_call.1} parent=5 // pred_region
        %s767 = ssub.s32 %s48, 1
        %s768 = sand.u32 %s87, 1
        %s769 = scalar_lea.sflag [#allocation6], %s768
        %s770 = sand.u32 %s87, 1
        %s771 = smul.addr %s770, 4
        %s772 = scalar_lea.vmem [#allocation5], %s771
        // Predicated region
        $region109: #{tpu_custom_call.1} parent=107 // pred_check
          %p773 = pneg %p100
        $region110: #{tpu_custom_call.1} parent=107 // pred_check_branch
          %775 = sbr.rel (%p773) target = $region112
        $region111: #{tpu_custom_call.1} parent=107 // pred_region
          %776 = dma.done %s769, 64
        $region112: #{tpu_custom_call.1} parent=107 // pred_fallthru
          _
        // Predicated region
        $region113: #{tpu_custom_call.1} parent=107 // pred_check
          %p777 = pneg %p173
        $region114: #{tpu_custom_call.1} parent=107 // pred_check_branch
          %779 = sbr.rel (%p777) target = $region116
        $region115: #{tpu_custom_call.1} parent=107 // pred_region
          %780 = dma.done [#allocation9], 64
        $region116: #{tpu_custom_call.1} parent=107 // pred_fallthru
          _
        // Predicated region
        $region117: #{tpu_custom_call.1} parent=107 // pred_check
          %p781 = pneg %p194
        $region118: #{tpu_custom_call.1} parent=107 // pred_check_branch
          %783 = sbr.rel (%p781) target = $region120
        $region119: #{tpu_custom_call.1} parent=107 // pred_region
          %784 = dma.done [#allocation9], 256
        $region120: #{tpu_custom_call.1} parent=107 // pred_fallthru
          _
        // Predicated region
        $region121: #{tpu_custom_call.1} parent=107 // pred_check
          %p785 = pneg %p215
        $region122: #{tpu_custom_call.1} parent=107 // pred_check_branch
          %787 = sbr.rel (%p785) target = $region124
        $region123: #{tpu_custom_call.1} parent=107 // pred_region
          %788 = dma.done [#allocation12], 16
        $region124: #{tpu_custom_call.1} parent=107 // pred_fallthru
          _
        // Predicated region
        $region125: #{tpu_custom_call.1} parent=107 // pred_check
          %p789 = pneg %p236
        $region126: #{tpu_custom_call.1} parent=107 // pred_check_branch
          %791 = sbr.rel (%p789) target = $region128
        $region127: #{tpu_custom_call.1} parent=107 // pred_region
          %792 = dma.done [#allocation12], 16
        $region128: #{tpu_custom_call.1} parent=107 // pred_fallthru
          _
        // Predicated region
        $region129: #{tpu_custom_call.1} parent=107 // pred_check
          %p793 = pneg %p257
        $region130: #{tpu_custom_call.1} parent=107 // pred_check_branch
          %795 = sbr.rel (%p793) target = $region132
        $region131: #{tpu_custom_call.1} parent=107 // pred_region
          %796 = dma.done [#allocation15], 16
        $region132: #{tpu_custom_call.1} parent=107 // pred_fallthru
          _
        // Predicated region
        $region133: #{tpu_custom_call.1} parent=107 // pred_check
          %p797 = pneg %p278
        $region134: #{tpu_custom_call.1} parent=107 // pred_check_branch
          %799 = sbr.rel (%p797) target = $region136
        $region135: #{tpu_custom_call.1} parent=107 // pred_region
          %800 = dma.done [#allocation15], 64
        $region136: #{tpu_custom_call.1} parent=107 // pred_fallthru
          _
        // Predicated region
        $region137: #{tpu_custom_call.1} parent=107 // pred_check
          %p801 = pneg %p299
        $region138: #{tpu_custom_call.1} parent=107 // pred_check_branch
          %803 = sbr.rel (%p801) target = $region140
        $region139: #{tpu_custom_call.1} parent=107 // pred_region
          %804 = dma.done [#allocation18], 64
        $region140: #{tpu_custom_call.1} parent=107 // pred_fallthru
          _
        // Predicated region
        $region141: #{tpu_custom_call.1} parent=107 // pred_check
          %p805 = pneg %p320
        $region142: #{tpu_custom_call.1} parent=107 // pred_check_branch
          %807 = sbr.rel (%p805) target = $region144
        $region143: #{tpu_custom_call.1} parent=107 // pred_region
          %808 = dma.done [#allocation18], 64
        $region144: #{tpu_custom_call.1} parent=107 // pred_fallthru
          _
        // Predicated region
        $region145: #{tpu_custom_call.1} parent=107 // pred_check
          %p809 = pneg %p362
        $region146: #{tpu_custom_call.1} parent=107 // pred_check_branch
          %811 = sbr.rel (%p809) target = $region148
        $region147: #{tpu_custom_call.1} parent=107 // pred_region
          %812 = dma.done [#allocation21], 16
        $region148: #{tpu_custom_call.1} parent=107 // pred_fallthru
          _
        // Predicated region
        $region149: #{tpu_custom_call.1} parent=107 // pred_check
          %p813 = pneg %p383
        $region150: #{tpu_custom_call.1} parent=107 // pred_check_branch
          %815 = sbr.rel (%p813) target = $region152
        $region151: #{tpu_custom_call.1} parent=107 // pred_region
          %816 = dma.done [#allocation21], 16
        $region152: #{tpu_custom_call.1} parent=107 // pred_fallthru
          _
        // Predicated region
        $region153: #{tpu_custom_call.1} parent=107 // pred_check
          %p817 = pneg %p404
        $region154: #{tpu_custom_call.1} parent=107 // pred_check_branch
          %819 = sbr.rel (%p817) target = $region156
        $region155: #{tpu_custom_call.1} parent=107 // pred_region
          %820 = dma.done [#allocation24], 16
        $region156: #{tpu_custom_call.1} parent=107 // pred_fallthru
          _
        %p821 = scmp.lt.s32.totalorder %s53, 1
        %s822 = scalar_select %p821, %s53, 1
        %s823 = smul.addr %s822, 4
        %s824 = smul.addr %s823, 4
        %s825 = scalar_lea.vmem %s2, %s824
        %p826 = pneg %p74
        %p827 = pneg %p71
        %s828 = sand.u32 %s87, 1
        %s829 = scalar_lea.sflag [#allocation6], %s828
        %s830 = sand.u32 %s87, 1
        %s831 = smul.addr %s830, 4
        %s832 = scalar_lea.vmem [#allocation5], %s831
        %p833 = pneg %p100
        %p834 = pneg %p97
        %p835 = scmp.lt.s32.totalorder %s53, 1
        %s836 = scalar_select %p835, %s53, 1
        %s837 = smul.addr %s836, 4
        %s838 = smul.addr %s837, 4
        %s839 = scalar_lea.vmem %s4, %s838
        %p840 = pneg %p126
        %p841 = pneg %p123
        %p842 = scmp.lt.s32.totalorder %s53, 1
        %s843 = scalar_select %p842, %s53, 1
        %s844 = smul.addr %s843, 4
        %s845 = smul.addr %s844, 4
        %s846 = scalar_lea.vmem %s5, %s845
        %p847 = pneg %p152
        %p848 = pneg %p149
        %p849 = pneg %p173
        %p850 = pneg %p170
        %p851 = pneg %p194
        %p852 = pneg %p191
        %p853 = pneg %p215
        %p854 = pneg %p212
        %p855 = pneg %p236
        %p856 = pneg %p233
        %p857 = pneg %p257
        %p858 = pneg %p254
        %p859 = pneg %p278
        %p860 = pneg %p275
        %p861 = pneg %p299
        %p862 = pneg %p296
        %p863 = pneg %p320
        %p864 = pneg %p317
        %p865 = pneg %p341
        %p866 = pneg %p338
        %p867 = pneg %p362
        %p868 = pneg %p359
        %p869 = pneg %p383
        %p870 = pneg %p380
        %p871 = pneg %p404
        %p872 = pneg %p401
        %p873 = pneg %p425
        %p874 = pneg %p422
        %p875 = pneg %p446
        %p876 = pneg %p443
        %p877 = pneg %p467
        %p878 = pneg %p464
        %p879 = pneg %p488
        %p880 = pneg %p485
        %p881 = pneg %p509
        %p882 = pneg %p506
        %p883 = pneg %p530
        %p884 = pneg %p527
        %p885 = pneg %p556
        %p886 = pneg %p553
        %s887 = sand.u32 %s543, 1
        %s888 = scalar_lea.sflag [#allocation7], %s887
        %s889 = sand.u32 %s543, 1
        %s890 = smul.addr %s889, 4
        %s891 = scalar_lea.vmem [#allocation25], %s890
        %p892 = scmp.lt.s32.totalorder %s53, 1
        %s893 = scalar_select %p892, %s53, 1
        %s894 = smul.addr %s893, 4
        %s895 = smul.addr %s894, 4
        %s896 = scalar_lea.vmem %s2, %s895
        %p897 = scmp.lt.s32.totalorder %s53, 1
        %s898 = scalar_select %p897, %s53, 1
        %s899 = smul.addr %s898, 4
        %s900 = smul.addr %s899, 4
        %s901 = scalar_lea.vmem %s4, %s900
        %p902 = scmp.lt.s32.totalorder %s53, 1
        %s903 = scalar_select %p902, %s53, 1
        %s904 = smul.addr %s903, 4
        %s905 = smul.addr %s904, 4
        %s906 = scalar_lea.vmem %s5, %s905
        %v908 = vlaneseq
        %v909 = vshrl.u32 %v908, 7
        %v910 = vlaneseq
        %v911 = vand.u32 %v910, 127
        %s912 = smul.u32 %s53, 128
        %s913 = sld [smem:[#allocation3 + %s912]]
        %s914 = sadd.s32 %s912, 1
        %s915 = sld [smem:[#allocation3 + %s914]]
        %v916 = vstv %s915
        %vm917 = vcmp.lt.s32.totalorder %v911, %v916
        %p918 = scmp.eq.s32.totalorder %s913, 0
        %vm919 = vcmp.le.s32.totalorder %v911, %v909
        %s920 = scalar_select %p918, 1, 0
        %v921 = vstv %s920
        %vm922 = vcmp.eq.s32.totalorder %v921, 1
        %vm923 = vmor %vm922, %vm919
        %vm924 = vmand %vm917, %vm923
        %s925 = sld [smem:[#allocation4 + %s912]]
        %s926 = sld [smem:[#allocation4 + %s914]]
        %v927 = vstv %s926
        %vm928 = vcmp.lt.s32.totalorder %v911, %v927
        %p929 = scmp.eq.s32.totalorder %s925, 0
        %s930 = scalar_select %p929, 1, 0
        %v931 = vstv %s930
        %vm932 = vcmp.eq.s32.totalorder %v931, 1
        %vm933 = vmor %vm932, %vm919
        %vm934 = vmand %vm928, %vm933
        %v935 = vld [vmem:[%s896] sm:$0xf]
        %v936 = vld [vmem:[%s896 + $0x4] sm:$0xf]
        %v937 = vld [vmem:[%s896 + $0x8] sm:$0xf]
        %v938 = vld [vmem:[%s896 + $0xc] sm:$0xf]
        %v939 = vld [vmem:[%s772] sm:$0xf]
        %v940 = vld [vmem:[#allocation8] sm:$0xf]
        %v945 = vunpack.c.l.b16 %v935
        %v946 = vunpack.c.l.b16 %v936
        %v947 = vunpack.c.l.b16 %v937
        %v948 = vunpack.c.l.b16 %v938
        %v949 = vpack.c.b16 %v946, %v945
        %v950 = vpack.c.b16 %v948, %v947
        %vm951 = vcmask 64512
        %v953 = vsel %vm951, %v949, 0
        %v956 = vsel %vm951, %v950, 0
        %vm958 = vcmask 1043456
        %v960 = vsel %vm958, %v940, 0
        %962 = vmatprep.subr.bf16.mxu0 0
        %963 = vmatpush1.bf16.msra.mxu0 %v960
        %964 = vmatprep.subr.bf16.mxu0 0
        %965 = vmatpush1.bf16.msra.mxu0 0
        %966 = vmatprep.subr.bf16.mxu0 0
        %967 = vmatpush1.bf16.msra.mxu0 0
        %968 = vmatprep.subr.bf16.mxu0 0
        %969 = vmatpush1.bf16.msra.mxu0 0
        %970 = vmatprep.subr.bf16.mxu0 0
        %971 = vmatpush1.bf16.msra.mxu0 0
        %972 = vmatprep.subr.bf16.mxu0 0
        %973 = vmatpush1.bf16.msra.mxu0 0
        %974 = vmatprep.subr.bf16.mxu0 0
        %975 = vmatpush1.bf16.msra.mxu0 0
        %976 = vmatprep.subr.bf16.mxu0 0
        %977 = vmatpush1.bf16.msra.mxu0 0
        %978 = vmatprep.subr.bf16.mxu0 0
        %979 = vmatpush1.bf16.msra.mxu0 0
        %980 = vmatprep.subr.bf16.mxu0 0
        %981 = vmatpush1.bf16.msra.mxu0 0
        %982 = vmatprep.subr.bf16.mxu0 0
        %983 = vmatpush1.bf16.msra.mxu0 0
        %984 = vmatprep.subr.bf16.mxu0 0
        %985 = vmatpush1.bf16.msra.mxu0 0
        %986 = vmatprep.subr.bf16.mxu0 0
        %987 = vmatpush1.bf16.msra.mxu0 0
        %988 = vmatprep.subr.bf16.mxu0 0
        %989 = vmatpush1.bf16.msra.mxu0 0
        %990 = vmatprep.subr.bf16.mxu0 0
        %991 = vmatpush1.bf16.msra.mxu0 0
        %992 = vmatprep.subr.bf16.mxu0 0
        %993 = vmatpush1.bf16.msra.mxu0 0
        %994 = vmatprep.mubr.bf16.mxu0 0
        %995 = vmatmul.mubr.bf16.gmra.mrb[0].mxu0 %v953
        %v996 = vpop.f32.mrb[0].mxu0
        %v997 = vadd.f32 0.0, %v996
        %v998 = vpop.f32.mrb[0].mxu0
        %v999 = vpop.f32.mrb[0].mxu0
        %v1000 = vadd.f32 0.0, %v999
        %v1001 = vpop.f32.mrb[0].mxu0
        %1002 = vmatprep.mubr.bf16.mxu0 0
        %1003 = vmatmul.mubr.bf16.gmra.mrb[0].mxu0 %v956
        %v1004 = vpop.f32.mrb[0].mxu0
        %v1005 = vadd.f32 0.0, %v1004
        %v1006 = vpop.f32.mrb[0].mxu0
        %v1007 = vpop.f32.mrb[0].mxu0
        %v1008 = vadd.f32 0.0, %v1007
        %v1009 = vpop.f32.mrb[0].mxu0
        %1010 = vdwg.mxu0
        %v1011 = vmul.f32 %v997, 0.17677669
        %v1012 = vmul.f32 %v1000, 0.17677669
        %v1013 = vmul.f32 %v1005, 0.17677669
        %v1014 = vmul.f32 %v1008, 0.17677669
        %v1015 = vpack.c.bf16 %v1012, %v1011
        %v1016 = vpack.c.bf16 %v1014, %v1013
        %v1019 = vunpack.c.l.b16 %v1015
        %v1020 = vunpack.c.h.b16 %v1015
        %v1021 = vunpack.c.l.b16 %v1016
        %v1022 = vunpack.c.h.b16 %v1016
        %v1023 = vpack.c.b16 %v1019, %v1019
        %v1024 = vpack.c.b16 %v1020, %v1020
        %v1025 = vpack.c.b16 %v1021, %v1021
        %v1026 = vpack.c.b16 %v1022, %v1022
        %v1027 = vpack.c.bf16 %v1000, %v997
        %v1028 = vpack.c.bf16 %v1008, %v1005
        %v1031 = vunpack.c.l.b16 %v1027
        %v1032 = vunpack.c.h.b16 %v1027
        %v1033 = vunpack.c.l.b16 %v1028
        %v1034 = vunpack.c.h.b16 %v1028
        %v1035 = vpack.c.b16 %v1031, %v1031
        %1036 = vrot.lane.b32.xlu0 %v1035, 120
        %v1037 = vpop.permute.xlu0 %1036
        %v1039 = vsel %vm951, %v1023, 0
        %v1042 = vsel %vm951, %v1037, 0
        %1044 = vmatprep.subr.bf16.mxu0 0
        %1045 = vmatpush1.bf16.xpose.msra.mxu0 %v1042
        %1046 = vmatprep.subr.bf16.mxu0 0
        %1047 = vmatpush1.bf16.xpose.msra.mxu0 0
        %1048 = vmatprep.subr.bf16.mxu0 0
        %1049 = vmatpush1.bf16.xpose.msra.mxu0 0
        %1050 = vmatprep.subr.bf16.mxu0 0
        %1051 = vmatpush1.bf16.xpose.msra.mxu0 0
        %1052 = vmatprep.subr.bf16.mxu0 0
        %1053 = vmatpush1.bf16.xpose.msra.mxu0 0
        %1054 = vmatprep.subr.bf16.mxu0 0
        %1055 = vmatpush1.bf16.xpose.msra.mxu0 0
        %1056 = vmatprep.subr.bf16.mxu0 0
        %1057 = vmatpush1.bf16.xpose.msra.mxu0 0
        %1058 = vmatprep.subr.bf16.mxu0 0
        %1059 = vmatpush1.bf16.xpose.msra.mxu0 0
        %1060 = vmatprep.subr.bf16.mxu0 0
        %1061 = vmatpush1.bf16.xpose.msra.mxu0 0
        %1062 = vmatprep.subr.bf16.mxu0 0
        %1063 = vmatpush1.bf16.xpose.msra.mxu0 0
        %1064 = vmatprep.subr.bf16.mxu0 0
        %1065 = vmatpush1.bf16.xpose.msra.mxu0 0
        %1066 = vmatprep.subr.bf16.mxu0 0
        %1067 = vmatpush1.bf16.xpose.msra.mxu0 0
        %1068 = vmatprep.subr.bf16.mxu0 0
        %1069 = vmatpush1.bf16.xpose.msra.mxu0 0
        %1070 = vmatprep.subr.bf16.mxu0 0
        %1071 = vmatpush1.bf16.xpose.msra.mxu0 0
        %1072 = vmatprep.subr.bf16.mxu0 0
        %1073 = vmatpush1.bf16.xpose.msra.mxu0 0
        %1074 = vmatprep.subr.bf16.mxu0 0
        %1075 = vmatpush1.bf16.xpose.msra.mxu0 0
        %1076 = vmatprep.mubr.bf16.mxu0 0
        %1077 = vmatmul.mubr.bf16.gmra.mrb[0].mxu0 %v1039
        %v1078 = vpop.f32.mrb[0].mxu0
        %v1079 = vadd.f32 0.0, %v1078
        %v1080 = vpop.f32.mrb[0].mxu0
        %v1081 = vpop.f32.mrb[0].mxu0
        %v1082 = vpop.f32.mrb[0].mxu0
        %1083 = vdwg.mxu0
        %v1084 = vpack.c.b16 %v1032, %v1032
        %1085 = vrot.lane.b32.xlu0 %v1084, 120
        %v1086 = vpop.permute.xlu0 %1085
        %v1088 = vsel %vm951, %v1024, 0
        %v1091 = vsel %vm951, %v1086, 0
        %1093 = vmatprep.subr.bf16.mxu0 0
        %1094 = vmatpush1.bf16.xpose.msra.mxu0 %v1091
        %1095 = vmatprep.subr.bf16.mxu0 0
        %1096 = vmatpush1.bf16.xpose.msra.mxu0 0
        %1097 = vmatprep.subr.bf16.mxu0 0
        %1098 = vmatpush1.bf16.xpose.msra.mxu0 0
        %1099 = vmatprep.subr.bf16.mxu0 0
        %1100 = vmatpush1.bf16.xpose.msra.mxu0 0
        %1101 = vmatprep.subr.bf16.mxu0 0
        %1102 = vmatpush1.bf16.xpose.msra.mxu0 0
        %1103 = vmatprep.subr.bf16.mxu0 0
        %1104 = vmatpush1.bf16.xpose.msra.mxu0 0
        %1105 = vmatprep.subr.bf16.mxu0 0
        %1106 = vmatpush1.bf16.xpose.msra.mxu0 0
        %1107 = vmatprep.subr.bf16.mxu0 0
        %1108 = vmatpush1.bf16.xpose.msra.mxu0 0
        %1109 = vmatprep.subr.bf16.mxu0 0
        %1110 = vmatpush1.bf16.xpose.msra.mxu0 0
        %1111 = vmatprep.subr.bf16.mxu0 0
        %1112 = vmatpush1.bf16.xpose.msra.mxu0 0
        %1113 = vmatprep.subr.bf16.mxu0 0
        %1114 = vmatpush1.bf16.xpose.msra.mxu0 0
        %1115 = vmatprep.subr.bf16.mxu0 0
        %1116 = vmatpush1.bf16.xpose.msra.mxu0 0
        %1117 = vmatprep.subr.bf16.mxu0 0
        %1118 = vmatpush1.bf16.xpose.msra.mxu0 0
        %1119 = vmatprep.subr.bf16.mxu0 0
        %1120 = vmatpush1.bf16.xpose.msra.mxu0 0
        %1121 = vmatprep.subr.bf16.mxu0 0
        %1122 = vmatpush1.bf16.xpose.msra.mxu0 0
        %1123 = vmatprep.subr.bf16.mxu0 0
        %1124 = vmatpush1.bf16.xpose.msra.mxu0 0
        %1125 = vmatprep.mubr.bf16.mxu0 0
        %1126 = vmatmul.mubr.bf16.gmra.mrb[0].mxu0 %v1088
        %v1127 = vpop.f32.mrb[0].mxu0
        %v1128 = vadd.f32 0.0, %v1127
        %v1129 = vpop.f32.mrb[0].mxu0
        %v1130 = vpop.f32.mrb[0].mxu0
        %v1131 = vpop.f32.mrb[0].mxu0
        %1132 = vdwg.mxu0
        %v1133 = vpack.c.b16 %v1033, %v1033
        %1134 = vrot.lane.b32.xlu0 %v1133, 120
        %v1135 = vpop.permute.xlu0 %1134
        %v1137 = vsel %vm951, %v1025, 0
        %v1140 = vsel %vm951, %v1135, 0
        %1142 = vmatprep.subr.bf16.mxu0 0
        %1143 = vmatpush1.bf16.xpose.msra.mxu0 %v1140
        %1144 = vmatprep.subr.bf16.mxu0 0
        %1145 = vmatpush1.bf16.xpose.msra.mxu0 0
        %1146 = vmatprep.subr.bf16.mxu0 0
        %1147 = vmatpush1.bf16.xpose.msra.mxu0 0
        %1148 = vmatprep.subr.bf16.mxu0 0
        %1149 = vmatpush1.bf16.xpose.msra.mxu0 0
        %1150 = vmatprep.subr.bf16.mxu0 0
        %1151 = vmatpush1.bf16.xpose.msra.mxu0 0
        %1152 = vmatprep.subr.bf16.mxu0 0
        %1153 = vmatpush1.bf16.xpose.msra.mxu0 0
        %1154 = vmatprep.subr.bf16.mxu0 0
        %1155 = vmatpush1.bf16.xpose.msra.mxu0 0
        %1156 = vmatprep.subr.bf16.mxu0 0
        %1157 = vmatpush1.bf16.xpose.msra.mxu0 0
        %1158 = vmatprep.subr.bf16.mxu0 0
        %1159 = vmatpush1.bf16.xpose.msra.mxu0 0
        %1160 = vmatprep.subr.bf16.mxu0 0
        %1161 = vmatpush1.bf16.xpose.msra.mxu0 0
        %1162 = vmatprep.subr.bf16.mxu0 0
        %1163 = vmatpush1.bf16.xpose.msra.mxu0 0
        %1164 = vmatprep.subr.bf16.mxu0 0
        %1165 = vmatpush1.bf16.xpose.msra.mxu0 0
        %1166 = vmatprep.subr.bf16.mxu0 0
        %1167 = vmatpush1.bf16.xpose.msra.mxu0 0
        %1168 = vmatprep.subr.bf16.mxu0 0
        %1169 = vmatpush1.bf16.xpose.msra.mxu0 0
        %1170 = vmatprep.subr.bf16.mxu0 0
        %1171 = vmatpush1.bf16.xpose.msra.mxu0 0
        %1172 = vmatprep.subr.bf16.mxu0 0
        %1173 = vmatpush1.bf16.xpose.msra.mxu0 0
        %1174 = vmatprep.mubr.bf16.mxu0 0
        %1175 = vmatmul.mubr.bf16.gmra.mrb[0].mxu0 %v1137
        %v1176 = vpop.f32.mrb[0].mxu0
        %v1177 = vadd.f32 0.0, %v1176
        %v1178 = vpop.f32.mrb[0].mxu0
        %v1179 = vpop.f32.mrb[0].mxu0
        %v1180 = vpop.f32.mrb[0].mxu0
        %1181 = vdwg.mxu0
        %v1182 = vpack.c.b16 %v1034, %v1034
        %1183 = vrot.lane.b32.xlu0 %v1182, 120
        %v1184 = vpop.permute.xlu0 %1183
        %v1186 = vsel %vm951, %v1026, 0
        %v1189 = vsel %vm951, %v1184, 0
        %1191 = vmatprep.subr.bf16.mxu0 0
        %1192 = vmatpush1.bf16.xpose.msra.mxu0 %v1189
        %1193 = vmatprep.subr.bf16.mxu0 0
        %1194 = vmatpush1.bf16.xpose.msra.mxu0 0
        %1195 = vmatprep.subr.bf16.mxu0 0
        %1196 = vmatpush1.bf16.xpose.msra.mxu0 0
        %1197 = vmatprep.subr.bf16.mxu0 0
        %1198 = vmatpush1.bf16.xpose.msra.mxu0 0
        %1199 = vmatprep.subr.bf16.mxu0 0
        %1200 = vmatpush1.bf16.xpose.msra.mxu0 0
        %1201 = vmatprep.subr.bf16.mxu0 0
        %1202 = vmatpush1.bf16.xpose.msra.mxu0 0
        %1203 = vmatprep.subr.bf16.mxu0 0
        %1204 = vmatpush1.bf16.xpose.msra.mxu0 0
        %1205 = vmatprep.subr.bf16.mxu0 0
        %1206 = vmatpush1.bf16.xpose.msra.mxu0 0
        %1207 = vmatprep.subr.bf16.mxu0 0
        %1208 = vmatpush1.bf16.xpose.msra.mxu0 0
        %1209 = vmatprep.subr.bf16.mxu0 0
        %1210 = vmatpush1.bf16.xpose.msra.mxu0 0
        %1211 = vmatprep.subr.bf16.mxu0 0
        %1212 = vmatpush1.bf16.xpose.msra.mxu0 0
        %1213 = vmatprep.subr.bf16.mxu0 0
        %1214 = vmatpush1.bf16.xpose.msra.mxu0 0
        %1215 = vmatprep.subr.bf16.mxu0 0
        %1216 = vmatpush1.bf16.xpose.msra.mxu0 0
        %1217 = vmatprep.subr.bf16.mxu0 0
        %1218 = vmatpush1.bf16.xpose.msra.mxu0 0
        %1219 = vmatprep.subr.bf16.mxu0 0
        %1220 = vmatpush1.bf16.xpose.msra.mxu0 0
        %1221 = vmatprep.subr.bf16.mxu0 0
        %1222 = vmatpush1.bf16.xpose.msra.mxu0 0
        %1223 = vmatprep.mubr.bf16.mxu0 0
        %1224 = vmatmul.mubr.bf16.gmra.mrb[0].mxu0 %v1186
        %v1225 = vpop.f32.mrb[0].mxu0
        %v1226 = vadd.f32 0.0, %v1225
        %v1227 = vpop.f32.mrb[0].mxu0
        %v1228 = vpop.f32.mrb[0].mxu0
        %v1229 = vpop.f32.mrb[0].mxu0
        %1230 = vdwg.mxu0
        %v1231 = vsel %vm924, 1, 0
        %vm1232 = vcmp.eq.s32.totalorder %v1231, 1
        %v1233 = vsel %vm1232, %v1079, -1e+20
        %v1234 = vsel %vm1232, %v1128, -1e+20
        %v1235 = vsel %vm1232, %v1177, -1e+20
        %v1236 = vsel %vm1232, %v1226, -1e+20
        %v1237 = vsel %vm951, %v1233, -inf
        %1238 = vmax.xlane.f32.xlu0 %v1237
        %v1239 = vpop.xlane.xlu0 %1238
        %v1240 = vsel %vm951, %v1234, -inf
        %1241 = vmax.xlane.f32.xlu0 %v1240
        %v1242 = vpop.xlane.xlu0 %1241
        %v1243 = vsel %vm951, %v1235, -inf
        %1244 = vmax.xlane.f32.xlu0 %v1243
        %v1245 = vpop.xlane.xlu0 %1244
        %v1246 = vsel %vm951, %v1236, -inf
        %1247 = vmax.xlane.f32.xlu0 %v1246
        %v1248 = vpop.xlane.xlu0 %1247
        %v1249 = vsub.f32 %v1233, %v1239
        %v1250 = vsub.f32 %v1234, %v1242
        %v1251 = vsub.f32 %v1235, %v1245
        %v1252 = vsub.f32 %v1236, %v1248
        %v1253 = vmul.f32 %v1249, 1.442695
        %v1254 = vpow.pop %v1253
        %v1255 = vmul.f32 %v1250, 1.442695
        %v1256 = vpow.pop %v1255
        %v1257 = vmul.f32 %v1251, 1.442695
        %v1258 = vpow.pop %v1257
        %v1259 = vmul.f32 %v1252, 1.442695
        %v1260 = vpow.pop %v1259
        %v1261 = vsel %vm951, %v1254, 0.0
        %1262 = vadd.xlane.f32.xlu0 %v1261
        %v1263 = vpop.xlane.xlu0 %1262
        %v1264 = vsel %vm951, %v1256, 0.0
        %1265 = vadd.xlane.f32.xlu0 %v1264
        %v1266 = vpop.xlane.xlu0 %1265
        %v1267 = vsel %vm951, %v1258, 0.0
        %1268 = vadd.xlane.f32.xlu0 %v1267
        %v1269 = vpop.xlane.xlu0 %1268
        %v1270 = vsel %vm951, %v1260, 0.0
        %1271 = vadd.xlane.f32.xlu0 %v1270
        %v1272 = vpop.xlane.xlu0 %1271
        %v1273 = vrcp.pop %v1263
        %v1274 = vrcp.pop %v1266
        %v1275 = vrcp.pop %v1269
        %v1276 = vrcp.pop %v1272
        %v1277 = vmul.f32 %v1254, %v1273
        %v1278 = vmul.f32 %v1256, %v1274
        %v1279 = vmul.f32 %v1258, %v1275
        %v1280 = vmul.f32 %v1260, %v1276
        %v1281 = vpack.c.bf16 %v1277, %v1277
        %v1282 = vpack.c.bf16 %v1278, %v1278
        %v1283 = vpack.c.bf16 %v1279, %v1279
        %v1284 = vpack.c.bf16 %v1280, %v1280
        %1285 = vrot.lane.b32.xlu0 %v1035, 112
        %v1286 = vpop.permute.xlu0 %1285
        %v1288 = vsel %vm951, %v1281, 0
        %v1291 = vsel %vm958, %v1286, 0
        %1293 = vmatprep.subr.bf16.mxu0 0
        %1294 = vmatpush1.bf16.msra.mxu0 %v1291
        %1295 = vmatprep.subr.bf16.mxu0 0
        %1296 = vmatpush1.bf16.msra.mxu0 0
        %1297 = vmatprep.subr.bf16.mxu0 0
        %1298 = vmatpush1.bf16.msra.mxu0 0
        %1299 = vmatprep.subr.bf16.mxu0 0
        %1300 = vmatpush1.bf16.msra.mxu0 0
        %1301 = vmatprep.subr.bf16.mxu0 0
        %1302 = vmatpush1.bf16.msra.mxu0 0
        %1303 = vmatprep.subr.bf16.mxu0 0
        %1304 = vmatpush1.bf16.msra.mxu0 0
        %1305 = vmatprep.subr.bf16.mxu0 0
        %1306 = vmatpush1.bf16.msra.mxu0 0
        %1307 = vmatprep.subr.bf16.mxu0 0
        %1308 = vmatpush1.bf16.msra.mxu0 0
        %1309 = vmatprep.subr.bf16.mxu0 0
        %1310 = vmatpush1.bf16.msra.mxu0 0
        %1311 = vmatprep.subr.bf16.mxu0 0
        %1312 = vmatpush1.bf16.msra.mxu0 0
        %1313 = vmatprep.subr.bf16.mxu0 0
        %1314 = vmatpush1.bf16.msra.mxu0 0
        %1315 = vmatprep.subr.bf16.mxu0 0
        %1316 = vmatpush1.bf16.msra.mxu0 0
        %1317 = vmatprep.subr.bf16.mxu0 0
        %1318 = vmatpush1.bf16.msra.mxu0 0
        %1319 = vmatprep.subr.bf16.mxu0 0
        %1320 = vmatpush1.bf16.msra.mxu0 0
        %1321 = vmatprep.subr.bf16.mxu0 0
        %1322 = vmatpush1.bf16.msra.mxu0 0
        %1323 = vmatprep.subr.bf16.mxu0 0
        %1324 = vmatpush1.bf16.msra.mxu0 0
        %1325 = vmatprep.mubr.bf16.mxu0 0
        %1326 = vmatmul.mubr.bf16.gmra.mrb[0].mxu0 %v1288
        %v1327 = vpop.f32.mrb[0].mxu0
        %v1328 = vadd.f32 0.0, %v1327
        %v1329 = vpop.f32.mrb[0].mxu0
        %v1330 = vpop.f32.mrb[0].mxu0
        %v1331 = vpop.f32.mrb[0].mxu0
        %1332 = vdwg.mxu0
        %1333 = vrot.lane.b32.xlu0 %v1084, 112
        %v1334 = vpop.permute.xlu0 %1333
        %v1336 = vsel %vm951, %v1282, 0
        %v1339 = vsel %vm958, %v1334, 0
        %1341 = vmatprep.subr.bf16.mxu0 0
        %1342 = vmatpush1.bf16.msra.mxu0 %v1339
        %1343 = vmatprep.subr.bf16.mxu0 0
        %1344 = vmatpush1.bf16.msra.mxu0 0
        %1345 = vmatprep.subr.bf16.mxu0 0
        %1346 = vmatpush1.bf16.msra.mxu0 0
        %1347 = vmatprep.subr.bf16.mxu0 0
        %1348 = vmatpush1.bf16.msra.mxu0 0
        %1349 = vmatprep.subr.bf16.mxu0 0
        %1350 = vmatpush1.bf16.msra.mxu0 0
        %1351 = vmatprep.subr.bf16.mxu0 0
        %1352 = vmatpush1.bf16.msra.mxu0 0
        %1353 = vmatprep.subr.bf16.mxu0 0
        %1354 = vmatpush1.bf16.msra.mxu0 0
        %1355 = vmatprep.subr.bf16.mxu0 0
        %1356 = vmatpush1.bf16.msra.mxu0 0
        %1357 = vmatprep.subr.bf16.mxu0 0
        %1358 = vmatpush1.bf16.msra.mxu0 0
        %1359 = vmatprep.subr.bf16.mxu0 0
        %1360 = vmatpush1.bf16.msra.mxu0 0
        %1361 = vmatprep.subr.bf16.mxu0 0
        %1362 = vmatpush1.bf16.msra.mxu0 0
        %1363 = vmatprep.subr.bf16.mxu0 0
        %1364 = vmatpush1.bf16.msra.mxu0 0
        %1365 = vmatprep.subr.bf16.mxu0 0
        %1366 = vmatpush1.bf16.msra.mxu0 0
        %1367 = vmatprep.subr.bf16.mxu0 0
        %1368 = vmatpush1.bf16.msra.mxu0 0
        %1369 = vmatprep.subr.bf16.mxu0 0
        %1370 = vmatpush1.bf16.msra.mxu0 0
        %1371 = vmatprep.subr.bf16.mxu0 0
        %1372 = vmatpush1.bf16.msra.mxu0 0
        %1373 = vmatprep.mubr.bf16.mxu0 0
        %1374 = vmatmul.mubr.bf16.gmra.mrb[0].mxu0 %v1336
        %v1375 = vpop.f32.mrb[0].mxu0
        %v1376 = vadd.f32 0.0, %v1375
        %v1377 = vpop.f32.mrb[0].mxu0
        %v1378 = vpop.f32.mrb[0].mxu0
        %v1379 = vpop.f32.mrb[0].mxu0
        %1380 = vdwg.mxu0
        %1381 = vrot.lane.b32.xlu0 %v1133, 112
        %v1382 = vpop.permute.xlu0 %1381
        %v1384 = vsel %vm951, %v1283, 0
        %v1387 = vsel %vm958, %v1382, 0
        %1389 = vmatprep.subr.bf16.mxu0 0
        %1390 = vmatpush1.bf16.msra.mxu0 %v1387
        %1391 = vmatprep.subr.bf16.mxu0 0
        %1392 = vmatpush1.bf16.msra.mxu0 0
        %1393 = vmatprep.subr.bf16.mxu0 0
        %1394 = vmatpush1.bf16.msra.mxu0 0
        %1395 = vmatprep.subr.bf16.mxu0 0
        %1396 = vmatpush1.bf16.msra.mxu0 0
        %1397 = vmatprep.subr.bf16.mxu0 0
        %1398 = vmatpush1.bf16.msra.mxu0 0
        %1399 = vmatprep.subr.bf16.mxu0 0
        %1400 = vmatpush1.bf16.msra.mxu0 0
        %1401 = vmatprep.subr.bf16.mxu0 0
        %1402 = vmatpush1.bf16.msra.mxu0 0
        %1403 = vmatprep.subr.bf16.mxu0 0
        %1404 = vmatpush1.bf16.msra.mxu0 0
        %1405 = vmatprep.subr.bf16.mxu0 0
        %1406 = vmatpush1.bf16.msra.mxu0 0
        %1407 = vmatprep.subr.bf16.mxu0 0
        %1408 = vmatpush1.bf16.msra.mxu0 0
        %1409 = vmatprep.subr.bf16.mxu0 0
        %1410 = vmatpush1.bf16.msra.mxu0 0
        %1411 = vmatprep.subr.bf16.mxu0 0
        %1412 = vmatpush1.bf16.msra.mxu0 0
        %1413 = vmatprep.subr.bf16.mxu0 0
        %1414 = vmatpush1.bf16.msra.mxu0 0
        %1415 = vmatprep.subr.bf16.mxu0 0
        %1416 = vmatpush1.bf16.msra.mxu0 0
        %1417 = vmatprep.subr.bf16.mxu0 0
        %1418 = vmatpush1.bf16.msra.mxu0 0
        %1419 = vmatprep.subr.bf16.mxu0 0
        %1420 = vmatpush1.bf16.msra.mxu0 0
        %1421 = vmatprep.mubr.bf16.mxu0 0
        %1422 = vmatmul.mubr.bf16.gmra.mrb[0].mxu0 %v1384
        %v1423 = vpop.f32.mrb[0].mxu0
        %v1424 = vadd.f32 0.0, %v1423
        %v1425 = vpop.f32.mrb[0].mxu0
        %v1426 = vpop.f32.mrb[0].mxu0
        %v1427 = vpop.f32.mrb[0].mxu0
        %1428 = vdwg.mxu0
        %1429 = vrot.lane.b32.xlu0 %v1182, 112
        %v1430 = vpop.permute.xlu0 %1429
        %v1432 = vsel %vm951, %v1284, 0
        %v1435 = vsel %vm958, %v1430, 0
        %1437 = vmatprep.subr.bf16.mxu0 0
        %1438 = vmatpush1.bf16.msra.mxu0 %v1435
        %1439 = vmatprep.subr.bf16.mxu0 0
        %1440 = vmatpush1.bf16.msra.mxu0 0
        %1441 = vmatprep.subr.bf16.mxu0 0
        %1442 = vmatpush1.bf16.msra.mxu0 0
        %1443 = vmatprep.subr.bf16.mxu0 0
        %1444 = vmatpush1.bf16.msra.mxu0 0
        %1445 = vmatprep.subr.bf16.mxu0 0
        %1446 = vmatpush1.bf16.msra.mxu0 0
        %1447 = vmatprep.subr.bf16.mxu0 0
        %1448 = vmatpush1.bf16.msra.mxu0 0
        %1449 = vmatprep.subr.bf16.mxu0 0
        %1450 = vmatpush1.bf16.msra.mxu0 0
        %1451 = vmatprep.subr.bf16.mxu0 0
        %1452 = vmatpush1.bf16.msra.mxu0 0
        %1453 = vmatprep.subr.bf16.mxu0 0
        %1454 = vmatpush1.bf16.msra.mxu0 0
        %1455 = vmatprep.subr.bf16.mxu0 0
        %1456 = vmatpush1.bf16.msra.mxu0 0
        %1457 = vmatprep.subr.bf16.mxu0 0
        %1458 = vmatpush1.bf16.msra.mxu0 0
        %1459 = vmatprep.subr.bf16.mxu0 0
        %1460 = vmatpush1.bf16.msra.mxu0 0
        %1461 = vmatprep.subr.bf16.mxu0 0
        %1462 = vmatpush1.bf16.msra.mxu0 0
        %1463 = vmatprep.subr.bf16.mxu0 0
        %1464 = vmatpush1.bf16.msra.mxu0 0
        %1465 = vmatprep.subr.bf16.mxu0 0
        %1466 = vmatpush1.bf16.msra.mxu0 0
        %1467 = vmatprep.subr.bf16.mxu0 0
        %1468 = vmatpush1.bf16.msra.mxu0 0
        %1469 = vmatprep.mubr.bf16.mxu0 0
        %1470 = vmatmul.mubr.bf16.gmra.mrb[0].mxu0 %v1432
        %v1471 = vpop.f32.mrb[0].mxu0
        %v1472 = vadd.f32 0.0, %v1471
        %v1473 = vpop.f32.mrb[0].mxu0
        %v1474 = vpop.f32.mrb[0].mxu0
        %v1475 = vpop.f32.mrb[0].mxu0
        %1476 = vdwg.mxu0
        %v1477 = vld [vmem:[#allocation10] sm:$0xf]
        %v1478 = vld [vmem:[#allocation10 + $0x4] sm:$0xf]
        %v1479 = vld [vmem:[#allocation10 + $0x8] sm:$0xf]
        %v1480 = vld [vmem:[#allocation10 + $0xc] sm:$0xf]
        %v1481 = vld [vmem:[#allocation11] sm:$0x1]
        %v1482 = vpack.c.bf16 %v1328, %v1328
        %v1483 = vpack.c.bf16 %v1376, %v1376
        %v1484 = vpack.c.bf16 %v1424, %v1424
        %v1485 = vpack.c.bf16 %v1472, %v1472
        %v1487 = vsel %vm951, %v1482, 0
        %v1490 = vsel %vm958, %v1477, 0
        %1492 = vmatprep.subr.bf16.mxu0 0
        %1493 = vmatpush1.bf16.msra.mxu0 %v1490
        %1494 = vmatprep.subr.bf16.mxu0 0
        %1495 = vmatpush1.bf16.msra.mxu0 0
        %1496 = vmatprep.subr.bf16.mxu0 0
        %1497 = vmatpush1.bf16.msra.mxu0 0
        %1498 = vmatprep.subr.bf16.mxu0 0
        %1499 = vmatpush1.bf16.msra.mxu0 0
        %1500 = vmatprep.subr.bf16.mxu0 0
        %1501 = vmatpush1.bf16.msra.mxu0 0
        %1502 = vmatprep.subr.bf16.mxu0 0
        %1503 = vmatpush1.bf16.msra.mxu0 0
        %1504 = vmatprep.subr.bf16.mxu0 0
        %1505 = vmatpush1.bf16.msra.mxu0 0
        %1506 = vmatprep.subr.bf16.mxu0 0
        %1507 = vmatpush1.bf16.msra.mxu0 0
        %1508 = vmatprep.subr.bf16.mxu0 0
        %1509 = vmatpush1.bf16.msra.mxu0 0
        %1510 = vmatprep.subr.bf16.mxu0 0
        %1511 = vmatpush1.bf16.msra.mxu0 0
        %1512 = vmatprep.subr.bf16.mxu0 0
        %1513 = vmatpush1.bf16.msra.mxu0 0
        %1514 = vmatprep.subr.bf16.mxu0 0
        %1515 = vmatpush1.bf16.msra.mxu0 0
        %1516 = vmatprep.subr.bf16.mxu0 0
        %1517 = vmatpush1.bf16.msra.mxu0 0
        %1518 = vmatprep.subr.bf16.mxu0 0
        %1519 = vmatpush1.bf16.msra.mxu0 0
        %1520 = vmatprep.subr.bf16.mxu0 0
        %1521 = vmatpush1.bf16.msra.mxu0 0
        %1522 = vmatprep.subr.bf16.mxu0 0
        %1523 = vmatpush1.bf16.msra.mxu0 0
        %1524 = vmatprep.mubr.bf16.mxu0 0
        %1525 = vmatmul.mubr.bf16.gmra.mrb[0].mxu0 %v1487
        %v1526 = vpop.f32.mrb[0].mxu0
        %v1527 = vadd.f32 0.0, %v1526
        %v1528 = vpop.f32.mrb[0].mxu0
        %v1529 = vpop.f32.mrb[0].mxu0
        %v1530 = vpop.f32.mrb[0].mxu0
        %1531 = vdwg.mxu0
        %v1533 = vsel %vm951, %v1483, 0
        %v1536 = vsel %vm958, %v1478, 0
        %1538 = vmatprep.subr.bf16.mxu0 0
        %1539 = vmatpush1.bf16.msra.mxu0 %v1536
        %1540 = vmatprep.subr.bf16.mxu0 0
        %1541 = vmatpush1.bf16.msra.mxu0 0
        %1542 = vmatprep.subr.bf16.mxu0 0
        %1543 = vmatpush1.bf16.msra.mxu0 0
        %1544 = vmatprep.subr.bf16.mxu0 0
        %1545 = vmatpush1.bf16.msra.mxu0 0
        %1546 = vmatprep.subr.bf16.mxu0 0
        %1547 = vmatpush1.bf16.msra.mxu0 0
        %1548 = vmatprep.subr.bf16.mxu0 0
        %1549 = vmatpush1.bf16.msra.mxu0 0
        %1550 = vmatprep.subr.bf16.mxu0 0
        %1551 = vmatpush1.bf16.msra.mxu0 0
        %1552 = vmatprep.subr.bf16.mxu0 0
        %1553 = vmatpush1.bf16.msra.mxu0 0
        %1554 = vmatprep.subr.bf16.mxu0 0
        %1555 = vmatpush1.bf16.msra.mxu0 0
        %1556 = vmatprep.subr.bf16.mxu0 0
        %1557 = vmatpush1.bf16.msra.mxu0 0
        %1558 = vmatprep.subr.bf16.mxu0 0
        %1559 = vmatpush1.bf16.msra.mxu0 0
        %1560 = vmatprep.subr.bf16.mxu0 0
        %1561 = vmatpush1.bf16.msra.mxu0 0
        %1562 = vmatprep.subr.bf16.mxu0 0
        %1563 = vmatpush1.bf16.msra.mxu0 0
        %1564 = vmatprep.subr.bf16.mxu0 0
        %1565 = vmatpush1.bf16.msra.mxu0 0
        %1566 = vmatprep.subr.bf16.mxu0 0
        %1567 = vmatpush1.bf16.msra.mxu0 0
        %1568 = vmatprep.subr.bf16.mxu0 0
        %1569 = vmatpush1.bf16.msra.mxu0 0
        %1570 = vmatprep.mubr.bf16.mxu0 0
        %1571 = vmatmul.mubr.bf16.gmra.mrb[0].mxu0 %v1533
        %v1572 = vpop.f32.mrb[0].mxu0
        %v1573 = vadd.f32 0.0, %v1572
        %v1574 = vpop.f32.mrb[0].mxu0
        %v1575 = vpop.f32.mrb[0].mxu0
        %v1576 = vpop.f32.mrb[0].mxu0
        %1577 = vdwg.mxu0
        %v1579 = vsel %vm951, %v1484, 0
        %v1582 = vsel %vm958, %v1479, 0
        %1584 = vmatprep.subr.bf16.mxu0 0
        %1585 = vmatpush1.bf16.msra.mxu0 %v1582
        %1586 = vmatprep.subr.bf16.mxu0 0
        %1587 = vmatpush1.bf16.msra.mxu0 0
        %1588 = vmatprep.subr.bf16.mxu0 0
        %1589 = vmatpush1.bf16.msra.mxu0 0
        %1590 = vmatprep.subr.bf16.mxu0 0
        %1591 = vmatpush1.bf16.msra.mxu0 0
        %1592 = vmatprep.subr.bf16.mxu0 0
        %1593 = vmatpush1.bf16.msra.mxu0 0
        %1594 = vmatprep.subr.bf16.mxu0 0
        %1595 = vmatpush1.bf16.msra.mxu0 0
        %1596 = vmatprep.subr.bf16.mxu0 0
        %1597 = vmatpush1.bf16.msra.mxu0 0
        %1598 = vmatprep.subr.bf16.mxu0 0
        %1599 = vmatpush1.bf16.msra.mxu0 0
        %1600 = vmatprep.subr.bf16.mxu0 0
        %1601 = vmatpush1.bf16.msra.mxu0 0
        %1602 = vmatprep.subr.bf16.mxu0 0
        %1603 = vmatpush1.bf16.msra.mxu0 0
        %1604 = vmatprep.subr.bf16.mxu0 0
        %1605 = vmatpush1.bf16.msra.mxu0 0
        %1606 = vmatprep.subr.bf16.mxu0 0
        %1607 = vmatpush1.bf16.msra.mxu0 0
        %1608 = vmatprep.subr.bf16.mxu0 0
        %1609 = vmatpush1.bf16.msra.mxu0 0
        %1610 = vmatprep.subr.bf16.mxu0 0
        %1611 = vmatpush1.bf16.msra.mxu0 0
        %1612 = vmatprep.subr.bf16.mxu0 0
        %1613 = vmatpush1.bf16.msra.mxu0 0
        %1614 = vmatprep.subr.bf16.mxu0 0
        %1615 = vmatpush1.bf16.msra.mxu0 0
        %1616 = vmatprep.mubr.bf16.mxu0 0
        %1617 = vmatmul.mubr.bf16.gmra.mrb[0].mxu0 %v1579
        %v1618 = vpop.f32.mrb[0].mxu0
        %v1619 = vadd.f32 0.0, %v1618
        %v1620 = vpop.f32.mrb[0].mxu0
        %v1621 = vpop.f32.mrb[0].mxu0
        %v1622 = vpop.f32.mrb[0].mxu0
        %1623 = vdwg.mxu0
        %v1625 = vsel %vm951, %v1485, 0
        %v1628 = vsel %vm958, %v1480, 0
        %1630 = vmatprep.subr.bf16.mxu0 0
        %1631 = vmatpush1.bf16.msra.mxu0 %v1628
        %1632 = vmatprep.subr.bf16.mxu0 0
        %1633 = vmatpush1.bf16.msra.mxu0 0
        %1634 = vmatprep.subr.bf16.mxu0 0
        %1635 = vmatpush1.bf16.msra.mxu0 0
        %1636 = vmatprep.subr.bf16.mxu0 0
        %1637 = vmatpush1.bf16.msra.mxu0 0
        %1638 = vmatprep.subr.bf16.mxu0 0
        %1639 = vmatpush1.bf16.msra.mxu0 0
        %1640 = vmatprep.subr.bf16.mxu0 0
        %1641 = vmatpush1.bf16.msra.mxu0 0
        %1642 = vmatprep.subr.bf16.mxu0 0
        %1643 = vmatpush1.bf16.msra.mxu0 0
        %1644 = vmatprep.subr.bf16.mxu0 0
        %1645 = vmatpush1.bf16.msra.mxu0 0
        %1646 = vmatprep.subr.bf16.mxu0 0
        %1647 = vmatpush1.bf16.msra.mxu0 0
        %1648 = vmatprep.subr.bf16.mxu0 0
        %1649 = vmatpush1.bf16.msra.mxu0 0
        %1650 = vmatprep.subr.bf16.mxu0 0
        %1651 = vmatpush1.bf16.msra.mxu0 0
        %1652 = vmatprep.subr.bf16.mxu0 0
        %1653 = vmatpush1.bf16.msra.mxu0 0
        %1654 = vmatprep.subr.bf16.mxu0 0
        %1655 = vmatpush1.bf16.msra.mxu0 0
        %1656 = vmatprep.subr.bf16.mxu0 0
        %1657 = vmatpush1.bf16.msra.mxu0 0
        %1658 = vmatprep.subr.bf16.mxu0 0
        %1659 = vmatpush1.bf16.msra.mxu0 0
        %1660 = vmatprep.subr.bf16.mxu0 0
        %1661 = vmatpush1.bf16.msra.mxu0 0
        %1662 = vmatprep.mubr.bf16.mxu0 0
        %1663 = vmatmul.mubr.bf16.gmra.mrb[0].mxu0 %v1625
        %v1664 = vpop.f32.mrb[0].mxu0
        %v1665 = vadd.f32 0.0, %v1664
        %v1666 = vpop.f32.mrb[0].mxu0
        %v1667 = vpop.f32.mrb[0].mxu0
        %v1668 = vpop.f32.mrb[0].mxu0
        %1669 = vdwg.mxu0
        %vm1670 = vcmask 261120
        %v1671 = vsel %vm1670, %v1527, 0.0
        %v1672 = vsel %vm1670, %v1573, 0.0
        %v1673 = vadd.f32 %v1671, %v1672
        %v1674 = vsel %vm1670, %v1619, 0.0
        %v1675 = vadd.f32 %v1673, %v1674
        %v1676 = vsel %vm1670, %v1665, 0.0
        %v1677 = vadd.f32 %v1675, %v1676
        %v1679 = vlaneseq
        %v1680 = vshrl.u32 %v1679, 7
        %v1681 = vsub.s32 0, %v1680
        %v1682 = vrot.slane %v1481, %v1681
        %v1684 = vadd.f32 %v1677, %v1682
        %v1685 = vld [vmem:[#allocation13] sm:$0x1]
        %v1686 = vld [vmem:[#allocation14] sm:$0x1]
        %v1687 = vsel %vm1670, %v1684, 0.0
        %1688 = vadd.xlane.f32.xlu0 %v1687
        %v1689 = vpop.xlane.xlu0 %1688
        %v1690 = vrcp.pop 32.0
        %v1691 = vmul.f32 %v1689, %v1690
        %v1692 = vsub.f32 %v1684, %v1691
        %v1693 = vmul.f32 %v1692, %v1692
        %v1694 = vsel %vm1670, %v1693, 0.0
        %1695 = vadd.xlane.f32.xlu0 %v1694
        %v1696 = vpop.xlane.xlu0 %1695
        %v1697 = vmul.f32 %v1696, %v1690
        %v1698 = vadd.f32 %v1697, 1e-05
        %v1699 = vrsqrt.pop %v1698
        %v1700 = vmul.f32 %v1692, %v1699
        %v1702 = vlaneseq
        %v1703 = vshrl.u32 %v1702, 7
        %v1704 = vsub.s32 0, %v1703
        %v1705 = vrot.slane %v1685, %v1704
        %v1707 = vmul.f32 %v1700, %v1705
        %v1709 = vlaneseq
        %v1710 = vshrl.u32 %v1709, 7
        %v1711 = vsub.s32 0, %v1710
        %v1712 = vrot.slane %v1686, %v1711
        %v1714 = vadd.f32 %v1707, %v1712
        %v1715 = vunpack.c.l.bf16 %v939
        %v1716 = vadd.f32 %v1714, %v1715
        %v1717 = vpack.c.bf16 %v1716, %v1716
        %1719 = vrot.lane.b32.xlu0 %v1717, 120
        %v1720 = vpop.permute.xlu0 %1719
        %1721 = vrot.lane.b32.xlu0 %v1717, 112
        %v1722 = vpop.permute.xlu0 %1721
        %1723 = vrot.lane.b32.xlu0 %v1717, 104
        %v1724 = vpop.permute.xlu0 %1723
        %v1725 = vld [vmem:[#allocation16] sm:$0xf]
        %v1726 = vunpack.c.l.b16 %v1717
        %v1727 = vunpack.c.l.b16 %v1720
        %v1728 = vunpack.c.l.b16 %v1722
        %v1729 = vunpack.c.l.b16 %v1724
        %v1730 = vpack.c.b16 %v1727, %v1726
        %v1731 = vpack.c.b16 %v1729, %v1728
        %v1733 = vsel %vm951, %v1730, 0
        %v1736 = vsel %vm951, %v1731, 0
        %v1739 = vsel %vm958, %v1725, 0
        %1741 = vmatprep.subr.bf16.mxu0 0
        %1742 = vmatpush1.bf16.msra.mxu0 %v1739
        %1743 = vmatprep.subr.bf16.mxu0 0
        %1744 = vmatpush1.bf16.msra.mxu0 0
        %1745 = vmatprep.subr.bf16.mxu0 0
        %1746 = vmatpush1.bf16.msra.mxu0 0
        %1747 = vmatprep.subr.bf16.mxu0 0
        %1748 = vmatpush1.bf16.msra.mxu0 0
        %1749 = vmatprep.subr.bf16.mxu0 0
        %1750 = vmatpush1.bf16.msra.mxu0 0
        %1751 = vmatprep.subr.bf16.mxu0 0
        %1752 = vmatpush1.bf16.msra.mxu0 0
        %1753 = vmatprep.subr.bf16.mxu0 0
        %1754 = vmatpush1.bf16.msra.mxu0 0
        %1755 = vmatprep.subr.bf16.mxu0 0
        %1756 = vmatpush1.bf16.msra.mxu0 0
        %1757 = vmatprep.subr.bf16.mxu0 0
        %1758 = vmatpush1.bf16.msra.mxu0 0
        %1759 = vmatprep.subr.bf16.mxu0 0
        %1760 = vmatpush1.bf16.msra.mxu0 0
        %1761 = vmatprep.subr.bf16.mxu0 0
        %1762 = vmatpush1.bf16.msra.mxu0 0
        %1763 = vmatprep.subr.bf16.mxu0 0
        %1764 = vmatpush1.bf16.msra.mxu0 0
        %1765 = vmatprep.subr.bf16.mxu0 0
        %1766 = vmatpush1.bf16.msra.mxu0 0
        %1767 = vmatprep.subr.bf16.mxu0 0
        %1768 = vmatpush1.bf16.msra.mxu0 0
        %1769 = vmatprep.subr.bf16.mxu0 0
        %1770 = vmatpush1.bf16.msra.mxu0 0
        %1771 = vmatprep.subr.bf16.mxu0 0
        %1772 = vmatpush1.bf16.msra.mxu0 0
        %1773 = vmatprep.mubr.bf16.mxu0 0
        %1774 = vmatmul.mubr.bf16.gmra.mrb[0].mxu0 %v1733
        %v1775 = vpop.f32.mrb[0].mxu0
        %v1776 = vadd.f32 0.0, %v1775
        %v1777 = vpop.f32.mrb[0].mxu0
        %v1778 = vpop.f32.mrb[0].mxu0
        %v1779 = vadd.f32 0.0, %v1778
        %v1780 = vpop.f32.mrb[0].mxu0
        %1781 = vmatprep.mubr.bf16.mxu0 0
        %1782 = vmatmul.mubr.bf16.gmra.mrb[0].mxu0 %v1736
        %v1783 = vpop.f32.mrb[0].mxu0
        %v1784 = vadd.f32 0.0, %v1783
        %v1785 = vpop.f32.mrb[0].mxu0
        %v1786 = vpop.f32.mrb[0].mxu0
        %v1787 = vadd.f32 0.0, %v1786
        %v1788 = vpop.f32.mrb[0].mxu0
        %1789 = vdwg.mxu0
        %v1790 = vmul.f32 %v1776, 0.17677669
        %v1791 = vmul.f32 %v1779, 0.17677669
        %v1792 = vmul.f32 %v1784, 0.17677669
        %v1793 = vmul.f32 %v1787, 0.17677669
        %v1794 = vpack.c.bf16 %v1791, %v1790
        %v1795 = vpack.c.bf16 %v1793, %v1792
        %v1798 = vunpack.c.l.b16 %v1794
        %v1799 = vunpack.c.h.b16 %v1794
        %v1800 = vunpack.c.l.b16 %v1795
        %v1801 = vunpack.c.h.b16 %v1795
        %v1802 = vpack.c.b16 %v1798, %v1798
        %v1803 = vpack.c.b16 %v1799, %v1799
        %v1804 = vpack.c.b16 %v1800, %v1800
        %v1805 = vpack.c.b16 %v1801, %v1801
        %v1806 = vld [vmem:[%s906] sm:$0xf]
        %v1807 = vld [vmem:[%s906 + $0x4] sm:$0xf]
        %v1808 = vld [vmem:[%s906 + $0x8] sm:$0xf]
        %v1809 = vld [vmem:[%s906 + $0xc] sm:$0xf]
        %v1810 = vld [vmem:[#allocation17] sm:$0xf]
        %v1815 = vunpack.c.l.b16 %v1806
        %v1816 = vunpack.c.l.b16 %v1807
        %v1817 = vunpack.c.l.b16 %v1808
        %v1818 = vunpack.c.l.b16 %v1809
        %v1819 = vpack.c.b16 %v1816, %v1815
        %v1820 = vpack.c.b16 %v1818, %v1817
        %v1822 = vsel %vm951, %v1819, 0
        %v1825 = vsel %vm951, %v1820, 0
        %v1828 = vsel %vm958, %v1810, 0
        %1830 = vmatprep.subr.bf16.mxu0 0
        %1831 = vmatpush1.bf16.msra.mxu0 %v1828
        %1832 = vmatprep.subr.bf16.mxu0 0
        %1833 = vmatpush1.bf16.msra.mxu0 0
        %1834 = vmatprep.subr.bf16.mxu0 0
        %1835 = vmatpush1.bf16.msra.mxu0 0
        %1836 = vmatprep.subr.bf16.mxu0 0
        %1837 = vmatpush1.bf16.msra.mxu0 0
        %1838 = vmatprep.subr.bf16.mxu0 0
        %1839 = vmatpush1.bf16.msra.mxu0 0
        %1840 = vmatprep.subr.bf16.mxu0 0
        %1841 = vmatpush1.bf16.msra.mxu0 0
        %1842 = vmatprep.subr.bf16.mxu0 0
        %1843 = vmatpush1.bf16.msra.mxu0 0
        %1844 = vmatprep.subr.bf16.mxu0 0
        %1845 = vmatpush1.bf16.msra.mxu0 0
        %1846 = vmatprep.subr.bf16.mxu0 0
        %1847 = vmatpush1.bf16.msra.mxu0 0
        %1848 = vmatprep.subr.bf16.mxu0 0
        %1849 = vmatpush1.bf16.msra.mxu0 0
        %1850 = vmatprep.subr.bf16.mxu0 0
        %1851 = vmatpush1.bf16.msra.mxu0 0
        %1852 = vmatprep.subr.bf16.mxu0 0
        %1853 = vmatpush1.bf16.msra.mxu0 0
        %1854 = vmatprep.subr.bf16.mxu0 0
        %1855 = vmatpush1.bf16.msra.mxu0 0
        %1856 = vmatprep.subr.bf16.mxu0 0
        %1857 = vmatpush1.bf16.msra.mxu0 0
        %1858 = vmatprep.subr.bf16.mxu0 0
        %1859 = vmatpush1.bf16.msra.mxu0 0
        %1860 = vmatprep.subr.bf16.mxu0 0
        %1861 = vmatpush1.bf16.msra.mxu0 0
        %1862 = vmatprep.mubr.bf16.mxu0 0
        %1863 = vmatmul.mubr.bf16.gmra.mrb[0].mxu0 %v1822
        %v1864 = vpop.f32.mrb[0].mxu0
        %v1865 = vadd.f32 0.0, %v1864
        %v1866 = vpop.f32.mrb[0].mxu0
        %v1867 = vpop.f32.mrb[0].mxu0
        %v1868 = vadd.f32 0.0, %v1867
        %v1869 = vpop.f32.mrb[0].mxu0
        %1870 = vmatprep.mubr.bf16.mxu0 0
        %1871 = vmatmul.mubr.bf16.gmra.mrb[0].mxu0 %v1825
        %v1872 = vpop.f32.mrb[0].mxu0
        %v1873 = vadd.f32 0.0, %v1872
        %v1874 = vpop.f32.mrb[0].mxu0
        %v1875 = vpop.f32.mrb[0].mxu0
        %v1876 = vadd.f32 0.0, %v1875
        %v1877 = vpop.f32.mrb[0].mxu0
        %1878 = vdwg.mxu0
        %v1879 = vpack.c.bf16 %v1868, %v1865
        %v1880 = vpack.c.bf16 %v1876, %v1873
        %v1883 = vunpack.c.l.b16 %v1879
        %v1884 = vunpack.c.h.b16 %v1879
        %v1885 = vunpack.c.l.b16 %v1880
        %v1886 = vunpack.c.h.b16 %v1880
        %v1887 = vpack.c.b16 %v1883, %v1883
        %v1888 = vpack.c.b16 %v1884, %v1884
        %v1889 = vpack.c.b16 %v1885, %v1885
        %v1890 = vpack.c.b16 %v1886, %v1886
        %v1891 = vld [vmem:[%s901] sm:$0xf]
        %v1892 = vld [vmem:[%s901 + $0x4] sm:$0xf]
        %v1893 = vld [vmem:[%s901 + $0x8] sm:$0xf]
        %v1894 = vld [vmem:[%s901 + $0xc] sm:$0xf]
        %v1895 = vld [vmem:[#allocation19] sm:$0xf]
        %v1900 = vunpack.c.l.b16 %v1891
        %v1901 = vunpack.c.l.b16 %v1892
        %v1902 = vunpack.c.l.b16 %v1893
        %v1903 = vunpack.c.l.b16 %v1894
        %v1904 = vpack.c.b16 %v1901, %v1900
        %v1905 = vpack.c.b16 %v1903, %v1902
        %v1907 = vsel %vm951, %v1904, 0
        %v1910 = vsel %vm951, %v1905, 0
        %v1913 = vsel %vm958, %v1895, 0
        %1915 = vmatprep.subr.bf16.mxu0 0
        %1916 = vmatpush1.bf16.msra.mxu0 %v1913
        %1917 = vmatprep.subr.bf16.mxu0 0
        %1918 = vmatpush1.bf16.msra.mxu0 0
        %1919 = vmatprep.subr.bf16.mxu0 0
        %1920 = vmatpush1.bf16.msra.mxu0 0
        %1921 = vmatprep.subr.bf16.mxu0 0
        %1922 = vmatpush1.bf16.msra.mxu0 0
        %1923 = vmatprep.subr.bf16.mxu0 0
        %1924 = vmatpush1.bf16.msra.mxu0 0
        %1925 = vmatprep.subr.bf16.mxu0 0
        %1926 = vmatpush1.bf16.msra.mxu0 0
        %1927 = vmatprep.subr.bf16.mxu0 0
        %1928 = vmatpush1.bf16.msra.mxu0 0
        %1929 = vmatprep.subr.bf16.mxu0 0
        %1930 = vmatpush1.bf16.msra.mxu0 0
        %1931 = vmatprep.subr.bf16.mxu0 0
        %1932 = vmatpush1.bf16.msra.mxu0 0
        %1933 = vmatprep.subr.bf16.mxu0 0
        %1934 = vmatpush1.bf16.msra.mxu0 0
        %1935 = vmatprep.subr.bf16.mxu0 0
        %1936 = vmatpush1.bf16.msra.mxu0 0
        %1937 = vmatprep.subr.bf16.mxu0 0
        %1938 = vmatpush1.bf16.msra.mxu0 0
        %1939 = vmatprep.subr.bf16.mxu0 0
        %1940 = vmatpush1.bf16.msra.mxu0 0
        %1941 = vmatprep.subr.bf16.mxu0 0
        %1942 = vmatpush1.bf16.msra.mxu0 0
        %1943 = vmatprep.subr.bf16.mxu0 0
        %1944 = vmatpush1.bf16.msra.mxu0 0
        %1945 = vmatprep.subr.bf16.mxu0 0
        %1946 = vmatpush1.bf16.msra.mxu0 0
        %1947 = vmatprep.mubr.bf16.mxu0 0
        %1948 = vmatmul.mubr.bf16.gmra.mrb[0].mxu0 %v1907
        %v1949 = vpop.f32.mrb[0].mxu0
        %v1950 = vadd.f32 0.0, %v1949
        %v1951 = vpop.f32.mrb[0].mxu0
        %v1952 = vpop.f32.mrb[0].mxu0
        %v1953 = vadd.f32 0.0, %v1952
        %v1954 = vpop.f32.mrb[0].mxu0
        %1955 = vmatprep.mubr.bf16.mxu0 0
        %1956 = vmatmul.mubr.bf16.gmra.mrb[0].mxu0 %v1910
        %v1957 = vpop.f32.mrb[0].mxu0
        %v1958 = vadd.f32 0.0, %v1957
        %v1959 = vpop.f32.mrb[0].mxu0
        %v1960 = vpop.f32.mrb[0].mxu0
        %v1961 = vadd.f32 0.0, %v1960
        %v1962 = vpop.f32.mrb[0].mxu0
        %1963 = vdwg.mxu0
        %v1964 = vpack.c.bf16 %v1953, %v1950
        %v1965 = vpack.c.bf16 %v1961, %v1958
        %v1968 = vunpack.c.l.b16 %v1964
        %v1969 = vunpack.c.h.b16 %v1964
        %v1970 = vunpack.c.l.b16 %v1965
        %v1971 = vunpack.c.h.b16 %v1965
        %v1972 = vpack.c.b16 %v1968, %v1968
        %v1973 = vpack.c.b16 %v1969, %v1969
        %v1974 = vpack.c.b16 %v1970, %v1970
        %v1975 = vpack.c.b16 %v1971, %v1971
        %v1977 = vsel %vm951, %v1802, 0
        %v1980 = vsel %vm951, %v1887, 0
        %1982 = vmatprep.subr.bf16.mxu0 0
        %1983 = vmatpush1.bf16.xpose.msra.mxu0 %v1980
        %1984 = vmatprep.subr.bf16.mxu0 0
        %1985 = vmatpush1.bf16.xpose.msra.mxu0 0
        %1986 = vmatprep.subr.bf16.mxu0 0
        %1987 = vmatpush1.bf16.xpose.msra.mxu0 0
        %1988 = vmatprep.subr.bf16.mxu0 0
        %1989 = vmatpush1.bf16.xpose.msra.mxu0 0
        %1990 = vmatprep.subr.bf16.mxu0 0
        %1991 = vmatpush1.bf16.xpose.msra.mxu0 0
        %1992 = vmatprep.subr.bf16.mxu0 0
        %1993 = vmatpush1.bf16.xpose.msra.mxu0 0
        %1994 = vmatprep.subr.bf16.mxu0 0
        %1995 = vmatpush1.bf16.xpose.msra.mxu0 0
        %1996 = vmatprep.subr.bf16.mxu0 0
        %1997 = vmatpush1.bf16.xpose.msra.mxu0 0
        %1998 = vmatprep.subr.bf16.mxu0 0
        %1999 = vmatpush1.bf16.xpose.msra.mxu0 0
        %2000 = vmatprep.subr.bf16.mxu0 0
        %2001 = vmatpush1.bf16.xpose.msra.mxu0 0
        %2002 = vmatprep.subr.bf16.mxu0 0
        %2003 = vmatpush1.bf16.xpose.msra.mxu0 0
        %2004 = vmatprep.subr.bf16.mxu0 0
        %2005 = vmatpush1.bf16.xpose.msra.mxu0 0
        %2006 = vmatprep.subr.bf16.mxu0 0
        %2007 = vmatpush1.bf16.xpose.msra.mxu0 0
        %2008 = vmatprep.subr.bf16.mxu0 0
        %2009 = vmatpush1.bf16.xpose.msra.mxu0 0
        %2010 = vmatprep.subr.bf16.mxu0 0
        %2011 = vmatpush1.bf16.xpose.msra.mxu0 0
        %2012 = vmatprep.subr.bf16.mxu0 0
        %2013 = vmatpush1.bf16.xpose.msra.mxu0 0
        %2014 = vmatprep.mubr.bf16.mxu0 0
        %2015 = vmatmul.mubr.bf16.gmra.mrb[0].mxu0 %v1977
        %v2016 = vpop.f32.mrb[0].mxu0
        %v2017 = vadd.f32 0.0, %v2016
        %v2018 = vpop.f32.mrb[0].mxu0
        %v2019 = vpop.f32.mrb[0].mxu0
        %v2020 = vpop.f32.mrb[0].mxu0
        %2021 = vdwg.mxu0
        %v2023 = vsel %vm951, %v1803, 0
        %v2026 = vsel %vm951, %v1888, 0
        %2028 = vmatprep.subr.bf16.mxu0 0
        %2029 = vmatpush1.bf16.xpose.msra.mxu0 %v2026
        %2030 = vmatprep.subr.bf16.mxu0 0
        %2031 = vmatpush1.bf16.xpose.msra.mxu0 0
        %2032 = vmatprep.subr.bf16.mxu0 0
        %2033 = vmatpush1.bf16.xpose.msra.mxu0 0
        %2034 = vmatprep.subr.bf16.mxu0 0
        %2035 = vmatpush1.bf16.xpose.msra.mxu0 0
        %2036 = vmatprep.subr.bf16.mxu0 0
        %2037 = vmatpush1.bf16.xpose.msra.mxu0 0
        %2038 = vmatprep.subr.bf16.mxu0 0
        %2039 = vmatpush1.bf16.xpose.msra.mxu0 0
        %2040 = vmatprep.subr.bf16.mxu0 0
        %2041 = vmatpush1.bf16.xpose.msra.mxu0 0
        %2042 = vmatprep.subr.bf16.mxu0 0
        %2043 = vmatpush1.bf16.xpose.msra.mxu0 0
        %2044 = vmatprep.subr.bf16.mxu0 0
        %2045 = vmatpush1.bf16.xpose.msra.mxu0 0
        %2046 = vmatprep.subr.bf16.mxu0 0
        %2047 = vmatpush1.bf16.xpose.msra.mxu0 0
        %2048 = vmatprep.subr.bf16.mxu0 0
        %2049 = vmatpush1.bf16.xpose.msra.mxu0 0
        %2050 = vmatprep.subr.bf16.mxu0 0
        %2051 = vmatpush1.bf16.xpose.msra.mxu0 0
        %2052 = vmatprep.subr.bf16.mxu0 0
        %2053 = vmatpush1.bf16.xpose.msra.mxu0 0
        %2054 = vmatprep.subr.bf16.mxu0 0
        %2055 = vmatpush1.bf16.xpose.msra.mxu0 0
        %2056 = vmatprep.subr.bf16.mxu0 0
        %2057 = vmatpush1.bf16.xpose.msra.mxu0 0
        %2058 = vmatprep.subr.bf16.mxu0 0
        %2059 = vmatpush1.bf16.xpose.msra.mxu0 0
        %2060 = vmatprep.mubr.bf16.mxu0 0
        %2061 = vmatmul.mubr.bf16.gmra.mrb[0].mxu0 %v2023
        %v2062 = vpop.f32.mrb[0].mxu0
        %v2063 = vadd.f32 0.0, %v2062
        %v2064 = vpop.f32.mrb[0].mxu0
        %v2065 = vpop.f32.mrb[0].mxu0
        %v2066 = vpop.f32.mrb[0].mxu0
        %2067 = vdwg.mxu0
        %v2069 = vsel %vm951, %v1804, 0
        %v2072 = vsel %vm951, %v1889, 0
        %2074 = vmatprep.subr.bf16.mxu0 0
        %2075 = vmatpush1.bf16.xpose.msra.mxu0 %v2072
        %2076 = vmatprep.subr.bf16.mxu0 0
        %2077 = vmatpush1.bf16.xpose.msra.mxu0 0
        %2078 = vmatprep.subr.bf16.mxu0 0
        %2079 = vmatpush1.bf16.xpose.msra.mxu0 0
        %2080 = vmatprep.subr.bf16.mxu0 0
        %2081 = vmatpush1.bf16.xpose.msra.mxu0 0
        %2082 = vmatprep.subr.bf16.mxu0 0
        %2083 = vmatpush1.bf16.xpose.msra.mxu0 0
        %2084 = vmatprep.subr.bf16.mxu0 0
        %2085 = vmatpush1.bf16.xpose.msra.mxu0 0
        %2086 = vmatprep.subr.bf16.mxu0 0
        %2087 = vmatpush1.bf16.xpose.msra.mxu0 0
        %2088 = vmatprep.subr.bf16.mxu0 0
        %2089 = vmatpush1.bf16.xpose.msra.mxu0 0
        %2090 = vmatprep.subr.bf16.mxu0 0
        %2091 = vmatpush1.bf16.xpose.msra.mxu0 0
        %2092 = vmatprep.subr.bf16.mxu0 0
        %2093 = vmatpush1.bf16.xpose.msra.mxu0 0
        %2094 = vmatprep.subr.bf16.mxu0 0
        %2095 = vmatpush1.bf16.xpose.msra.mxu0 0
        %2096 = vmatprep.subr.bf16.mxu0 0
        %2097 = vmatpush1.bf16.xpose.msra.mxu0 0
        %2098 = vmatprep.subr.bf16.mxu0 0
        %2099 = vmatpush1.bf16.xpose.msra.mxu0 0
        %2100 = vmatprep.subr.bf16.mxu0 0
        %2101 = vmatpush1.bf16.xpose.msra.mxu0 0
        %2102 = vmatprep.subr.bf16.mxu0 0
        %2103 = vmatpush1.bf16.xpose.msra.mxu0 0
        %2104 = vmatprep.subr.bf16.mxu0 0
        %2105 = vmatpush1.bf16.xpose.msra.mxu0 0
        %2106 = vmatprep.mubr.bf16.mxu0 0
        %2107 = vmatmul.mubr.bf16.gmra.mrb[0].mxu0 %v2069
        %v2108 = vpop.f32.mrb[0].mxu0
        %v2109 = vadd.f32 0.0, %v2108
        %v2110 = vpop.f32.mrb[0].mxu0
        %v2111 = vpop.f32.mrb[0].mxu0
        %v2112 = vpop.f32.mrb[0].mxu0
        %2113 = vdwg.mxu0
        %v2115 = vsel %vm951, %v1805, 0
        %v2118 = vsel %vm951, %v1890, 0
        %2120 = vmatprep.subr.bf16.mxu0 0
        %2121 = vmatpush1.bf16.xpose.msra.mxu0 %v2118
        %2122 = vmatprep.subr.bf16.mxu0 0
        %2123 = vmatpush1.bf16.xpose.msra.mxu0 0
        %2124 = vmatprep.subr.bf16.mxu0 0
        %2125 = vmatpush1.bf16.xpose.msra.mxu0 0
        %2126 = vmatprep.subr.bf16.mxu0 0
        %2127 = vmatpush1.bf16.xpose.msra.mxu0 0
        %2128 = vmatprep.subr.bf16.mxu0 0
        %2129 = vmatpush1.bf16.xpose.msra.mxu0 0
        %2130 = vmatprep.subr.bf16.mxu0 0
        %2131 = vmatpush1.bf16.xpose.msra.mxu0 0
        %2132 = vmatprep.subr.bf16.mxu0 0
        %2133 = vmatpush1.bf16.xpose.msra.mxu0 0
        %2134 = vmatprep.subr.bf16.mxu0 0
        %2135 = vmatpush1.bf16.xpose.msra.mxu0 0
        %2136 = vmatprep.subr.bf16.mxu0 0
        %2137 = vmatpush1.bf16.xpose.msra.mxu0 0
        %2138 = vmatprep.subr.bf16.mxu0 0
        %2139 = vmatpush1.bf16.xpose.msra.mxu0 0
        %2140 = vmatprep.subr.bf16.mxu0 0
        %2141 = vmatpush1.bf16.xpose.msra.mxu0 0
        %2142 = vmatprep.subr.bf16.mxu0 0
        %2143 = vmatpush1.bf16.xpose.msra.mxu0 0
        %2144 = vmatprep.subr.bf16.mxu0 0
        %2145 = vmatpush1.bf16.xpose.msra.mxu0 0
        %2146 = vmatprep.subr.bf16.mxu0 0
        %2147 = vmatpush1.bf16.xpose.msra.mxu0 0
        %2148 = vmatprep.subr.bf16.mxu0 0
        %2149 = vmatpush1.bf16.xpose.msra.mxu0 0
        %2150 = vmatprep.subr.bf16.mxu0 0
        %2151 = vmatpush1.bf16.xpose.msra.mxu0 0
        %2152 = vmatprep.mubr.bf16.mxu0 0
        %2153 = vmatmul.mubr.bf16.gmra.mrb[0].mxu0 %v2115
        %v2154 = vpop.f32.mrb[0].mxu0
        %v2155 = vadd.f32 0.0, %v2154
        %v2156 = vpop.f32.mrb[0].mxu0
        %v2157 = vpop.f32.mrb[0].mxu0
        %v2158 = vpop.f32.mrb[0].mxu0
        %2159 = vdwg.mxu0
        %v2160 = vsel %vm934, 1, 0
        %vm2161 = vcmp.eq.s32.totalorder %v2160, 1
        %v2162 = vsel %vm2161, %v2017, -1e+20
        %v2163 = vsel %vm2161, %v2063, -1e+20
        %v2164 = vsel %vm2161, %v2109, -1e+20
        %v2165 = vsel %vm2161, %v2155, -1e+20
        %v2166 = vsel %vm951, %v2162, -inf
        %2167 = vmax.xlane.f32.xlu0 %v2166
        %v2168 = vpop.xlane.xlu0 %2167
        %v2169 = vsel %vm951, %v2163, -inf
        %2170 = vmax.xlane.f32.xlu0 %v2169
        %v2171 = vpop.xlane.xlu0 %2170
        %v2172 = vsel %vm951, %v2164, -inf
        %2173 = vmax.xlane.f32.xlu0 %v2172
        %v2174 = vpop.xlane.xlu0 %2173
        %v2175 = vsel %vm951, %v2165, -inf
        %2176 = vmax.xlane.f32.xlu0 %v2175
        %v2177 = vpop.xlane.xlu0 %2176
        %v2178 = vsub.f32 %v2162, %v2168
        %v2179 = vsub.f32 %v2163, %v2171
        %v2180 = vsub.f32 %v2164, %v2174
        %v2181 = vsub.f32 %v2165, %v2177
        %v2182 = vmul.f32 %v2178, 1.442695
        %v2183 = vpow.pop %v2182
        %v2184 = vmul.f32 %v2179, 1.442695
        %v2185 = vpow.pop %v2184
        %v2186 = vmul.f32 %v2180, 1.442695
        %v2187 = vpow.pop %v2186
        %v2188 = vmul.f32 %v2181, 1.442695
        %v2189 = vpow.pop %v2188
        %v2190 = vsel %vm951, %v2183, 0.0
        %2191 = vadd.xlane.f32.xlu0 %v2190
        %v2192 = vpop.xlane.xlu0 %2191
        %v2193 = vsel %vm951, %v2185, 0.0
        %2194 = vadd.xlane.f32.xlu0 %v2193
        %v2195 = vpop.xlane.xlu0 %2194
        %v2196 = vsel %vm951, %v2187, 0.0
        %2197 = vadd.xlane.f32.xlu0 %v2196
        %v2198 = vpop.xlane.xlu0 %2197
        %v2199 = vsel %vm951, %v2189, 0.0
        %2200 = vadd.xlane.f32.xlu0 %v2199
        %v2201 = vpop.xlane.xlu0 %2200
        %v2202 = vrcp.pop %v2192
        %v2203 = vrcp.pop %v2195
        %v2204 = vrcp.pop %v2198
        %v2205 = vrcp.pop %v2201
        %v2206 = vmul.f32 %v2183, %v2202
        %v2207 = vmul.f32 %v2185, %v2203
        %v2208 = vmul.f32 %v2187, %v2204
        %v2209 = vmul.f32 %v2189, %v2205
        %v2210 = vpack.c.bf16 %v2206, %v2206
        %v2211 = vpack.c.bf16 %v2207, %v2207
        %v2212 = vpack.c.bf16 %v2208, %v2208
        %v2213 = vpack.c.bf16 %v2209, %v2209
        %v2215 = vsel %vm951, %v2210, 0
        %v2218 = vsel %vm958, %v1972, 0
        %2220 = vmatprep.subr.bf16.mxu0 0
        %2221 = vmatpush1.bf16.msra.mxu0 %v2218
        %2222 = vmatprep.subr.bf16.mxu0 0
        %2223 = vmatpush1.bf16.msra.mxu0 0
        %2224 = vmatprep.subr.bf16.mxu0 0
        %2225 = vmatpush1.bf16.msra.mxu0 0
        %2226 = vmatprep.subr.bf16.mxu0 0
        %2227 = vmatpush1.bf16.msra.mxu0 0
        %2228 = vmatprep.subr.bf16.mxu0 0
        %2229 = vmatpush1.bf16.msra.mxu0 0
        %2230 = vmatprep.subr.bf16.mxu0 0
        %2231 = vmatpush1.bf16.msra.mxu0 0
        %2232 = vmatprep.subr.bf16.mxu0 0
        %2233 = vmatpush1.bf16.msra.mxu0 0
        %2234 = vmatprep.subr.bf16.mxu0 0
        %2235 = vmatpush1.bf16.msra.mxu0 0
        %2236 = vmatprep.subr.bf16.mxu0 0
        %2237 = vmatpush1.bf16.msra.mxu0 0
        %2238 = vmatprep.subr.bf16.mxu0 0
        %2239 = vmatpush1.bf16.msra.mxu0 0
        %2240 = vmatprep.subr.bf16.mxu0 0
        %2241 = vmatpush1.bf16.msra.mxu0 0
        %2242 = vmatprep.subr.bf16.mxu0 0
        %2243 = vmatpush1.bf16.msra.mxu0 0
        %2244 = vmatprep.subr.bf16.mxu0 0
        %2245 = vmatpush1.bf16.msra.mxu0 0
        %2246 = vmatprep.subr.bf16.mxu0 0
        %2247 = vmatpush1.bf16.msra.mxu0 0
        %2248 = vmatprep.subr.bf16.mxu0 0
        %2249 = vmatpush1.bf16.msra.mxu0 0
        %2250 = vmatprep.subr.bf16.mxu0 0
        %2251 = vmatpush1.bf16.msra.mxu0 0
        %2252 = vmatprep.mubr.bf16.mxu0 0
        %2253 = vmatmul.mubr.bf16.gmra.mrb[0].mxu0 %v2215
        %v2254 = vpop.f32.mrb[0].mxu0
        %v2255 = vadd.f32 0.0, %v2254
        %v2256 = vpop.f32.mrb[0].mxu0
        %v2257 = vpop.f32.mrb[0].mxu0
        %v2258 = vpop.f32.mrb[0].mxu0
        %2259 = vdwg.mxu0
        %v2261 = vsel %vm951, %v2211, 0
        %v2264 = vsel %vm958, %v1973, 0
        %2266 = vmatprep.subr.bf16.mxu0 0
        %2267 = vmatpush1.bf16.msra.mxu0 %v2264
        %2268 = vmatprep.subr.bf16.mxu0 0
        %2269 = vmatpush1.bf16.msra.mxu0 0
        %2270 = vmatprep.subr.bf16.mxu0 0
        %2271 = vmatpush1.bf16.msra.mxu0 0
        %2272 = vmatprep.subr.bf16.mxu0 0
        %2273 = vmatpush1.bf16.msra.mxu0 0
        %2274 = vmatprep.subr.bf16.mxu0 0
        %2275 = vmatpush1.bf16.msra.mxu0 0
        %2276 = vmatprep.subr.bf16.mxu0 0
        %2277 = vmatpush1.bf16.msra.mxu0 0
        %2278 = vmatprep.subr.bf16.mxu0 0
        %2279 = vmatpush1.bf16.msra.mxu0 0
        %2280 = vmatprep.subr.bf16.mxu0 0
        %2281 = vmatpush1.bf16.msra.mxu0 0
        %2282 = vmatprep.subr.bf16.mxu0 0
        %2283 = vmatpush1.bf16.msra.mxu0 0
        %2284 = vmatprep.subr.bf16.mxu0 0
        %2285 = vmatpush1.bf16.msra.mxu0 0
        %2286 = vmatprep.subr.bf16.mxu0 0
        %2287 = vmatpush1.bf16.msra.mxu0 0
        %2288 = vmatprep.subr.bf16.mxu0 0
        %2289 = vmatpush1.bf16.msra.mxu0 0
        %2290 = vmatprep.subr.bf16.mxu0 0
        %2291 = vmatpush1.bf16.msra.mxu0 0
        %2292 = vmatprep.subr.bf16.mxu0 0
        %2293 = vmatpush1.bf16.msra.mxu0 0
        %2294 = vmatprep.subr.bf16.mxu0 0
        %2295 = vmatpush1.bf16.msra.mxu0 0
        %2296 = vmatprep.subr.bf16.mxu0 0
        %2297 = vmatpush1.bf16.msra.mxu0 0
        %2298 = vmatprep.mubr.bf16.mxu0 0
        %2299 = vmatmul.mubr.bf16.gmra.mrb[0].mxu0 %v2261
        %v2300 = vpop.f32.mrb[0].mxu0
        %v2301 = vadd.f32 0.0, %v2300
        %v2302 = vpop.f32.mrb[0].mxu0
        %v2303 = vpop.f32.mrb[0].mxu0
        %v2304 = vpop.f32.mrb[0].mxu0
        %2305 = vdwg.mxu0
        %v2307 = vsel %vm951, %v2212, 0
        %v2310 = vsel %vm958, %v1974, 0
        %2312 = vmatprep.subr.bf16.mxu0 0
        %2313 = vmatpush1.bf16.msra.mxu0 %v2310
        %2314 = vmatprep.subr.bf16.mxu0 0
        %2315 = vmatpush1.bf16.msra.mxu0 0
        %2316 = vmatprep.subr.bf16.mxu0 0
        %2317 = vmatpush1.bf16.msra.mxu0 0
        %2318 = vmatprep.subr.bf16.mxu0 0
        %2319 = vmatpush1.bf16.msra.mxu0 0
        %2320 = vmatprep.subr.bf16.mxu0 0
        %2321 = vmatpush1.bf16.msra.mxu0 0
        %2322 = vmatprep.subr.bf16.mxu0 0
        %2323 = vmatpush1.bf16.msra.mxu0 0
        %2324 = vmatprep.subr.bf16.mxu0 0
        %2325 = vmatpush1.bf16.msra.mxu0 0
        %2326 = vmatprep.subr.bf16.mxu0 0
        %2327 = vmatpush1.bf16.msra.mxu0 0
        %2328 = vmatprep.subr.bf16.mxu0 0
        %2329 = vmatpush1.bf16.msra.mxu0 0
        %2330 = vmatprep.subr.bf16.mxu0 0
        %2331 = vmatpush1.bf16.msra.mxu0 0
        %2332 = vmatprep.subr.bf16.mxu0 0
        %2333 = vmatpush1.bf16.msra.mxu0 0
        %2334 = vmatprep.subr.bf16.mxu0 0
        %2335 = vmatpush1.bf16.msra.mxu0 0
        %2336 = vmatprep.subr.bf16.mxu0 0
        %2337 = vmatpush1.bf16.msra.mxu0 0
        %2338 = vmatprep.subr.bf16.mxu0 0
        %2339 = vmatpush1.bf16.msra.mxu0 0
        %2340 = vmatprep.subr.bf16.mxu0 0
        %2341 = vmatpush1.bf16.msra.mxu0 0
        %2342 = vmatprep.subr.bf16.mxu0 0
        %2343 = vmatpush1.bf16.msra.mxu0 0
        %2344 = vmatprep.mubr.bf16.mxu0 0
        %2345 = vmatmul.mubr.bf16.gmra.mrb[0].mxu0 %v2307
        %v2346 = vpop.f32.mrb[0].mxu0
        %v2347 = vadd.f32 0.0, %v2346
        %v2348 = vpop.f32.mrb[0].mxu0
        %v2349 = vpop.f32.mrb[0].mxu0
        %v2350 = vpop.f32.mrb[0].mxu0
        %2351 = vdwg.mxu0
        %v2353 = vsel %vm951, %v2213, 0
        %v2356 = vsel %vm958, %v1975, 0
        %2358 = vmatprep.subr.bf16.mxu0 0
        %2359 = vmatpush1.bf16.msra.mxu0 %v2356
        %2360 = vmatprep.subr.bf16.mxu0 0
        %2361 = vmatpush1.bf16.msra.mxu0 0
        %2362 = vmatprep.subr.bf16.mxu0 0
        %2363 = vmatpush1.bf16.msra.mxu0 0
        %2364 = vmatprep.subr.bf16.mxu0 0
        %2365 = vmatpush1.bf16.msra.mxu0 0
        %2366 = vmatprep.subr.bf16.mxu0 0
        %2367 = vmatpush1.bf16.msra.mxu0 0
        %2368 = vmatprep.subr.bf16.mxu0 0
        %2369 = vmatpush1.bf16.msra.mxu0 0
        %2370 = vmatprep.subr.bf16.mxu0 0
        %2371 = vmatpush1.bf16.msra.mxu0 0
        %2372 = vmatprep.subr.bf16.mxu0 0
        %2373 = vmatpush1.bf16.msra.mxu0 0
        %2374 = vmatprep.subr.bf16.mxu0 0
        %2375 = vmatpush1.bf16.msra.mxu0 0
        %2376 = vmatprep.subr.bf16.mxu0 0
        %2377 = vmatpush1.bf16.msra.mxu0 0
        %2378 = vmatprep.subr.bf16.mxu0 0
        %2379 = vmatpush1.bf16.msra.mxu0 0
        %2380 = vmatprep.subr.bf16.mxu0 0
        %2381 = vmatpush1.bf16.msra.mxu0 0
        %2382 = vmatprep.subr.bf16.mxu0 0
        %2383 = vmatpush1.bf16.msra.mxu0 0
        %2384 = vmatprep.subr.bf16.mxu0 0
        %2385 = vmatpush1.bf16.msra.mxu0 0
        %2386 = vmatprep.subr.bf16.mxu0 0
        %2387 = vmatpush1.bf16.msra.mxu0 0
        %2388 = vmatprep.subr.bf16.mxu0 0
        %2389 = vmatpush1.bf16.msra.mxu0 0
        %2390 = vmatprep.mubr.bf16.mxu0 0
        %2391 = vmatmul.mubr.bf16.gmra.mrb[0].mxu0 %v2353
        %v2392 = vpop.f32.mrb[0].mxu0
        %v2393 = vadd.f32 0.0, %v2392
        %v2394 = vpop.f32.mrb[0].mxu0
        %v2395 = vpop.f32.mrb[0].mxu0
        %v2396 = vpop.f32.mrb[0].mxu0
        %2397 = vdwg.mxu0
        %v2398 = vld [vmem:[%s14] sm:$0xf]
        %v2399 = vld [vmem:[%s14 + $0x4] sm:$0xf]
        %v2400 = vld [vmem:[%s14 + $0x8] sm:$0xf]
        %v2401 = vld [vmem:[%s14 + $0xc] sm:$0xf]
        %v2402 = vld [vmem:[#allocation20] sm:$0x1]
        %v2403 = vpack.c.bf16 %v2255, %v2255
        %v2404 = vpack.c.bf16 %v2301, %v2301
        %v2405 = vpack.c.bf16 %v2347, %v2347
        %v2406 = vpack.c.bf16 %v2393, %v2393
        %v2408 = vsel %vm951, %v2403, 0
        %v2411 = vsel %vm958, %v2398, 0
        %2413 = vmatprep.subr.bf16.mxu0 0
        %2414 = vmatpush1.bf16.msra.mxu0 %v2411
        %2415 = vmatprep.subr.bf16.mxu0 0
        %2416 = vmatpush1.bf16.msra.mxu0 0
        %2417 = vmatprep.subr.bf16.mxu0 0
        %2418 = vmatpush1.bf16.msra.mxu0 0
        %2419 = vmatprep.subr.bf16.mxu0 0
        %2420 = vmatpush1.bf16.msra.mxu0 0
        %2421 = vmatprep.subr.bf16.mxu0 0
        %2422 = vmatpush1.bf16.msra.mxu0 0
        %2423 = vmatprep.subr.bf16.mxu0 0
        %2424 = vmatpush1.bf16.msra.mxu0 0
        %2425 = vmatprep.subr.bf16.mxu0 0
        %2426 = vmatpush1.bf16.msra.mxu0 0
        %2427 = vmatprep.subr.bf16.mxu0 0
        %2428 = vmatpush1.bf16.msra.mxu0 0
        %2429 = vmatprep.subr.bf16.mxu0 0
        %2430 = vmatpush1.bf16.msra.mxu0 0
        %2431 = vmatprep.subr.bf16.mxu0 0
        %2432 = vmatpush1.bf16.msra.mxu0 0
        %2433 = vmatprep.subr.bf16.mxu0 0
        %2434 = vmatpush1.bf16.msra.mxu0 0
        %2435 = vmatprep.subr.bf16.mxu0 0
        %2436 = vmatpush1.bf16.msra.mxu0 0
        %2437 = vmatprep.subr.bf16.mxu0 0
        %2438 = vmatpush1.bf16.msra.mxu0 0
        %2439 = vmatprep.subr.bf16.mxu0 0
        %2440 = vmatpush1.bf16.msra.mxu0 0
        %2441 = vmatprep.subr.bf16.mxu0 0
        %2442 = vmatpush1.bf16.msra.mxu0 0
        %2443 = vmatprep.subr.bf16.mxu0 0
        %2444 = vmatpush1.bf16.msra.mxu0 0
        %2445 = vmatprep.mubr.bf16.mxu0 0
        %2446 = vmatmul.mubr.bf16.gmra.mrb[0].mxu0 %v2408
        %v2447 = vpop.f32.mrb[0].mxu0
        %v2448 = vadd.f32 0.0, %v2447
        %v2449 = vpop.f32.mrb[0].mxu0
        %v2450 = vpop.f32.mrb[0].mxu0
        %v2451 = vpop.f32.mrb[0].mxu0
        %2452 = vdwg.mxu0
        %v2454 = vsel %vm951, %v2404, 0
        %v2457 = vsel %vm958, %v2399, 0
        %2459 = vmatprep.subr.bf16.mxu0 0
        %2460 = vmatpush1.bf16.msra.mxu0 %v2457
        %2461 = vmatprep.subr.bf16.mxu0 0
        %2462 = vmatpush1.bf16.msra.mxu0 0
        %2463 = vmatprep.subr.bf16.mxu0 0
        %2464 = vmatpush1.bf16.msra.mxu0 0
        %2465 = vmatprep.subr.bf16.mxu0 0
        %2466 = vmatpush1.bf16.msra.mxu0 0
        %2467 = vmatprep.subr.bf16.mxu0 0
        %2468 = vmatpush1.bf16.msra.mxu0 0
        %2469 = vmatprep.subr.bf16.mxu0 0
        %2470 = vmatpush1.bf16.msra.mxu0 0
        %2471 = vmatprep.subr.bf16.mxu0 0
        %2472 = vmatpush1.bf16.msra.mxu0 0
        %2473 = vmatprep.subr.bf16.mxu0 0
        %2474 = vmatpush1.bf16.msra.mxu0 0
        %2475 = vmatprep.subr.bf16.mxu0 0
        %2476 = vmatpush1.bf16.msra.mxu0 0
        %2477 = vmatprep.subr.bf16.mxu0 0
        %2478 = vmatpush1.bf16.msra.mxu0 0
        %2479 = vmatprep.subr.bf16.mxu0 0
        %2480 = vmatpush1.bf16.msra.mxu0 0
        %2481 = vmatprep.subr.bf16.mxu0 0
        %2482 = vmatpush1.bf16.msra.mxu0 0
        %2483 = vmatprep.subr.bf16.mxu0 0
        %2484 = vmatpush1.bf16.msra.mxu0 0
        %2485 = vmatprep.subr.bf16.mxu0 0
        %2486 = vmatpush1.bf16.msra.mxu0 0
        %2487 = vmatprep.subr.bf16.mxu0 0
        %2488 = vmatpush1.bf16.msra.mxu0 0
        %2489 = vmatprep.subr.bf16.mxu0 0
        %2490 = vmatpush1.bf16.msra.mxu0 0
        %2491 = vmatprep.mubr.bf16.mxu0 0
        %2492 = vmatmul.mubr.bf16.gmra.mrb[0].mxu0 %v2454
        %v2493 = vpop.f32.mrb[0].mxu0
        %v2494 = vadd.f32 0.0, %v2493
        %v2495 = vpop.f32.mrb[0].mxu0
        %v2496 = vpop.f32.mrb[0].mxu0
        %v2497 = vpop.f32.mrb[0].mxu0
        %2498 = vdwg.mxu0
        %v2500 = vsel %vm951, %v2405, 0
        %v2503 = vsel %vm958, %v2400, 0
        %2505 = vmatprep.subr.bf16.mxu0 0
        %2506 = vmatpush1.bf16.msra.mxu0 %v2503
        %2507 = vmatprep.subr.bf16.mxu0 0
        %2508 = vmatpush1.bf16.msra.mxu0 0
        %2509 = vmatprep.subr.bf16.mxu0 0
        %2510 = vmatpush1.bf16.msra.mxu0 0
        %2511 = vmatprep.subr.bf16.mxu0 0
        %2512 = vmatpush1.bf16.msra.mxu0 0
        %2513 = vmatprep.subr.bf16.mxu0 0
        %2514 = vmatpush1.bf16.msra.mxu0 0
        %2515 = vmatprep.subr.bf16.mxu0 0
        %2516 = vmatpush1.bf16.msra.mxu0 0
        %2517 = vmatprep.subr.bf16.mxu0 0
        %2518 = vmatpush1.bf16.msra.mxu0 0
        %2519 = vmatprep.subr.bf16.mxu0 0
        %2520 = vmatpush1.bf16.msra.mxu0 0
        %2521 = vmatprep.subr.bf16.mxu0 0
        %2522 = vmatpush1.bf16.msra.mxu0 0
        %2523 = vmatprep.subr.bf16.mxu0 0
        %2524 = vmatpush1.bf16.msra.mxu0 0
        %2525 = vmatprep.subr.bf16.mxu0 0
        %2526 = vmatpush1.bf16.msra.mxu0 0
        %2527 = vmatprep.subr.bf16.mxu0 0
        %2528 = vmatpush1.bf16.msra.mxu0 0
        %2529 = vmatprep.subr.bf16.mxu0 0
        %2530 = vmatpush1.bf16.msra.mxu0 0
        %2531 = vmatprep.subr.bf16.mxu0 0
        %2532 = vmatpush1.bf16.msra.mxu0 0
        %2533 = vmatprep.subr.bf16.mxu0 0
        %2534 = vmatpush1.bf16.msra.mxu0 0
        %2535 = vmatprep.subr.bf16.mxu0 0
        %2536 = vmatpush1.bf16.msra.mxu0 0
        %2537 = vmatprep.mubr.bf16.mxu0 0
        %2538 = vmatmul.mubr.bf16.gmra.mrb[0].mxu0 %v2500
        %v2539 = vpop.f32.mrb[0].mxu0
        %v2540 = vadd.f32 0.0, %v2539
        %v2541 = vpop.f32.mrb[0].mxu0
        %v2542 = vpop.f32.mrb[0].mxu0
        %v2543 = vpop.f32.mrb[0].mxu0
        %2544 = vdwg.mxu0
        %v2546 = vsel %vm951, %v2406, 0
        %v2549 = vsel %vm958, %v2401, 0
        %2551 = vmatprep.subr.bf16.mxu0 0
        %2552 = vmatpush1.bf16.msra.mxu0 %v2549
        %2553 = vmatprep.subr.bf16.mxu0 0
        %2554 = vmatpush1.bf16.msra.mxu0 0
        %2555 = vmatprep.subr.bf16.mxu0 0
        %2556 = vmatpush1.bf16.msra.mxu0 0
        %2557 = vmatprep.subr.bf16.mxu0 0
        %2558 = vmatpush1.bf16.msra.mxu0 0
        %2559 = vmatprep.subr.bf16.mxu0 0
        %2560 = vmatpush1.bf16.msra.mxu0 0
        %2561 = vmatprep.subr.bf16.mxu0 0
        %2562 = vmatpush1.bf16.msra.mxu0 0
        %2563 = vmatprep.subr.bf16.mxu0 0
        %2564 = vmatpush1.bf16.msra.mxu0 0
        %2565 = vmatprep.subr.bf16.mxu0 0
        %2566 = vmatpush1.bf16.msra.mxu0 0
        %2567 = vmatprep.subr.bf16.mxu0 0
        %2568 = vmatpush1.bf16.msra.mxu0 0
        %2569 = vmatprep.subr.bf16.mxu0 0
        %2570 = vmatpush1.bf16.msra.mxu0 0
        %2571 = vmatprep.subr.bf16.mxu0 0
        %2572 = vmatpush1.bf16.msra.mxu0 0
        %2573 = vmatprep.subr.bf16.mxu0 0
        %2574 = vmatpush1.bf16.msra.mxu0 0
        %2575 = vmatprep.subr.bf16.mxu0 0
        %2576 = vmatpush1.bf16.msra.mxu0 0
        %2577 = vmatprep.subr.bf16.mxu0 0
        %2578 = vmatpush1.bf16.msra.mxu0 0
        %2579 = vmatprep.subr.bf16.mxu0 0
        %2580 = vmatpush1.bf16.msra.mxu0 0
        %2581 = vmatprep.subr.bf16.mxu0 0
        %2582 = vmatpush1.bf16.msra.mxu0 0
        %2583 = vmatprep.mubr.bf16.mxu0 0
        %2584 = vmatmul.mubr.bf16.gmra.mrb[0].mxu0 %v2546
        %v2585 = vpop.f32.mrb[0].mxu0
        %v2586 = vadd.f32 0.0, %v2585
        %v2587 = vpop.f32.mrb[0].mxu0
        %v2588 = vpop.f32.mrb[0].mxu0
        %v2589 = vpop.f32.mrb[0].mxu0
        %2590 = vdwg.mxu0
        %v2591 = vsel %vm1670, %v2448, 0.0
        %v2592 = vsel %vm1670, %v2494, 0.0
        %v2593 = vadd.f32 %v2591, %v2592
        %v2594 = vsel %vm1670, %v2540, 0.0
        %v2595 = vadd.f32 %v2593, %v2594
        %v2596 = vsel %vm1670, %v2586, 0.0
        %v2597 = vadd.f32 %v2595, %v2596
        %v2599 = vlaneseq
        %v2600 = vshrl.u32 %v2599, 7
        %v2601 = vsub.s32 0, %v2600
        %v2602 = vrot.slane %v2402, %v2601
        %v2604 = vadd.f32 %v2597, %v2602
        %v2605 = vadd.f32 %v2604, %v1716
        %v2606 = vld [vmem:[#allocation22] sm:$0x1]
        %v2607 = vld [vmem:[#allocation23] sm:$0x1]
        %v2608 = vsel %vm1670, %v2605, 0.0
        %2609 = vadd.xlane.f32.xlu0 %v2608
        %v2610 = vpop.xlane.xlu0 %2609
        %v2611 = vmul.f32 %v2610, %v1690
        %v2612 = vsub.f32 %v2605, %v2611
        %v2613 = vmul.f32 %v2612, %v2612
        %v2614 = vsel %vm1670, %v2613, 0.0
        %2615 = vadd.xlane.f32.xlu0 %v2614
        %v2616 = vpop.xlane.xlu0 %2615
        %v2617 = vmul.f32 %v2616, %v1690
        %v2618 = vadd.f32 %v2617, 1e-05
        %v2619 = vrsqrt.pop %v2618
        %v2620 = vmul.f32 %v2612, %v2619
        %v2622 = vlaneseq
        %v2623 = vshrl.u32 %v2622, 7
        %v2624 = vsub.s32 0, %v2623
        %v2625 = vrot.slane %v2606, %v2624
        %v2627 = vmul.f32 %v2620, %v2625
        %v2629 = vlaneseq
        %v2630 = vshrl.u32 %v2629, 7
        %v2631 = vsub.s32 0, %v2630
        %v2632 = vrot.slane %v2607, %v2631
        %v2634 = vadd.f32 %v2627, %v2632
        %v2635 = vpack.c.bf16 %v2634, %v2634
        %v2636 = vld [vmem:[%s20] sm:$0xf]
        %v2637 = vld [vmem:[%s20 + $0x4] sm:$0xf]
        %v2638 = vld [vmem:[%s20 + $0x8] sm:$0xf]
        %v2639 = vld [vmem:[%s20 + $0xc] sm:$0xf]
        %v2640 = vld [vmem:[%s21] sm:$0x1]
        %v2642 = vlaneseq
        %v2643 = vshrl.u32 %v2642, 7
        %v2644 = vsub.s32 0, %v2643
        %v2645 = vrot.slane %v2640, %v2644
        %v2651 = vunpack.c.l.b16 %v2636
        %v2652 = vunpack.c.l.b16 %v2637
        %v2653 = vunpack.c.l.b16 %v2638
        %v2654 = vunpack.c.l.b16 %v2639
        %v2655 = vpack.c.b16 %v2652, %v2651
        %v2656 = vpack.c.b16 %v2654, %v2653
        %v2660 = vsel %vm1670, %v2635, 0
        %2662 = vmatprep.subr.bf16.mxu0 0
        %2663 = vmatpush1.bf16.msra.mxu0 %v2655
        %2664 = vmatprep.subr.bf16.mxu0 0
        %2665 = vmatpush1.bf16.msra.mxu0 %v2656
        %2666 = vmatprep.subr.bf16.mxu0 0
        %2667 = vmatpush1.bf16.msra.mxu0 0
        %2668 = vmatprep.subr.bf16.mxu0 0
        %2669 = vmatpush1.bf16.msra.mxu0 0
        %2670 = vmatprep.subr.bf16.mxu0 0
        %2671 = vmatpush1.bf16.msra.mxu0 0
        %2672 = vmatprep.subr.bf16.mxu0 0
        %2673 = vmatpush1.bf16.msra.mxu0 0
        %2674 = vmatprep.subr.bf16.mxu0 0
        %2675 = vmatpush1.bf16.msra.mxu0 0
        %2676 = vmatprep.subr.bf16.mxu0 0
        %2677 = vmatpush1.bf16.msra.mxu0 0
        %2678 = vmatprep.subr.bf16.mxu0 0
        %2679 = vmatpush1.bf16.msra.mxu0 0
        %2680 = vmatprep.subr.bf16.mxu0 0
        %2681 = vmatpush1.bf16.msra.mxu0 0
        %2682 = vmatprep.subr.bf16.mxu0 0
        %2683 = vmatpush1.bf16.msra.mxu0 0
        %2684 = vmatprep.subr.bf16.mxu0 0
        %2685 = vmatpush1.bf16.msra.mxu0 0
        %2686 = vmatprep.subr.bf16.mxu0 0
        %2687 = vmatpush1.bf16.msra.mxu0 0
        %2688 = vmatprep.subr.bf16.mxu0 0
        %2689 = vmatpush1.bf16.msra.mxu0 0
        %2690 = vmatprep.subr.bf16.mxu0 0
        %2691 = vmatpush1.bf16.msra.mxu0 0
        %2692 = vmatprep.subr.bf16.mxu0 0
        %2693 = vmatpush1.bf16.msra.mxu0 0
        %2694 = vmatprep.mubr.bf16.mxu0 0
        %2695 = vmatmul.mubr.bf16.gmra.mrb[0].mxu0 %v2660
        %v2696 = vpop.f32.mrb[0].mxu0
        %v2697 = vadd.f32 %v2645, %v2696
        %v2698 = vpop.f32.mrb[0].mxu0
        %v2699 = vpop.f32.mrb[0].mxu0
        %v2700 = vpop.f32.mrb[0].mxu0
        %2701 = vdwg.mxu0
        %v2702 = vmax.f32 %v2697, 0.0
        %v2703 = vpack.c.bf16 %v2702, %v2702
        %v2704 = vld [vmem:[%s22] sm:$0xf]
        %v2705 = vld [vmem:[%s22 + $0x4] sm:$0xf]
        %v2706 = vld [vmem:[%s22 + $0x8] sm:$0xf]
        %v2707 = vld [vmem:[%s22 + $0xc] sm:$0xf]
        %v2708 = vld [vmem:[%s22 + $0x10] sm:$0xf]
        %v2709 = vld [vmem:[%s22 + $0x14] sm:$0xf]
        %v2710 = vld [vmem:[%s22 + $0x18] sm:$0xf]
        %v2711 = vld [vmem:[%s22 + $0x1c] sm:$0xf]
        %v2712 = vld [vmem:[%s22 + $0x20] sm:$0xf]
        %v2713 = vld [vmem:[%s22 + $0x24] sm:$0xf]
        %v2714 = vld [vmem:[%s22 + $0x28] sm:$0xf]
        %v2715 = vld [vmem:[%s22 + $0x2c] sm:$0xf]
        %v2716 = vld [vmem:[%s22 + $0x30] sm:$0xf]
        %v2717 = vld [vmem:[%s22 + $0x34] sm:$0xf]
        %v2718 = vld [vmem:[%s22 + $0x38] sm:$0xf]
        %v2719 = vld [vmem:[%s22 + $0x3c] sm:$0xf]
        %v2720 = vld [vmem:[%s23] sm:$0x1]
        %v2722 = vlaneseq
        %v2723 = vshrl.u32 %v2722, 7
        %v2724 = vsub.s32 0, %v2723
        %v2725 = vrot.slane %v2720, %v2724
        %v2743 = vunpack.c.l.b16 %v2704
        %v2744 = vunpack.c.l.b16 %v2705
        %v2745 = vunpack.c.l.b16 %v2706
        %v2746 = vunpack.c.l.b16 %v2707
        %v2747 = vunpack.c.l.b16 %v2708
        %v2748 = vunpack.c.l.b16 %v2709
        %v2749 = vunpack.c.l.b16 %v2710
        %v2750 = vunpack.c.l.b16 %v2711
        %v2751 = vunpack.c.l.b16 %v2712
        %v2752 = vunpack.c.l.b16 %v2713
        %v2753 = vunpack.c.l.b16 %v2714
        %v2754 = vunpack.c.l.b16 %v2715
        %v2755 = vunpack.c.l.b16 %v2716
        %v2756 = vunpack.c.l.b16 %v2717
        %v2757 = vunpack.c.l.b16 %v2718
        %v2758 = vunpack.c.l.b16 %v2719
        %v2759 = vpack.c.b16 %v2744, %v2743
        %v2760 = vpack.c.b16 %v2746, %v2745
        %v2761 = vpack.c.b16 %v2748, %v2747
        %v2762 = vpack.c.b16 %v2750, %v2749
        %v2763 = vpack.c.b16 %v2752, %v2751
        %v2764 = vpack.c.b16 %v2754, %v2753
        %v2765 = vpack.c.b16 %v2756, %v2755
        %v2766 = vpack.c.b16 %v2758, %v2757
        %2775 = vmatprep.subr.bf16.mxu0 0
        %2776 = vmatpush1.bf16.msra.mxu0 %v2759
        %2777 = vmatprep.subr.bf16.mxu0 0
        %2778 = vmatpush1.bf16.msra.mxu0 %v2760
        %2779 = vmatprep.subr.bf16.mxu0 0
        %2780 = vmatpush1.bf16.msra.mxu0 %v2761
        %2781 = vmatprep.subr.bf16.mxu0 0
        %2782 = vmatpush1.bf16.msra.mxu0 %v2762
        %2783 = vmatprep.subr.bf16.mxu0 0
        %2784 = vmatpush1.bf16.msra.mxu0 %v2763
        %2785 = vmatprep.subr.bf16.mxu0 0
        %2786 = vmatpush1.bf16.msra.mxu0 %v2764
        %2787 = vmatprep.subr.bf16.mxu0 0
        %2788 = vmatpush1.bf16.msra.mxu0 %v2765
        %2789 = vmatprep.subr.bf16.mxu0 0
        %2790 = vmatpush1.bf16.msra.mxu0 %v2766
        %2791 = vmatprep.subr.bf16.mxu0 0
        %2792 = vmatpush1.bf16.msra.mxu0 0
        %2793 = vmatprep.subr.bf16.mxu0 0
        %2794 = vmatpush1.bf16.msra.mxu0 0
        %2795 = vmatprep.subr.bf16.mxu0 0
        %2796 = vmatpush1.bf16.msra.mxu0 0
        %2797 = vmatprep.subr.bf16.mxu0 0
        %2798 = vmatpush1.bf16.msra.mxu0 0
        %2799 = vmatprep.subr.bf16.mxu0 0
        %2800 = vmatpush1.bf16.msra.mxu0 0
        %2801 = vmatprep.subr.bf16.mxu0 0
        %2802 = vmatpush1.bf16.msra.mxu0 0
        %2803 = vmatprep.subr.bf16.mxu0 0
        %2804 = vmatpush1.bf16.msra.mxu0 0
        %2805 = vmatprep.subr.bf16.mxu0 0
        %2806 = vmatpush1.bf16.msra.mxu0 0
        %2807 = vmatprep.mubr.bf16.mxu0 0
        %2808 = vmatmul.mubr.bf16.gmra.mrb[0].mxu0 %v2703
        %v2809 = vpop.f32.mrb[0].mxu0
        %v2810 = vadd.f32 %v2725, %v2809
        %v2811 = vpop.f32.mrb[0].mxu0
        %v2812 = vpop.f32.mrb[0].mxu0
        %v2813 = vpop.f32.mrb[0].mxu0
        %2814 = vdwg.mxu0
        %v2815 = vld [vmem:[%s18] sm:$0x1]
        %v2816 = vld [vmem:[%s19] sm:$0x1]
        %v2817 = vsel %vm1670, %v2810, 0.0
        %2818 = vadd.xlane.f32.xlu0 %v2817
        %v2819 = vpop.xlane.xlu0 %2818
        %v2820 = vmul.f32 %v2819, %v1690
        %v2821 = vsub.f32 %v2810, %v2820
        %v2822 = vmul.f32 %v2821, %v2821
        %v2823 = vsel %vm1670, %v2822, 0.0
        %2824 = vadd.xlane.f32.xlu0 %v2823
        %v2825 = vpop.xlane.xlu0 %2824
        %v2826 = vmul.f32 %v2825, %v1690
        %v2827 = vadd.f32 %v2826, 1e-05
        %v2828 = vrsqrt.pop %v2827
        %v2829 = vmul.f32 %v2821, %v2828
        %v2831 = vlaneseq
        %v2832 = vshrl.u32 %v2831, 7
        %v2833 = vsub.s32 0, %v2832
        %v2834 = vrot.slane %v2815, %v2833
        %v2836 = vmul.f32 %v2829, %v2834
        %v2838 = vlaneseq
        %v2839 = vshrl.u32 %v2838, 7
        %v2840 = vsub.s32 0, %v2839
        %v2841 = vrot.slane %v2816, %v2840
        %v2843 = vadd.f32 %v2836, %v2841
        %v2844 = vadd.f32 %v2843, %v2634
        %v2845 = vpack.c.bf16 %v2844, %v2844
        %vm2846 = vcmask 257024
        %2847 = vst.msk [vmem:[%s891] sm:$0xf] %vm2846, %v2845
        %s2848 = sand.u32 %s543, 1
        %s2849 = scalar_lea.sflag [#allocation7], %s2848
        %s2850 = sand.u32 %s543, 1
        %s2851 = smul.addr %s2850, 4
        %s2852 = scalar_lea.vmem [#allocation25], %s2851
        // Predicated region
        $region157: #{tpu_custom_call.1} parent=107 // pred_check
          %p2853 = pneg %p553
        $region158: #{tpu_custom_call.1} parent=107 // pred_check_branch
          %2855 = sbr.rel (%p2853) target = $region160
        $region159: #{tpu_custom_call.1} parent=107 // pred_region
          %s2857 = ssub.s32 64, 64
          %2858 = vsyncadd %s2849, %s2857
          %s2859 = smul.addr %s53, 64
          %s2860 = scalar_lea.hbm %s24, %s2859
          %s2862 = sshll.u32 %s2852, 4
          %s2863 = int_to_ptr.vmem [resolvable:$true] %s2862
          %2865 = dma.vmem_to_hbm [thread:$0]  %s2863, 64, %s2860, %s2849
        $region160: #{tpu_custom_call.1} parent=107 // pred_fallthru
          _
      $region108: #{tpu_custom_call.1} parent=5 // pred_fallthru
        _
      %p2866 = scmp.le.s32.totalorder 2, %s48
      // Predicated region
      $region161: #{tpu_custom_call.1} parent=5 // pred_check
        %p2867 = pneg %p2866
      $region162: #{tpu_custom_call.1} parent=5 // pred_check_branch
        %2869 = sbr.rel (%p2867) target = $region164
      $region163: #{tpu_custom_call.1} parent=5 // pred_region
        %s2870 = ssub.s32 %s48, 2
        // Predicated region
        $region165: #{tpu_custom_call.1} parent=163 // pred_check
          %p2871 = pneg %p559
        $region166: #{tpu_custom_call.1} parent=163 // pred_check_branch
          %2873 = sbr.rel (%p2871) target = $region168
        $region167: #{tpu_custom_call.1} parent=163 // pred_region
          %s2874 = sand.u32 %s544, 1
          %s2875 = scalar_lea.sflag [#allocation7], %s2874
          %s2876 = sand.u32 %s544, 1
          %s2877 = smul.addr %s2876, 4
          %s2878 = scalar_lea.vmem [#allocation25], %s2877
          %2879 = dma.done %s2875, 64
        $region168: #{tpu_custom_call.1} parent=163 // pred_fallthru
          _
      $region164: #{tpu_custom_call.1} parent=5 // pred_fallthru
        _
    $region6: #{tpu_custom_call.1} parent=1 // loop_footer
      %s52 = sadd.s32 1, %s48
    $region7: #{tpu_custom_call.1} parent=1 // loop_footer_branch
      %47 = sbr.rel target = $region3
    $region8: #{tpu_custom_call.1} parent=1 // loop_exit
      _
    %2880 = vsyncpa [#allocation6], 1
    %s2881 = scalar_lea.sflag [#allocation6], 1
    %2882 = vsyncpa %s2881, 1
    %2883 = vsyncpa [#allocation9], 1
    %2884 = vsyncpa [#allocation12], 1
    %2885 = vsyncpa [#allocation15], 1
    %2886 = vsyncpa [#allocation18], 1
    %2887 = vsyncpa [#allocation21], 1
    %2888 = vsyncpa [#allocation24], 1
    %2889 = vsyncpa [#allocation7], 1
    %s2890 = scalar_lea.sflag [#allocation7], 1
    %2891 = vsyncpa %s2890, 1

</llo_original>
